<compile_context>
chip_gen: v7x
topology: tpu7x:2x2x1
jax: 0.10.0
libtpu: 0.0.40
codegen_flags: <defaults>
</compile_context>

<pallas_src>
import functools
import math

import jax
import jax.numpy as jnp
from jax.experimental import pallas as pl
from jax.experimental.pallas import tpu as pltpu


# --------------------------------------------------------------------------
# In-kernel helpers
# --------------------------------------------------------------------------

def _ln(x, g, b, eps):
    """Row-wise LayerNorm over the last dim (f32). g,b: (1,H)."""
    mean = jnp.mean(x, axis=-1, keepdims=True)
    var = jnp.mean((x - mean) ** 2, axis=-1, keepdims=True)
    return (x - mean) * jax.lax.rsqrt(var + eps) * g + b


def _gelu(x):
    """tanh-approximate GELU (BERT intermediate activation), f32."""
    return 0.5 * x * (1.0 + jnp.tanh(0.7978845608028654
                                     * (x + 0.044715 * x * x * x)))


# --------------------------------------------------------------------------
# Pallas kernels
# --------------------------------------------------------------------------

def _layernorm_kernel(x_ref, g_ref, b_ref, o_ref, *, eps):
    """Embedding LayerNorm. x:(M,H), g,b:(1,H)."""
    o_ref[...] = _ln(x_ref[...], g_ref[...], b_ref[...], eps)


def _encoder_layer_kernel(x_ref, mask_ref,
                          wqkv_ref, bqkv_ref, wo_ref, bo_ref,
                          ln1g_ref, ln1b_ref,
                          w1_ref, b1_ref, w2_ref, b2_ref,
                          ln2g_ref, ln2b_ref,
                          o_ref, ctx_ref,
                          *, batch, seq, num_heads, head_dim, eps):
    """One fully fused BERT encoder layer.

    x:(B*S, H) f32, mask:(B, S) additive (-10000 at pads), weights bf16,
    biases / LN params f32.  ctx_ref is a (B*S, H) f32 VMEM scratch holding
    the attention context with heads concatenated on the lane axis.
    """
    H = num_heads * head_dim
    scale = 1.0 / math.sqrt(head_dim)

    x = x_ref[...]                                   # (B*S, H) f32 residual
    mask = mask_ref[...]                             # (B, S)

    # ---- fused Q|K|V projection: one (H, 3H) matmul, bf16 in / f32 acc ----
    qkv = jnp.dot(x.astype(jnp.bfloat16), wqkv_ref[...],
                  preferred_element_type=jnp.float32) + bqkv_ref[...]  # (B*S,3H)

    # ---- attention: all (batch, head) pairs inside one kernel invocation ----
    # Heads are Dh-wide lane chunks of qkv; no split_heads transposes needed.
    for b in range(batch):
        r0, r1 = b * seq, (b + 1) * seq
        mrow = mask[b:b + 1, :]                      # (1, S)
        for h in range(num_heads):
            c0 = h * head_dim
            qh = qkv[r0:r1, c0:c0 + head_dim]                    # (S, Dh)
            kh = qkv[r0:r1, H + c0:H + c0 + head_dim]            # (S, Dh)
            vh = qkv[r0:r1, 2 * H + c0:2 * H + c0 + head_dim]    # (S, Dh)

            s = jax.lax.dot_general(
                qh.astype(jnp.bfloat16), kh.astype(jnp.bfloat16),
                (((1,), (1,)), ((), ())),
                preferred_element_type=jnp.float32)              # (S, S)
            s = s * scale + mrow
            s = s - jnp.max(s, axis=-1, keepdims=True)
            p = jnp.exp(s)                                       # f32 softmax
            p = p * pl.reciprocal(jnp.sum(p, axis=-1, keepdims=True),
                                  approx=True)
            ctx_ref[r0:r1, c0:c0 + head_dim] = jnp.dot(
                p.astype(jnp.bfloat16), vh.astype(jnp.bfloat16),
                preferred_element_type=jnp.float32)

    ctx = ctx_ref[...]                               # (B*S, H), lane-dense

    # ---- output projection + residual + LayerNorm (fused) ----
    attn_out = jnp.dot(ctx.astype(jnp.bfloat16), wo_ref[...],
                       preferred_element_type=jnp.float32) + bo_ref[...]
    h1 = _ln(attn_out + x, ln1g_ref[...], ln1b_ref[...], eps)

    # ---- FFN (GELU in f32) + residual + LayerNorm (fused) ----
    f = jnp.dot(h1.astype(jnp.bfloat16), w1_ref[...],
                preferred_element_type=jnp.float32) + b1_ref[...]
    f = _gelu(f)
    f2 = jnp.dot(f.astype(jnp.bfloat16), w2_ref[...],
                 preferred_element_type=jnp.float32) + b2_ref[...]
    o_ref[...] = _ln(f2 + h1, ln2g_ref[...], ln2b_ref[...], eps)


def _pooler_classifier_kernel(x_ref, pw_ref, pb_ref, cw_ref, cb_ref, o_ref,
                              *, seq):
    """Fused BERT pooler (tanh) + final classifier.

    x:(B*S, H) encoder output; [CLS] rows (row b*seq) selected in-kernel.
    o:(B, out).
    """
    B = o_ref.shape[0]
    for b in range(B):
        cls_b = x_ref[pl.ds(b * seq, 1), :]                       # (1, H)
        pooled = jnp.tanh(
            jnp.dot(cls_b.astype(jnp.bfloat16), pw_ref[...],
                    preferred_element_type=jnp.float32) + pb_ref[...])
        o_ref[pl.ds(b, 1), :] = jnp.dot(
            pooled.astype(jnp.bfloat16), cw_ref[...],
            preferred_element_type=jnp.float32) + cb_ref[...]


# --------------------------------------------------------------------------
# Wrappers (grid=(), full arrays resident in VMEM — everything is tiny here)
# --------------------------------------------------------------------------

def layernorm(x, g, b, eps=1e-12):
    M, H = x.shape
    return pl.pallas_call(
        functools.partial(_layernorm_kernel, eps=eps),
        out_shape=jax.ShapeDtypeStruct((M, H), jnp.float32),
    )(x, g, b)


def encoder_layer(x, add_mask, p, batch, seq, num_heads, head_dim, eps=1e-12):
    M, H = x.shape
    return pl.pallas_call(
        functools.partial(_encoder_layer_kernel, batch=batch, seq=seq,
                          num_heads=num_heads, head_dim=head_dim, eps=eps),
        out_shape=jax.ShapeDtypeStruct((M, H), jnp.float32),
        scratch_shapes=[pltpu.VMEM((M, H), jnp.float32)],
    )(x, add_mask,
      p["wqkv"], p["bqkv"], p["wo"], p["bo"],
      p["ln1_g"], p["ln1_b"],
      p["w1"], p["b1"], p["w2"], p["b2"],
      p["ln2_g"], p["ln2_b"])


def pooler_classifier(x, pw, pb, cw, cb, seq):
    B = x.shape[0] // seq
    out = cw.shape[1]
    return pl.pallas_call(
        functools.partial(_pooler_classifier_kernel, seq=seq),
        out_shape=jax.ShapeDtypeStruct((B, out), jnp.float32),
    )(x, pw, pb, cw, cb)


# --------------------------------------------------------------------------
# Model (glue: embedding gathers, residual wiring)
# --------------------------------------------------------------------------

CFG = dict(vocab=50, max_pos=16, type_vocab=2, hidden=128,
           intermediate=512, layers=2, heads=2, out=4)


def init_params(key, cfg):
    H, I, O = cfg["hidden"], cfg["intermediate"], cfg["out"]

    def nrm(k, shape, dtype=jnp.float32):
        return (0.02 * jax.random.normal(k, shape, jnp.float32)).astype(dtype)

    keys = iter(jax.random.split(key, 256))
    p = {
        "word_emb": nrm(next(keys), (cfg["vocab"], H)),
        "pos_emb":  nrm(next(keys), (cfg["max_pos"], H)),
        "type_emb": nrm(next(keys), (cfg["type_vocab"], H)),
        "emb_ln_g": jnp.ones((1, H), jnp.float32),
        "emb_ln_b": jnp.zeros((1, H), jnp.float32),
        # pooler + classifier (weights in bf16 for MXU / HBM bytes)
        "pooler_w": nrm(next(keys), (H, H), jnp.bfloat16),
        "pooler_b": jnp.zeros((1, H), jnp.float32),
        "cls_w":    nrm(next(keys), (H, O), jnp.bfloat16),
        "cls_b":    jnp.zeros((1, O), jnp.float32),
        "layers":   [],
    }
    for _ in range(cfg["layers"]):
        layer = {
            # fused Q|K|V projection: (H, 3H) weight, (1, 3H) bias
            "wqkv": nrm(next(keys), (H, 3 * H), jnp.bfloat16),
            "bqkv": jnp.zeros((1, 3 * H), jnp.float32),
            "wo":   nrm(next(keys), (H, H), jnp.bfloat16),
            "bo":   jnp.zeros((1, H), jnp.float32),
            "ln1_g": jnp.ones((1, H), jnp.float32),
            "ln1_b": jnp.zeros((1, H), jnp.float32),
            "w1":   nrm(next(keys), (H, I), jnp.bfloat16),
            "b1":   jnp.zeros((1, I), jnp.float32),
            "w2":   nrm(next(keys), (I, H), jnp.bfloat16),
            "b2":   jnp.zeros((1, H), jnp.float32),
            "ln2_g": jnp.ones((1, H), jnp.float32),
            "ln2_b": jnp.zeros((1, H), jnp.float32),
        }
        p["layers"].append(layer)
    return p


def bert_classifier_forward(params, input_ids, attention_mask, token_type_ids,
                            num_heads):
    B, S = input_ids.shape
    H = params["word_emb"].shape[1]
    head_dim = H // num_heads

    # Embeddings (data-dependent gather kept in XLA), then in-kernel LayerNorm.
    # TODO(synk): the embedding table gather stays in XLA; an in-kernel DMA
    # gather is not worth it at this size.
    emb = (params["word_emb"][input_ids]
           + params["pos_emb"][:S][None, :, :]
           + params["type_emb"][token_type_ids])
    x = layernorm(emb.reshape(B * S, H), params["emb_ln_g"], params["emb_ln_b"])

    # Additive attention mask: 0 where attended, -10000 where padded. (B, S)
    add_mask = (1.0 - attention_mask.astype(jnp.float32)) * -10000.0

    # One fused pallas_call per encoder layer.
    for layer in params["layers"]:
        x = encoder_layer(x, add_mask, layer, B, S, num_heads, head_dim)

    # Fused pooler ([CLS] row, tanh) + final linear classifier.
    logits = pooler_classifier(x, params["pooler_w"], params["pooler_b"],
                               params["cls_w"], params["cls_b"], seq=S)
    return logits


# --------------------------------------------------------------------------

if __name__ == "__main__":
    key = jax.random.PRNGKey(0)
    cfg = CFG
    B, S = 2, 8

    params = init_params(jax.random.fold_in(key, 1), cfg)

    input_ids = jax.random.randint(jax.random.fold_in(key, 2), (B, S),
                                   0, cfg["vocab"], dtype=jnp.int32)
    attention_mask = jnp.ones((B, S), jnp.int32).at[1, 6:].set(0)
    token_type_ids = jnp.zeros((B, S), jnp.int32).at[:, 4:].set(1)

    fwd = jax.jit(functools.partial(bert_classifier_forward,
                                    num_heads=cfg["heads"]))
    logits = fwd(params, input_ids, attention_mask, token_type_ids)
    jax.block_until_ready(logits)

    assert logits.shape == (B, cfg["out"]), logits.shape
    assert jnp.all(jnp.isfinite(logits))
    print("KERNEL_OK")
</pallas_src>

<mosaic_0001>
module attributes {stable_mosaic.version = 11 : i64} {
  func.func @_layernorm_kernel(%arg0: memref<16x128xf32, #tpu.memory_space<vmem>>, %arg1: memref<1x128xf32, #tpu.memory_space<vmem>>, %arg2: memref<1x128xf32, #tpu.memory_space<vmem>>, %arg3: memref<16x128xf32, #tpu.memory_space<vmem>>) attributes {dimension_semantics = [], scalar_prefetch = 0 : i64, scratch_operands = 0 : i64, tpu.core_type = #tpu.core_type<tc>} {
    %c0 = arith.constant 0 : index
    %c0_0 = arith.constant 0 : index
    %0 = vector.load %arg0[%c0, %c0_0] : memref<16x128xf32, #tpu.memory_space<vmem>>, vector<16x128xf32>
    %c0_1 = arith.constant 0 : index
    %c0_2 = arith.constant 0 : index
    %1 = vector.load %arg1[%c0_1, %c0_2] : memref<1x128xf32, #tpu.memory_space<vmem>>, vector<1x128xf32>
    %c0_3 = arith.constant 0 : index
    %c0_4 = arith.constant 0 : index
    %2 = vector.load %arg2[%c0_3, %c0_4] : memref<1x128xf32, #tpu.memory_space<vmem>>, vector<1x128xf32>
    %cst = arith.constant dense<0.000000e+00> : vector<16xf32>
    %3 = vector.multi_reduction <add>, %0, %cst [1] : vector<16x128xf32> to vector<16xf32>
    %4 = vector.shape_cast %3 : vector<16xf32> to vector<16x1xf32>
    %cst_5 = arith.constant 1.280000e+02 : f32
    %5 = vector.broadcast %cst_5 : f32 to vector<16x1xf32>
    %6 = arith.divf %4, %5 : vector<16x1xf32>
    %7 = vector.broadcast %6 : vector<16x1xf32> to vector<16x128xf32>
    %8 = arith.subf %0, %7 : vector<16x128xf32>
    %9 = arith.mulf %8, %8 : vector<16x128xf32>
    %cst_6 = arith.constant dense<0.000000e+00> : vector<16xf32>
    %10 = vector.multi_reduction <add>, %9, %cst_6 [1] : vector<16x128xf32> to vector<16xf32>
    %11 = vector.shape_cast %10 : vector<16xf32> to vector<16x1xf32>
    %cst_7 = arith.constant 1.280000e+02 : f32
    %12 = vector.broadcast %cst_7 : f32 to vector<16x1xf32>
    %13 = arith.divf %11, %12 : vector<16x1xf32>
    %14 = vector.broadcast %6 : vector<16x1xf32> to vector<16x128xf32>
    %15 = arith.subf %0, %14 : vector<16x128xf32>
    %cst_8 = arith.constant 9.99999996E-13 : f32
    %16 = vector.broadcast %cst_8 : f32 to vector<16x1xf32>
    %17 = arith.addf %13, %16 : vector<16x1xf32>
    %18 = math.rsqrt %17 : vector<16x1xf32>
    %19 = vector.broadcast %18 : vector<16x1xf32> to vector<16x128xf32>
    %20 = arith.mulf %15, %19 : vector<16x128xf32>
    %21 = vector.broadcast %1 : vector<1x128xf32> to vector<16x128xf32>
    %22 = arith.mulf %20, %21 : vector<16x128xf32>
    %23 = vector.broadcast %2 : vector<1x128xf32> to vector<16x128xf32>
    %24 = arith.addf %22, %23 : vector<16x128xf32>
    %c0_9 = arith.constant 0 : index
    %c0_10 = arith.constant 0 : index
    %25 = vector.load %arg3[%c0_9, %c0_10] : memref<16x128xf32, #tpu.memory_space<vmem>>, vector<16x128xf32>
    tpu.vector_store %arg3[%c0_9, %c0_10], %24 {strides = array<i32>} : memref<16x128xf32, #tpu.memory_space<vmem>>, vector<16x128xf32>,
    return
  }
}

module attributes {stable_mosaic.version = 11 : i64} {
  func.func @_encoder_layer_kernel(%arg0: memref<16x128xf32, #tpu.memory_space<vmem>>, %arg1: memref<2x8xf32, #tpu.memory_space<vmem>>, %arg2: memref<128x384xbf16, #tpu.memory_space<vmem>>, %arg3: memref<1x384xf32, #tpu.memory_space<vmem>>, %arg4: memref<128x128xbf16, #tpu.memory_space<vmem>>, %arg5: memref<1x128xf32, #tpu.memory_space<vmem>>, %arg6: memref<1x128xf32, #tpu.memory_space<vmem>>, %arg7: memref<1x128xf32, #tpu.memory_space<vmem>>, %arg8: memref<128x512xbf16, #tpu.memory_space<vmem>>, %arg9: memref<1x512xf32, #tpu.memory_space<vmem>>, %arg10: memref<512x128xbf16, #tpu.memory_space<vmem>>, %arg11: memref<1x128xf32, #tpu.memory_space<vmem>>, %arg12: memref<1x128xf32, #tpu.memory_space<vmem>>, %arg13: memref<1x128xf32, #tpu.memory_space<vmem>>, %arg14: memref<16x128xf32, #tpu.memory_space<vmem>>, %arg15: memref<16x128xf32, #tpu.memory_space<vmem>>) attributes {dimension_semantics = [], scalar_prefetch = 0 : i64, scratch_operands = 1 : i64, tpu.core_type = #tpu.core_type<tc>} {
    %c0 = arith.constant 0 : index
    %c0_0 = arith.constant 0 : index
    %0 = vector.load %arg0[%c0, %c0_0] : memref<16x128xf32, #tpu.memory_space<vmem>>, vector<16x128xf32>
    %c0_1 = arith.constant 0 : index
    %c0_2 = arith.constant 0 : index
    %1 = vector.load %arg1[%c0_1, %c0_2] : memref<2x8xf32, #tpu.memory_space<vmem>>, vector<2x8xf32>
    %2 = arith.truncf %0 : vector<16x128xf32> to vector<16x128xbf16>
    %c0_3 = arith.constant 0 : index
    %c0_4 = arith.constant 0 : index
    %3 = vector.load %arg2[%c0_3, %c0_4] : memref<128x384xbf16, #tpu.memory_space<vmem>>, vector<128x384xbf16>
    %cst = arith.constant dense<0.000000e+00> : vector<16x384xf32>
    %4 = tpu.matmul %2, %3, %cst {dimension_numbers = #tpu.dot_dimension_numbers<[1], [0], [0], [1], [0, 0, 1, 1], [], []>} : vector<16x128xbf16>, vector<128x384xbf16>, vector<16x384xf32> -> vector<16x384xf32>
    %c0_5 = arith.constant 0 : index
    %c0_6 = arith.constant 0 : index
    %5 = vector.load %arg3[%c0_5, %c0_6] : memref<1x384xf32, #tpu.memory_space<vmem>>, vector<1x384xf32>
    %6 = vector.broadcast %5 : vector<1x384xf32> to vector<16x384xf32>
    %7 = arith.addf %4, %6 : vector<16x384xf32>
    %8 = vector.extract_strided_slice %1 {offsets = [0, 0], sizes = [1, 8], strides = [1, 1]} : vector<2x8xf32> to vector<1x8xf32>
    %9 = vector.extract_strided_slice %7 {offsets = [0, 0], sizes = [8, 64], strides = [1, 1]} : vector<16x384xf32> to vector<8x64xf32>
    %10 = vector.extract_strided_slice %7 {offsets = [0, 128], sizes = [8, 64], strides = [1, 1]} : vector<16x384xf32> to vector<8x64xf32>
    %11 = vector.extract_strided_slice %7 {offsets = [0, 256], sizes = [8, 64], strides = [1, 1]} : vector<16x384xf32> to vector<8x64xf32>
    %12 = arith.truncf %9 : vector<8x64xf32> to vector<8x64xbf16>
    %13 = arith.truncf %10 : vector<8x64xf32> to vector<8x64xbf16>
    %cst_7 = arith.constant dense<0.000000e+00> : vector<8x8xf32>
    %14 = tpu.matmul %12, %13, %cst_7 {dimension_numbers = #tpu.dot_dimension_numbers<[1], [1], [0], [0], [0, 0, 1, 0], [], []>} : vector<8x64xbf16>, vector<8x64xbf16>, vector<8x8xf32> -> vector<8x8xf32>
    %cst_8 = arith.constant 1.250000e-01 : f32
    %15 = vector.broadcast %cst_8 : f32 to vector<8x8xf32>
    %16 = arith.mulf %14, %15 : vector<8x8xf32>
    %17 = vector.broadcast %8 : vector<1x8xf32> to vector<8x8xf32>
    %18 = arith.addf %16, %17 : vector<8x8xf32>
    %cst_9 = arith.constant dense<0xFF800000> : vector<8xf32>
    %19 = vector.multi_reduction <maximumf>, %18, %cst_9 [1] : vector<8x8xf32> to vector<8xf32>
    %20 = vector.shape_cast %19 : vector<8xf32> to vector<8x1xf32>
    %21 = vector.broadcast %20 : vector<8x1xf32> to vector<8x8xf32>
    %22 = arith.subf %18, %21 : vector<8x8xf32>
    %23 = math.exp %22 : vector<8x8xf32>
    %cst_10 = arith.constant dense<0.000000e+00> : vector<8xf32>
    %24 = vector.multi_reduction <add>, %23, %cst_10 [1] : vector<8x8xf32> to vector<8xf32>
    %25 = vector.shape_cast %24 : vector<8xf32> to vector<8x1xf32>
    %26 = tpu.reciprocal %25 {approx = true} : vector<8x1xf32> -> vector<8x1xf32>
    %27 = vector.broadcast %26 : vector<8x1xf32> to vector<8x8xf32>
    %28 = arith.mulf %23, %27 : vector<8x8xf32>
    %29 = arith.truncf %28 : vector<8x8xf32> to vector<8x8xbf16>
    %30 = arith.truncf %11 : vector<8x64xf32> to vector<8x64xbf16>
    %cst_11 = arith.constant dense<0.000000e+00> : vector<8x64xf32>
    %31 = tpu.matmul %29, %30, %cst_11 {dimension_numbers = #tpu.dot_dimension_numbers<[1], [0], [0], [1], [0, 0, 1, 1], [], []>} : vector<8x8xbf16>, vector<8x64xbf16>, vector<8x64xf32> -> vector<8x64xf32>
    %c0_12 = arith.constant 0 : index
    %c0_13 = arith.constant 0 : index
    %32 = vector.load %arg15[%c0_12, %c0_13] : memref<16x128xf32, #tpu.memory_space<vmem>>, vector<8x64xf32>
    tpu.vector_store %arg15[%c0_12, %c0_13], %31 {strides = array<i32>} : memref<16x128xf32, #tpu.memory_space<vmem>>, vector<8x64xf32>,
    %33 = vector.extract_strided_slice %7 {offsets = [0, 64], sizes = [8, 64], strides = [1, 1]} : vector<16x384xf32> to vector<8x64xf32>
    %34 = vector.extract_strided_slice %7 {offsets = [0, 192], sizes = [8, 64], strides = [1, 1]} : vector<16x384xf32> to vector<8x64xf32>
    %35 = vector.extract_strided_slice %7 {offsets = [0, 320], sizes = [8, 64], strides = [1, 1]} : vector<16x384xf32> to vector<8x64xf32>
    %36 = arith.truncf %33 : vector<8x64xf32> to vector<8x64xbf16>
    %37 = arith.truncf %34 : vector<8x64xf32> to vector<8x64xbf16>
    %cst_14 = arith.constant dense<0.000000e+00> : vector<8x8xf32>
    %38 = tpu.matmul %36, %37, %cst_14 {dimension_numbers = #tpu.dot_dimension_numbers<[1], [1], [0], [0], [0, 0, 1, 0], [], []>} : vector<8x64xbf16>, vector<8x64xbf16>, vector<8x8xf32> -> vector<8x8xf32>
    %cst_15 = arith.constant 1.250000e-01 : f32
    %39 = vector.broadcast %cst_15 : f32 to vector<8x8xf32>
    %40 = arith.mulf %38, %39 : vector<8x8xf32>
    %41 = vector.broadcast %8 : vector<1x8xf32> to vector<8x8xf32>
    %42 = arith.addf %40, %41 : vector<8x8xf32>
    %cst_16 = arith.constant dense<0xFF800000> : vector<8xf32>
    %43 = vector.multi_reduction <maximumf>, %42, %cst_16 [1] : vector<8x8xf32> to vector<8xf32>
    %44 = vector.shape_cast %43 : vector<8xf32> to vector<8x1xf32>
    %45 = vector.broadcast %44 : vector<8x1xf32> to vector<8x8xf32>
    %46 = arith.subf %42, %45 : vector<8x8xf32>
    %47 = math.exp %46 : vector<8x8xf32>
    %cst_17 = arith.constant dense<0.000000e+00> : vector<8xf32>
    %48 = vector.multi_reduction <add>, %47, %cst_17 [1] : vector<8x8xf32> to vector<8xf32>
    %49 = vector.shape_cast %48 : vector<8xf32> to vector<8x1xf32>
    %50 = tpu.reciprocal %49 {approx = true} : vector<8x1xf32> -> vector<8x1xf32>
    %51 = vector.broadcast %50 : vector<8x1xf32> to vector<8x8xf32>
    %52 = arith.mulf %47, %51 : vector<8x8xf32>
    %53 = arith.truncf %52 : vector<8x8xf32> to vector<8x8xbf16>
    %54 = arith.truncf %35 : vector<8x64xf32> to vector<8x64xbf16>
    %cst_18 = arith.constant dense<0.000000e+00> : vector<8x64xf32>
    %55 = tpu.matmul %53, %54, %cst_18 {dimension_numbers = #tpu.dot_dimension_numbers<[1], [0], [0], [1], [0, 0, 1, 1], [], []>} : vector<8x8xbf16>, vector<8x64xbf16>, vector<8x64xf32> -> vector<8x64xf32>
    %c0_19 = arith.constant 0 : index
    %c64 = arith.constant 64 : index
    %56 = vector.load %arg15[%c0_19, %c64] : memref<16x128xf32, #tpu.memory_space<vmem>>, vector<8x64xf32>
    tpu.vector_store %arg15[%c0_19, %c64], %55 {strides = array<i32>} : memref<16x128xf32, #tpu.memory_space<vmem>>, vector<8x64xf32>,
    %57 = vector.extract_strided_slice %1 {offsets = [1, 0], sizes = [1, 8], strides = [1, 1]} : vector<2x8xf32> to vector<1x8xf32>
    %58 = vector.extract_strided_slice %7 {offsets = [8, 0], sizes = [8, 64], strides = [1, 1]} : vector<16x384xf32> to vector<8x64xf32>
    %59 = vector.extract_strided_slice %7 {offsets = [8, 128], sizes = [8, 64], strides = [1, 1]} : vector<16x384xf32> to vector<8x64xf32>
    %60 = vector.extract_strided_slice %7 {offsets = [8, 256], sizes = [8, 64], strides = [1, 1]} : vector<16x384xf32> to vector<8x64xf32>
    %61 = arith.truncf %58 : vector<8x64xf32> to vector<8x64xbf16>
    %62 = arith.truncf %59 : vector<8x64xf32> to vector<8x64xbf16>
    %cst_20 = arith.constant dense<0.000000e+00> : vector<8x8xf32>
    %63 = tpu.matmul %61, %62, %cst_20 {dimension_numbers = #tpu.dot_dimension_numbers<[1], [1], [0], [0], [0, 0, 1, 0], [], []>} : vector<8x64xbf16>, vector<8x64xbf16>, vector<8x8xf32> -> vector<8x8xf32>
    %cst_21 = arith.constant 1.250000e-01 : f32
    %64 = vector.broadcast %cst_21 : f32 to vector<8x8xf32>
    %65 = arith.mulf %63, %64 : vector<8x8xf32>
    %66 = vector.broadcast %57 : vector<1x8xf32> to vector<8x8xf32>
    %67 = arith.addf %65, %66 : vector<8x8xf32>
    %cst_22 = arith.constant dense<0xFF800000> : vector<8xf32>
    %68 = vector.multi_reduction <maximumf>, %67, %cst_22 [1] : vector<8x8xf32> to vector<8xf32>
    %69 = vector.shape_cast %68 : vector<8xf32> to vector<8x1xf32>
    %70 = vector.broadcast %69 : vector<8x1xf32> to vector<8x8xf32>
    %71 = arith.subf %67, %70 : vector<8x8xf32>
    %72 = math.exp %71 : vector<8x8xf32>
    %cst_23 = arith.constant dense<0.000000e+00> : vector<8xf32>
    %73 = vector.multi_reduction <add>, %72, %cst_23 [1] : vector<8x8xf32> to vector<8xf32>
    %74 = vector.shape_cast %73 : vector<8xf32> to vector<8x1xf32>
    %75 = tpu.reciprocal %74 {approx = true} : vector<8x1xf32> -> vector<8x1xf32>
    %76 = vector.broadcast %75 : vector<8x1xf32> to vector<8x8xf32>
    %77 = arith.mulf %72, %76 : vector<8x8xf32>
    %78 = arith.truncf %77 : vector<8x8xf32> to vector<8x8xbf16>
    %79 = arith.truncf %60 : vector<8x64xf32> to vector<8x64xbf16>
    %cst_24 = arith.constant dense<0.000000e+00> : vector<8x64xf32>
    %80 = tpu.matmul %78, %79, %cst_24 {dimension_numbers = #tpu.dot_dimension_numbers<[1], [0], [0], [1], [0, 0, 1, 1], [], []>} : vector<8x8xbf16>, vector<8x64xbf16>, vector<8x64xf32> -> vector<8x64xf32>
    %c8 = arith.constant 8 : index
    %c0_25 = arith.constant 0 : index
    %81 = vector.load %arg15[%c8, %c0_25] : memref<16x128xf32, #tpu.memory_space<vmem>>, vector<8x64xf32>
    tpu.vector_store %arg15[%c8, %c0_25], %80 {strides = array<i32>} : memref<16x128xf32, #tpu.memory_space<vmem>>, vector<8x64xf32>,
    %82 = vector.extract_strided_slice %7 {offsets = [8, 64], sizes = [8, 64], strides = [1, 1]} : vector<16x384xf32> to vector<8x64xf32>
    %83 = vector.extract_strided_slice %7 {offsets = [8, 192], sizes = [8, 64], strides = [1, 1]} : vector<16x384xf32> to vector<8x64xf32>
    %84 = vector.extract_strided_slice %7 {offsets = [8, 320], sizes = [8, 64], strides = [1, 1]} : vector<16x384xf32> to vector<8x64xf32>
    %85 = arith.truncf %82 : vector<8x64xf32> to vector<8x64xbf16>
    %86 = arith.truncf %83 : vector<8x64xf32> to vector<8x64xbf16>
    %cst_26 = arith.constant dense<0.000000e+00> : vector<8x8xf32>
    %87 = tpu.matmul %85, %86, %cst_26 {dimension_numbers = #tpu.dot_dimension_numbers<[1], [1], [0], [0], [0, 0, 1, 0], [], []>} : vector<8x64xbf16>, vector<8x64xbf16>, vector<8x8xf32> -> vector<8x8xf32>
    %cst_27 = arith.constant 1.250000e-01 : f32
    %88 = vector.broadcast %cst_27 : f32 to vector<8x8xf32>
    %89 = arith.mulf %87, %88 : vector<8x8xf32>
    %90 = vector.broadcast %57 : vector<1x8xf32> to vector<8x8xf32>
    %91 = arith.addf %89, %90 : vector<8x8xf32>
    %cst_28 = arith.constant dense<0xFF800000> : vector<8xf32>
    %92 = vector.multi_reduction <maximumf>, %91, %cst_28 [1] : vector<8x8xf32> to vector<8xf32>
    %93 = vector.shape_cast %92 : vector<8xf32> to vector<8x1xf32>
    %94 = vector.broadcast %93 : vector<8x1xf32> to vector<8x8xf32>
    %95 = arith.subf %91, %94 : vector<8x8xf32>
    %96 = math.exp %95 : vector<8x8xf32>
    %cst_29 = arith.constant dense<0.000000e+00> : vector<8xf32>
    %97 = vector.multi_reduction <add>, %96, %cst_29 [1] : vector<8x8xf32> to vector<8xf32>
    %98 = vector.shape_cast %97 : vector<8xf32> to vector<8x1xf32>
    %99 = tpu.reciprocal %98 {approx = true} : vector<8x1xf32> -> vector<8x1xf32>
    %100 = vector.broadcast %99 : vector<8x1xf32> to vector<8x8xf32>
    %101 = arith.mulf %96, %100 : vector<8x8xf32>
    %102 = arith.truncf %101 : vector<8x8xf32> to vector<8x8xbf16>
    %103 = arith.truncf %84 : vector<8x64xf32> to vector<8x64xbf16>
    %cst_30 = arith.constant dense<0.000000e+00> : vector<8x64xf32>
    %104 = tpu.matmul %102, %103, %cst_30 {dimension_numbers = #tpu.dot_dimension_numbers<[1], [0], [0], [1], [0, 0, 1, 1], [], []>} : vector<8x8xbf16>, vector<8x64xbf16>, vector<8x64xf32> -> vector<8x64xf32>
    %c8_31 = arith.constant 8 : index
    %c64_32 = arith.constant 64 : index
    %105 = vector.load %arg15[%c8_31, %c64_32] : memref<16x128xf32, #tpu.memory_space<vmem>>, vector<8x64xf32>
    tpu.vector_store %arg15[%c8_31, %c64_32], %104 {strides = array<i32>} : memref<16x128xf32, #tpu.memory_space<vmem>>, vector<8x64xf32>,
    %c0_33 = arith.constant 0 : index
    %c0_34 = arith.constant 0 : index
    %106 = vector.load %arg15[%c0_33, %c0_34] : memref<16x128xf32, #tpu.memory_space<vmem>>, vector<16x128xf32>
    %107 = arith.truncf %106 : vector<16x128xf32> to vector<16x128xbf16>
    %c0_35 = arith.constant 0 : index
    %c0_36 = arith.constant 0 : index
    %108 = vector.load %arg4[%c0_35, %c0_36] : memref<128x128xbf16, #tpu.memory_space<vmem>>, vector<128x128xbf16>
    %cst_37 = arith.constant dense<0.000000e+00> : vector<16x128xf32>
    %109 = tpu.matmul %107, %108, %cst_37 {dimension_numbers = #tpu.dot_dimension_numbers<[1], [0], [0], [1], [0, 0, 1, 1], [], []>} : vector<16x128xbf16>, vector<128x128xbf16>, vector<16x128xf32> -> vector<16x128xf32>
    %c0_38 = arith.constant 0 : index
    %c0_39 = arith.constant 0 : index
    %110 = vector.load %arg5[%c0_38, %c0_39] : memref<1x128xf32, #tpu.memory_space<vmem>>, vector<1x128xf32>
    %111 = vector.broadcast %110 : vector<1x128xf32> to vector<16x128xf32>
    %112 = arith.addf %109, %111 : vector<16x128xf32>
    %113 = arith.addf %112, %0 : vector<16x128xf32>
    %c0_40 = arith.constant 0 : index
    %c0_41 = arith.constant 0 : index
    %114 = vector.load %arg6[%c0_40, %c0_41] : memref<1x128xf32, #tpu.memory_space<vmem>>, vector<1x128xf32>
    %c0_42 = arith.constant 0 : index
    %c0_43 = arith.constant 0 : index
    %115 = vector.load %arg7[%c0_42, %c0_43] : memref<1x128xf32, #tpu.memory_space<vmem>>, vector<1x128xf32>
    %cst_44 = arith.constant dense<0.000000e+00> : vector<16xf32>
    %116 = vector.multi_reduction <add>, %113, %cst_44 [1] : vector<16x128xf32> to vector<16xf32>
    %117 = vector.shape_cast %116 : vector<16xf32> to vector<16x1xf32>
    %cst_45 = arith.constant 1.280000e+02 : f32
    %118 = vector.broadcast %cst_45 : f32 to vector<16x1xf32>
    %119 = arith.divf %117, %118 : vector<16x1xf32>
    %120 = vector.broadcast %119 : vector<16x1xf32> to vector<16x128xf32>
    %121 = arith.subf %113, %120 : vector<16x128xf32>
    %122 = arith.mulf %121, %121 : vector<16x128xf32>
    %cst_46 = arith.constant dense<0.000000e+00> : vector<16xf32>
    %123 = vector.multi_reduction <add>, %122, %cst_46 [1] : vector<16x128xf32> to vector<16xf32>
    %124 = vector.shape_cast %123 : vector<16xf32> to vector<16x1xf32>
    %cst_47 = arith.constant 1.280000e+02 : f32
    %125 = vector.broadcast %cst_47 : f32 to vector<16x1xf32>
    %126 = arith.divf %124, %125 : vector<16x1xf32>
    %127 = vector.broadcast %119 : vector<16x1xf32> to vector<16x128xf32>
    %128 = arith.subf %113, %127 : vector<16x128xf32>
    %cst_48 = arith.constant 9.99999996E-13 : f32
    %129 = vector.broadcast %cst_48 : f32 to vector<16x1xf32>
    %130 = arith.addf %126, %129 : vector<16x1xf32>
    %131 = math.rsqrt %130 : vector<16x1xf32>
    %132 = vector.broadcast %131 : vector<16x1xf32> to vector<16x128xf32>
    %133 = arith.mulf %128, %132 : vector<16x128xf32>
    %134 = vector.broadcast %114 : vector<1x128xf32> to vector<16x128xf32>
    %135 = arith.mulf %133, %134 : vector<16x128xf32>
    %136 = vector.broadcast %115 : vector<1x128xf32> to vector<16x128xf32>
    %137 = arith.addf %135, %136 : vector<16x128xf32>
    %138 = arith.truncf %137 : vector<16x128xf32> to vector<16x128xbf16>
    %c0_49 = arith.constant 0 : index
    %c0_50 = arith.constant 0 : index
    %139 = vector.load %arg8[%c0_49, %c0_50] : memref<128x512xbf16, #tpu.memory_space<vmem>>, vector<128x512xbf16>
    %cst_51 = arith.constant dense<0.000000e+00> : vector<16x512xf32>
    %140 = tpu.matmul %138, %139, %cst_51 {dimension_numbers = #tpu.dot_dimension_numbers<[1], [0], [0], [1], [0, 0, 1, 1], [], []>} : vector<16x128xbf16>, vector<128x512xbf16>, vector<16x512xf32> -> vector<16x512xf32>
    %c0_52 = arith.constant 0 : index
    %c0_53 = arith.constant 0 : index
    %141 = vector.load %arg9[%c0_52, %c0_53] : memref<1x512xf32, #tpu.memory_space<vmem>>, vector<1x512xf32>
    %142 = vector.broadcast %141 : vector<1x512xf32> to vector<16x512xf32>
    %143 = arith.addf %140, %142 : vector<16x512xf32>
    %cst_54 = arith.constant 5.000000e-01 : f32
    %144 = vector.broadcast %cst_54 : f32 to vector<16x512xf32>
    %145 = arith.mulf %144, %143 : vector<16x512xf32>
    %cst_55 = arith.constant 4.471500e-02 : f32
    %146 = vector.broadcast %cst_55 : f32 to vector<16x512xf32>
    %147 = arith.mulf %146, %143 : vector<16x512xf32>
    %148 = arith.mulf %147, %143 : vector<16x512xf32>
    %149 = arith.mulf %148, %143 : vector<16x512xf32>
    %150 = arith.addf %143, %149 : vector<16x512xf32>
    %cst_56 = arith.constant 0.797884583 : f32
    %151 = vector.broadcast %cst_56 : f32 to vector<16x512xf32>
    %152 = arith.mulf %151, %150 : vector<16x512xf32>
    %153 = math.tanh %152 : vector<16x512xf32>
    %cst_57 = arith.constant 1.000000e+00 : f32
    %154 = vector.broadcast %cst_57 : f32 to vector<16x512xf32>
    %155 = arith.addf %154, %153 : vector<16x512xf32>
    %156 = arith.mulf %145, %155 : vector<16x512xf32>
    %157 = arith.truncf %156 : vector<16x512xf32> to vector<16x512xbf16>
    %c0_58 = arith.constant 0 : index
    %c0_59 = arith.constant 0 : index
    %158 = vector.load %arg10[%c0_58, %c0_59] : memref<512x128xbf16, #tpu.memory_space<vmem>>, vector<512x128xbf16>
    %cst_60 = arith.constant dense<0.000000e+00> : vector<16x128xf32>
    %159 = tpu.matmul %157, %158, %cst_60 {dimension_numbers = #tpu.dot_dimension_numbers<[1], [0], [0], [1], [0, 0, 1, 1], [], []>} : vector<16x512xbf16>, vector<512x128xbf16>, vector<16x128xf32> -> vector<16x128xf32>
    %c0_61 = arith.constant 0 : index
    %c0_62 = arith.constant 0 : index
    %160 = vector.load %arg11[%c0_61, %c0_62] : memref<1x128xf32, #tpu.memory_space<vmem>>, vector<1x128xf32>
    %161 = vector.broadcast %160 : vector<1x128xf32> to vector<16x128xf32>
    %162 = arith.addf %159, %161 : vector<16x128xf32>
    %163 = arith.addf %162, %137 : vector<16x128xf32>
    %c0_63 = arith.constant 0 : index
    %c0_64 = arith.constant 0 : index
    %164 = vector.load %arg12[%c0_63, %c0_64] : memref<1x128xf32, #tpu.memory_space<vmem>>, vector<1x128xf32>
    %c0_65 = arith.constant 0 : index
    %c0_66 = arith.constant 0 : index
    %165 = vector.load %arg13[%c0_65, %c0_66] : memref<1x128xf32, #tpu.memory_space<vmem>>, vector<1x128xf32>
    %cst_67 = arith.constant dense<0.000000e+00> : vector<16xf32>
    %166 = vector.multi_reduction <add>, %163, %cst_67 [1] : vector<16x128xf32> to vector<16xf32>
    %167 = vector.shape_cast %166 : vector<16xf32> to vector<16x1xf32>
    %cst_68 = arith.constant 1.280000e+02 : f32
    %168 = vector.broadcast %cst_68 : f32 to vector<16x1xf32>
    %169 = arith.divf %167, %168 : vector<16x1xf32>
    %170 = vector.broadcast %169 : vector<16x1xf32> to vector<16x128xf32>
    %171 = arith.subf %163, %170 : vector<16x128xf32>
    %172 = arith.mulf %171, %171 : vector<16x128xf32>
    %cst_69 = arith.constant dense<0.000000e+00> : vector<16xf32>
    %173 = vector.multi_reduction <add>, %172, %cst_69 [1] : vector<16x128xf32> to vector<16xf32>
    %174 = vector.shape_cast %173 : vector<16xf32> to vector<16x1xf32>
    %cst_70 = arith.constant 1.280000e+02 : f32
    %175 = vector.broadcast %cst_70 : f32 to vector<16x1xf32>
    %176 = arith.divf %174, %175 : vector<16x1xf32>
    %177 = vector.broadcast %169 : vector<16x1xf32> to vector<16x128xf32>
    %178 = arith.subf %163, %177 : vector<16x128xf32>
    %cst_71 = arith.constant 9.99999996E-13 : f32
    %179 = vector.broadcast %cst_71 : f32 to vector<16x1xf32>
    %180 = arith.addf %176, %179 : vector<16x1xf32>
    %181 = math.rsqrt %180 : vector<16x1xf32>
    %182 = vector.broadcast %181 : vector<16x1xf32> to vector<16x128xf32>
    %183 = arith.mulf %178, %182 : vector<16x128xf32>
    %184 = vector.broadcast %164 : vector<1x128xf32> to vector<16x128xf32>
    %185 = arith.mulf %183, %184 : vector<16x128xf32>
    %186 = vector.broadcast %165 : vector<1x128xf32> to vector<16x128xf32>
    %187 = arith.addf %185, %186 : vector<16x128xf32>
    %c0_72 = arith.constant 0 : index
    %c0_73 = arith.constant 0 : index
    %188 = vector.load %arg14[%c0_72, %c0_73] : memref<16x128xf32, #tpu.memory_space<vmem>>, vector<16x128xf32>
    tpu.vector_store %arg14[%c0_72, %c0_73], %187 {strides = array<i32>} : memref<16x128xf32, #tpu.memory_space<vmem>>, vector<16x128xf32>,
    return
  }
}

module attributes {stable_mosaic.version = 11 : i64} {
  func.func @_encoder_layer_kernel(%arg0: memref<16x128xf32, #tpu.memory_space<vmem>>, %arg1: memref<2x8xf32, #tpu.memory_space<vmem>>, %arg2: memref<128x384xbf16, #tpu.memory_space<vmem>>, %arg3: memref<1x384xf32, #tpu.memory_space<vmem>>, %arg4: memref<128x128xbf16, #tpu.memory_space<vmem>>, %arg5: memref<1x128xf32, #tpu.memory_space<vmem>>, %arg6: memref<1x128xf32, #tpu.memory_space<vmem>>, %arg7: memref<1x128xf32, #tpu.memory_space<vmem>>, %arg8: memref<128x512xbf16, #tpu.memory_space<vmem>>, %arg9: memref<1x512xf32, #tpu.memory_space<vmem>>, %arg10: memref<512x128xbf16, #tpu.memory_space<vmem>>, %arg11: memref<1x128xf32, #tpu.memory_space<vmem>>, %arg12: memref<1x128xf32, #tpu.memory_space<vmem>>, %arg13: memref<1x128xf32, #tpu.memory_space<vmem>>, %arg14: memref<16x128xf32, #tpu.memory_space<vmem>>, %arg15: memref<16x128xf32, #tpu.memory_space<vmem>>) attributes {dimension_semantics = [], scalar_prefetch = 0 : i64, scratch_operands = 1 : i64, tpu.core_type = #tpu.core_type<tc>} {
    %c0 = arith.constant 0 : index
    %c0_0 = arith.constant 0 : index
    %0 = vector.load %arg0[%c0, %c0_0] : memref<16x128xf32, #tpu.memory_space<vmem>>, vector<16x128xf32>
    %c0_1 = arith.constant 0 : index
    %c0_2 = arith.constant 0 : index
    %1 = vector.load %arg1[%c0_1, %c0_2] : memref<2x8xf32, #tpu.memory_space<vmem>>, vector<2x8xf32>
    %2 = arith.truncf %0 : vector<16x128xf32> to vector<16x128xbf16>
    %c0_3 = arith.constant 0 : index
    %c0_4 = arith.constant 0 : index
    %3 = vector.load %arg2[%c0_3, %c0_4] : memref<128x384xbf16, #tpu.memory_space<vmem>>, vector<128x384xbf16>
    %cst = arith.constant dense<0.000000e+00> : vector<16x384xf32>
    %4 = tpu.matmul %2, %3, %cst {dimension_numbers = #tpu.dot_dimension_numbers<[1], [0], [0], [1], [0, 0, 1, 1], [], []>} : vector<16x128xbf16>, vector<128x384xbf16>, vector<16x384xf32> -> vector<16x384xf32>
    %c0_5 = arith.constant 0 : index
    %c0_6 = arith.constant 0 : index
    %5 = vector.load %arg3[%c0_5, %c0_6] : memref<1x384xf32, #tpu.memory_space<vmem>>, vector<1x384xf32>
    %6 = vector.broadcast %5 : vector<1x384xf32> to vector<16x384xf32>
    %7 = arith.addf %4, %6 : vector<16x384xf32>
    %8 = vector.extract_strided_slice %1 {offsets = [0, 0], sizes = [1, 8], strides = [1, 1]} : vector<2x8xf32> to vector<1x8xf32>
    %9 = vector.extract_strided_slice %7 {offsets = [0, 0], sizes = [8, 64], strides = [1, 1]} : vector<16x384xf32> to vector<8x64xf32>
    %10 = vector.extract_strided_slice %7 {offsets = [0, 128], sizes = [8, 64], strides = [1, 1]} : vector<16x384xf32> to vector<8x64xf32>
    %11 = vector.extract_strided_slice %7 {offsets = [0, 256], sizes = [8, 64], strides = [1, 1]} : vector<16x384xf32> to vector<8x64xf32>
    %12 = arith.truncf %9 : vector<8x64xf32> to vector<8x64xbf16>
    %13 = arith.truncf %10 : vector<8x64xf32> to vector<8x64xbf16>
    %cst_7 = arith.constant dense<0.000000e+00> : vector<8x8xf32>
    %14 = tpu.matmul %12, %13, %cst_7 {dimension_numbers = #tpu.dot_dimension_numbers<[1], [1], [0], [0], [0, 0, 1, 0], [], []>} : vector<8x64xbf16>, vector<8x64xbf16>, vector<8x8xf32> -> vector<8x8xf32>
    %cst_8 = arith.constant 1.250000e-01 : f32
    %15 = vector.broadcast %cst_8 : f32 to vector<8x8xf32>
    %16 = arith.mulf %14, %15 : vector<8x8xf32>
    %17 = vector.broadcast %8 : vector<1x8xf32> to vector<8x8xf32>
    %18 = arith.addf %16, %17 : vector<8x8xf32>
    %cst_9 = arith.constant dense<0xFF800000> : vector<8xf32>
    %19 = vector.multi_reduction <maximumf>, %18, %cst_9 [1] : vector<8x8xf32> to vector<8xf32>
    %20 = vector.shape_cast %19 : vector<8xf32> to vector<8x1xf32>
    %21 = vector.broadcast %20 : vector<8x1xf32> to vector<8x8xf32>
    %22 = arith.subf %18, %21 : vector<8x8xf32>
    %23 = math.exp %22 : vector<8x8xf32>
    %cst_10 = arith.constant dense<0.000000e+00> : vector<8xf32>
    %24 = vector.multi_reduction <add>, %23, %cst_10 [1] : vector<8x8xf32> to vector<8xf32>
    %25 = vector.shape_cast %24 : vector<8xf32> to vector<8x1xf32>
    %26 = tpu.reciprocal %25 {approx = true} : vector<8x1xf32> -> vector<8x1xf32>
    %27 = vector.broadcast %26 : vector<8x1xf32> to vector<8x8xf32>
    %28 = arith.mulf %23, %27 : vector<8x8xf32>
    %29 = arith.truncf %28 : vector<8x8xf32> to vector<8x8xbf16>
    %30 = arith.truncf %11 : vector<8x64xf32> to vector<8x64xbf16>
    %cst_11 = arith.constant dense<0.000000e+00> : vector<8x64xf32>
    %31 = tpu.matmul %29, %30, %cst_11 {dimension_numbers = #tpu.dot_dimension_numbers<[1], [0], [0], [1], [0, 0, 1, 1], [], []>} : vector<8x8xbf16>, vector<8x64xbf16>, vector<8x64xf32> -> vector<8x64xf32>
    %c0_12 = arith.constant 0 : index
    %c0_13 = arith.constant 0 : index
    %32 = vector.load %arg15[%c0_12, %c0_13] : memref<16x128xf32, #tpu.memory_space<vmem>>, vector<8x64xf32>
    tpu.vector_store %arg15[%c0_12, %c0_13], %31 {strides = array<i32>} : memref<16x128xf32, #tpu.memory_space<vmem>>, vector<8x64xf32>,
    %33 = vector.extract_strided_slice %7 {offsets = [0, 64], sizes = [8, 64], strides = [1, 1]} : vector<16x384xf32> to vector<8x64xf32>
    %34 = vector.extract_strided_slice %7 {offsets = [0, 192], sizes = [8, 64], strides = [1, 1]} : vector<16x384xf32> to vector<8x64xf32>
    %35 = vector.extract_strided_slice %7 {offsets = [0, 320], sizes = [8, 64], strides = [1, 1]} : vector<16x384xf32> to vector<8x64xf32>
    %36 = arith.truncf %33 : vector<8x64xf32> to vector<8x64xbf16>
    %37 = arith.truncf %34 : vector<8x64xf32> to vector<8x64xbf16>
    %cst_14 = arith.constant dense<0.000000e+00> : vector<8x8xf32>
    %38 = tpu.matmul %36, %37, %cst_14 {dimension_numbers = #tpu.dot_dimension_numbers<[1], [1], [0], [0], [0, 0, 1, 0], [], []>} : vector<8x64xbf16>, vector<8x64xbf16>, vector<8x8xf32> -> vector<8x8xf32>
    %cst_15 = arith.constant 1.250000e-01 : f32
    %39 = vector.broadcast %cst_15 : f32 to vector<8x8xf32>
    %40 = arith.mulf %38, %39 : vector<8x8xf32>
    %41 = vector.broadcast %8 : vector<1x8xf32> to vector<8x8xf32>
    %42 = arith.addf %40, %41 : vector<8x8xf32>
    %cst_16 = arith.constant dense<0xFF800000> : vector<8xf32>
    %43 = vector.multi_reduction <maximumf>, %42, %cst_16 [1] : vector<8x8xf32> to vector<8xf32>
    %44 = vector.shape_cast %43 : vector<8xf32> to vector<8x1xf32>
    %45 = vector.broadcast %44 : vector<8x1xf32> to vector<8x8xf32>
    %46 = arith.subf %42, %45 : vector<8x8xf32>
    %47 = math.exp %46 : vector<8x8xf32>
    %cst_17 = arith.constant dense<0.000000e+00> : vector<8xf32>
    %48 = vector.multi_reduction <add>, %47, %cst_17 [1] : vector<8x8xf32> to vector<8xf32>
    %49 = vector.shape_cast %48 : vector<8xf32> to vector<8x1xf32>
    %50 = tpu.reciprocal %49 {approx = true} : vector<8x1xf32> -> vector<8x1xf32>
    %51 = vector.broadcast %50 : vector<8x1xf32> to vector<8x8xf32>
    %52 = arith.mulf %47, %51 : vector<8x8xf32>
    %53 = arith.truncf %52 : vector<8x8xf32> to vector<8x8xbf16>
    %54 = arith.truncf %35 : vector<8x64xf32> to vector<8x64xbf16>
    %cst_18 = arith.constant dense<0.000000e+00> : vector<8x64xf32>
    %55 = tpu.matmul %53, %54, %cst_18 {dimension_numbers = #tpu.dot_dimension_numbers<[1], [0], [0], [1], [0, 0, 1, 1], [], []>} : vector<8x8xbf16>, vector<8x64xbf16>, vector<8x64xf32> -> vector<8x64xf32>
    %c0_19 = arith.constant 0 : index
    %c64 = arith.constant 64 : index
    %56 = vector.load %arg15[%c0_19, %c64] : memref<16x128xf32, #tpu.memory_space<vmem>>, vector<8x64xf32>
    tpu.vector_store %arg15[%c0_19, %c64], %55 {strides = array<i32>} : memref<16x128xf32, #tpu.memory_space<vmem>>, vector<8x64xf32>,
    %57 = vector.extract_strided_slice %1 {offsets = [1, 0], sizes = [1, 8], strides = [1, 1]} : vector<2x8xf32> to vector<1x8xf32>
    %58 = vector.extract_strided_slice %7 {offsets = [8, 0], sizes = [8, 64], strides = [1, 1]} : vector<16x384xf32> to vector<8x64xf32>
    %59 = vector.extract_strided_slice %7 {offsets = [8, 128], sizes = [8, 64], strides = [1, 1]} : vector<16x384xf32> to vector<8x64xf32>
    %60 = vector.extract_strided_slice %7 {offsets = [8, 256], sizes = [8, 64], strides = [1, 1]} : vector<16x384xf32> to vector<8x64xf32>
    %61 = arith.truncf %58 : vector<8x64xf32> to vector<8x64xbf16>
    %62 = arith.truncf %59 : vector<8x64xf32> to vector<8x64xbf16>
    %cst_20 = arith.constant dense<0.000000e+00> : vector<8x8xf32>
    %63 = tpu.matmul %61, %62, %cst_20 {dimension_numbers = #tpu.dot_dimension_numbers<[1], [1], [0], [0], [0, 0, 1, 0], [], []>} : vector<8x64xbf16>, vector<8x64xbf16>, vector<8x8xf32> -> vector<8x8xf32>
    %cst_21 = arith.constant 1.250000e-01 : f32
    %64 = vector.broadcast %cst_21 : f32 to vector<8x8xf32>
    %65 = arith.mulf %63, %64 : vector<8x8xf32>
    %66 = vector.broadcast %57 : vector<1x8xf32> to vector<8x8xf32>
    %67 = arith.addf %65, %66 : vector<8x8xf32>
    %cst_22 = arith.constant dense<0xFF800000> : vector<8xf32>
    %68 = vector.multi_reduction <maximumf>, %67, %cst_22 [1] : vector<8x8xf32> to vector<8xf32>
    %69 = vector.shape_cast %68 : vector<8xf32> to vector<8x1xf32>
    %70 = vector.broadcast %69 : vector<8x1xf32> to vector<8x8xf32>
    %71 = arith.subf %67, %70 : vector<8x8xf32>
    %72 = math.exp %71 : vector<8x8xf32>
    %cst_23 = arith.constant dense<0.000000e+00> : vector<8xf32>
    %73 = vector.multi_reduction <add>, %72, %cst_23 [1] : vector<8x8xf32> to vector<8xf32>
    %74 = vector.shape_cast %73 : vector<8xf32> to vector<8x1xf32>
    %75 = tpu.reciprocal %74 {approx = true} : vector<8x1xf32> -> vector<8x1xf32>
    %76 = vector.broadcast %75 : vector<8x1xf32> to vector<8x8xf32>
    %77 = arith.mulf %72, %76 : vector<8x8xf32>
    %78 = arith.truncf %77 : vector<8x8xf32> to vector<8x8xbf16>
    %79 = arith.truncf %60 : vector<8x64xf32> to vector<8x64xbf16>
    %cst_24 = arith.constant dense<0.000000e+00> : vector<8x64xf32>
    %80 = tpu.matmul %78, %79, %cst_24 {dimension_numbers = #tpu.dot_dimension_numbers<[1], [0], [0], [1], [0, 0, 1, 1], [], []>} : vector<8x8xbf16>, vector<8x64xbf16>, vector<8x64xf32> -> vector<8x64xf32>
    %c8 = arith.constant 8 : index
    %c0_25 = arith.constant 0 : index
    %81 = vector.load %arg15[%c8, %c0_25] : memref<16x128xf32, #tpu.memory_space<vmem>>, vector<8x64xf32>
    tpu.vector_store %arg15[%c8, %c0_25], %80 {strides = array<i32>} : memref<16x128xf32, #tpu.memory_space<vmem>>, vector<8x64xf32>,
    %82 = vector.extract_strided_slice %7 {offsets = [8, 64], sizes = [8, 64], strides = [1, 1]} : vector<16x384xf32> to vector<8x64xf32>
    %83 = vector.extract_strided_slice %7 {offsets = [8, 192], sizes = [8, 64], strides = [1, 1]} : vector<16x384xf32> to vector<8x64xf32>
    %84 = vector.extract_strided_slice %7 {offsets = [8, 320], sizes = [8, 64], strides = [1, 1]} : vector<16x384xf32> to vector<8x64xf32>
    %85 = arith.truncf %82 : vector<8x64xf32> to vector<8x64xbf16>
    %86 = arith.truncf %83 : vector<8x64xf32> to vector<8x64xbf16>
    %cst_26 = arith.constant dense<0.000000e+00> : vector<8x8xf32>
    %87 = tpu.matmul %85, %86, %cst_26 {dimension_numbers = #tpu.dot_dimension_numbers<[1], [1], [0], [0], [0, 0, 1, 0], [], []>} : vector<8x64xbf16>, vector<8x64xbf16>, vector<8x8xf32> -> vector<8x8xf32>
    %cst_27 = arith.constant 1.250000e-01 : f32
    %88 = vector.broadcast %cst_27 : f32 to vector<8x8xf32>
    %89 = arith.mulf %87, %88 : vector<8x8xf32>
    %90 = vector.broadcast %57 : vector<1x8xf32> to vector<8x8xf32>
    %91 = arith.addf %89, %90 : vector<8x8xf32>
    %cst_28 = arith.constant dense<0xFF800000> : vector<8xf32>
    %92 = vector.multi_reduction <maximumf>, %91, %cst_28 [1] : vector<8x8xf32> to vector<8xf32>
    %93 = vector.shape_cast %92 : vector<8xf32> to vector<8x1xf32>
    %94 = vector.broadcast %93 : vector<8x1xf32> to vector<8x8xf32>
    %95 = arith.subf %91, %94 : vector<8x8xf32>
    %96 = math.exp %95 : vector<8x8xf32>
    %cst_29 = arith.constant dense<0.000000e+00> : vector<8xf32>
    %97 = vector.multi_reduction <add>, %96, %cst_29 [1] : vector<8x8xf32> to vector<8xf32>
    %98 = vector.shape_cast %97 : vector<8xf32> to vector<8x1xf32>
    %99 = tpu.reciprocal %98 {approx = true} : vector<8x1xf32> -> vector<8x1xf32>
    %100 = vector.broadcast %99 : vector<8x1xf32> to vector<8x8xf32>
    %101 = arith.mulf %96, %100 : vector<8x8xf32>
    %102 = arith.truncf %101 : vector<8x8xf32> to vector<8x8xbf16>
    %103 = arith.truncf %84 : vector<8x64xf32> to vector<8x64xbf16>
    %cst_30 = arith.constant dense<0.000000e+00> : vector<8x64xf32>
    %104 = tpu.matmul %102, %103, %cst_30 {dimension_numbers = #tpu.dot_dimension_numbers<[1], [0], [0], [1], [0, 0, 1, 1], [], []>} : vector<8x8xbf16>, vector<8x64xbf16>, vector<8x64xf32> -> vector<8x64xf32>
    %c8_31 = arith.constant 8 : index
    %c64_32 = arith.constant 64 : index
    %105 = vector.load %arg15[%c8_31, %c64_32] : memref<16x128xf32, #tpu.memory_space<vmem>>, vector<8x64xf32>
    tpu.vector_store %arg15[%c8_31, %c64_32], %104 {strides = array<i32>} : memref<16x128xf32, #tpu.memory_space<vmem>>, vector<8x64xf32>,
    %c0_33 = arith.constant 0 : index
    %c0_34 = arith.constant 0 : index
    %106 = vector.load %arg15[%c0_33, %c0_34] : memref<16x128xf32, #tpu.memory_space<vmem>>, vector<16x128xf32>
    %107 = arith.truncf %106 : vector<16x128xf32> to vector<16x128xbf16>
    %c0_35 = arith.constant 0 : index
    %c0_36 = arith.constant 0 : index
    %108 = vector.load %arg4[%c0_35, %c0_36] : memref<128x128xbf16, #tpu.memory_space<vmem>>, vector<128x128xbf16>
    %cst_37 = arith.constant dense<0.000000e+00> : vector<16x128xf32>
    %109 = tpu.matmul %107, %108, %cst_37 {dimension_numbers = #tpu.dot_dimension_numbers<[1], [0], [0], [1], [0, 0, 1, 1], [], []>} : vector<16x128xbf16>, vector<128x128xbf16>, vector<16x128xf32> -> vector<16x128xf32>
    %c0_38 = arith.constant 0 : index
    %c0_39 = arith.constant 0 : index
    %110 = vector.load %arg5[%c0_38, %c0_39] : memref<1x128xf32, #tpu.memory_space<vmem>>, vector<1x128xf32>
    %111 = vector.broadcast %110 : vector<1x128xf32> to vector<16x128xf32>
    %112 = arith.addf %109, %111 : vector<16x128xf32>
    %113 = arith.addf %112, %0 : vector<16x128xf32>
    %c0_40 = arith.constant 0 : index
    %c0_41 = arith.constant 0 : index
    %114 = vector.load %arg6[%c0_40, %c0_41] : memref<1x128xf32, #tpu.memory_space<vmem>>, vector<1x128xf32>
    %c0_42 = arith.constant 0 : index
    %c0_43 = arith.constant 0 : index
    %115 = vector.load %arg7[%c0_42, %c0_43] : memref<1x128xf32, #tpu.memory_space<vmem>>, vector<1x128xf32>
    %cst_44 = arith.constant dense<0.000000e+00> : vector<16xf32>
    %116 = vector.multi_reduction <add>, %113, %cst_44 [1] : vector<16x128xf32> to vector<16xf32>
    %117 = vector.shape_cast %116 : vector<16xf32> to vector<16x1xf32>
    %cst_45 = arith.constant 1.280000e+02 : f32
    %118 = vector.broadcast %cst_45 : f32 to vector<16x1xf32>
    %119 = arith.divf %117, %118 : vector<16x1xf32>
    %120 = vector.broadcast %119 : vector<16x1xf32> to vector<16x128xf32>
    %121 = arith.subf %113, %120 : vector<16x128xf32>
    %122 = arith.mulf %121, %121 : vector<16x128xf32>
    %cst_46 = arith.constant dense<0.000000e+00> : vector<16xf32>
    %123 = vector.multi_reduction <add>, %122, %cst_46 [1] : vector<16x128xf32> to vector<16xf32>
    %124 = vector.shape_cast %123 : vector<16xf32> to vector<16x1xf32>
    %cst_47 = arith.constant 1.280000e+02 : f32
    %125 = vector.broadcast %cst_47 : f32 to vector<16x1xf32>
    %126 = arith.divf %124, %125 : vector<16x1xf32>
    %127 = vector.broadcast %119 : vector<16x1xf32> to vector<16x128xf32>
    %128 = arith.subf %113, %127 : vector<16x128xf32>
    %cst_48 = arith.constant 9.99999996E-13 : f32
    %129 = vector.broadcast %cst_48 : f32 to vector<16x1xf32>
    %130 = arith.addf %126, %129 : vector<16x1xf32>
    %131 = math.rsqrt %130 : vector<16x1xf32>
    %132 = vector.broadcast %131 : vector<16x1xf32> to vector<16x128xf32>
    %133 = arith.mulf %128, %132 : vector<16x128xf32>
    %134 = vector.broadcast %114 : vector<1x128xf32> to vector<16x128xf32>
    %135 = arith.mulf %133, %134 : vector<16x128xf32>
    %136 = vector.broadcast %115 : vector<1x128xf32> to vector<16x128xf32>
    %137 = arith.addf %135, %136 : vector<16x128xf32>
    %138 = arith.truncf %137 : vector<16x128xf32> to vector<16x128xbf16>
    %c0_49 = arith.constant 0 : index
    %c0_50 = arith.constant 0 : index
    %139 = vector.load %arg8[%c0_49, %c0_50] : memref<128x512xbf16, #tpu.memory_space<vmem>>, vector<128x512xbf16>
    %cst_51 = arith.constant dense<0.000000e+00> : vector<16x512xf32>
    %140 = tpu.matmul %138, %139, %cst_51 {dimension_numbers = #tpu.dot_dimension_numbers<[1], [0], [0], [1], [0, 0, 1, 1], [], []>} : vector<16x128xbf16>, vector<128x512xbf16>, vector<16x512xf32> -> vector<16x512xf32>
    %c0_52 = arith.constant 0 : index
    %c0_53 = arith.constant 0 : index
    %141 = vector.load %arg9[%c0_52, %c0_53] : memref<1x512xf32, #tpu.memory_space<vmem>>, vector<1x512xf32>
    %142 = vector.broadcast %141 : vector<1x512xf32> to vector<16x512xf32>
    %143 = arith.addf %140, %142 : vector<16x512xf32>
    %cst_54 = arith.constant 5.000000e-01 : f32
    %144 = vector.broadcast %cst_54 : f32 to vector<16x512xf32>
    %145 = arith.mulf %144, %143 : vector<16x512xf32>
    %cst_55 = arith.constant 4.471500e-02 : f32
    %146 = vector.broadcast %cst_55 : f32 to vector<16x512xf32>
    %147 = arith.mulf %146, %143 : vector<16x512xf32>
    %148 = arith.mulf %147, %143 : vector<16x512xf32>
    %149 = arith.mulf %148, %143 : vector<16x512xf32>
    %150 = arith.addf %143, %149 : vector<16x512xf32>
    %cst_56 = arith.constant 0.797884583 : f32
    %151 = vector.broadcast %cst_56 : f32 to vector<16x512xf32>
    %152 = arith.mulf %151, %150 : vector<16x512xf32>
    %153 = math.tanh %152 : vector<16x512xf32>
    %cst_57 = arith.constant 1.000000e+00 : f32
    %154 = vector.broadcast %cst_57 : f32 to vector<16x512xf32>
    %155 = arith.addf %154, %153 : vector<16x512xf32>
    %156 = arith.mulf %145, %155 : vector<16x512xf32>
    %157 = arith.truncf %156 : vector<16x512xf32> to vector<16x512xbf16>
    %c0_58 = arith.constant 0 : index
    %c0_59 = arith.constant 0 : index
    %158 = vector.load %arg10[%c0_58, %c0_59] : memref<512x128xbf16, #tpu.memory_space<vmem>>, vector<512x128xbf16>
    %cst_60 = arith.constant dense<0.000000e+00> : vector<16x128xf32>
    %159 = tpu.matmul %157, %158, %cst_60 {dimension_numbers = #tpu.dot_dimension_numbers<[1], [0], [0], [1], [0, 0, 1, 1], [], []>} : vector<16x512xbf16>, vector<512x128xbf16>, vector<16x128xf32> -> vector<16x128xf32>
    %c0_61 = arith.constant 0 : index
    %c0_62 = arith.constant 0 : index
    %160 = vector.load %arg11[%c0_61, %c0_62] : memref<1x128xf32, #tpu.memory_space<vmem>>, vector<1x128xf32>
    %161 = vector.broadcast %160 : vector<1x128xf32> to vector<16x128xf32>
    %162 = arith.addf %159, %161 : vector<16x128xf32>
    %163 = arith.addf %162, %137 : vector<16x128xf32>
    %c0_63 = arith.constant 0 : index
    %c0_64 = arith.constant 0 : index
    %164 = vector.load %arg12[%c0_63, %c0_64] : memref<1x128xf32, #tpu.memory_space<vmem>>, vector<1x128xf32>
    %c0_65 = arith.constant 0 : index
    %c0_66 = arith.constant 0 : index
    %165 = vector.load %arg13[%c0_65, %c0_66] : memref<1x128xf32, #tpu.memory_space<vmem>>, vector<1x128xf32>
    %cst_67 = arith.constant dense<0.000000e+00> : vector<16xf32>
    %166 = vector.multi_reduction <add>, %163, %cst_67 [1] : vector<16x128xf32> to vector<16xf32>
    %167 = vector.shape_cast %166 : vector<16xf32> to vector<16x1xf32>
    %cst_68 = arith.constant 1.280000e+02 : f32
    %168 = vector.broadcast %cst_68 : f32 to vector<16x1xf32>
    %169 = arith.divf %167, %168 : vector<16x1xf32>
    %170 = vector.broadcast %169 : vector<16x1xf32> to vector<16x128xf32>
    %171 = arith.subf %163, %170 : vector<16x128xf32>
    %172 = arith.mulf %171, %171 : vector<16x128xf32>
    %cst_69 = arith.constant dense<0.000000e+00> : vector<16xf32>
    %173 = vector.multi_reduction <add>, %172, %cst_69 [1] : vector<16x128xf32> to vector<16xf32>
    %174 = vector.shape_cast %173 : vector<16xf32> to vector<16x1xf32>
    %cst_70 = arith.constant 1.280000e+02 : f32
    %175 = vector.broadcast %cst_70 : f32 to vector<16x1xf32>
    %176 = arith.divf %174, %175 : vector<16x1xf32>
    %177 = vector.broadcast %169 : vector<16x1xf32> to vector<16x128xf32>
    %178 = arith.subf %163, %177 : vector<16x128xf32>
    %cst_71 = arith.constant 9.99999996E-13 : f32
    %179 = vector.broadcast %cst_71 : f32 to vector<16x1xf32>
    %180 = arith.addf %176, %179 : vector<16x1xf32>
    %181 = math.rsqrt %180 : vector<16x1xf32>
    %182 = vector.broadcast %181 : vector<16x1xf32> to vector<16x128xf32>
    %183 = arith.mulf %178, %182 : vector<16x128xf32>
    %184 = vector.broadcast %164 : vector<1x128xf32> to vector<16x128xf32>
    %185 = arith.mulf %183, %184 : vector<16x128xf32>
    %186 = vector.broadcast %165 : vector<1x128xf32> to vector<16x128xf32>
    %187 = arith.addf %185, %186 : vector<16x128xf32>
    %c0_72 = arith.constant 0 : index
    %c0_73 = arith.constant 0 : index
    %188 = vector.load %arg14[%c0_72, %c0_73] : memref<16x128xf32, #tpu.memory_space<vmem>>, vector<16x128xf32>
    tpu.vector_store %arg14[%c0_72, %c0_73], %187 {strides = array<i32>} : memref<16x128xf32, #tpu.memory_space<vmem>>, vector<16x128xf32>,
    return
  }
}

module attributes {stable_mosaic.version = 11 : i64} {
  func.func @_pooler_classifier_kernel(%arg0: memref<16x128xf32, #tpu.memory_space<vmem>>, %arg1: memref<128x128xbf16, #tpu.memory_space<vmem>>, %arg2: memref<1x128xf32, #tpu.memory_space<vmem>>, %arg3: memref<128x4xbf16, #tpu.memory_space<vmem>>, %arg4: memref<1x4xf32, #tpu.memory_space<vmem>>, %arg5: memref<2x4xf32, #tpu.memory_space<vmem>>) attributes {dimension_semantics = [], scalar_prefetch = 0 : i64, scratch_operands = 0 : i64, tpu.core_type = #tpu.core_type<tc>} {
    %c0 = arith.constant 0 : index
    %c0_0 = arith.constant 0 : index
    %0 = vector.load %arg0[%c0, %c0_0] : memref<16x128xf32, #tpu.memory_space<vmem>>, vector<1x128xf32>
    %1 = arith.truncf %0 : vector<1x128xf32> to vector<1x128xbf16>
    %c0_1 = arith.constant 0 : index
    %c0_2 = arith.constant 0 : index
    %2 = vector.load %arg1[%c0_1, %c0_2] : memref<128x128xbf16, #tpu.memory_space<vmem>>, vector<128x128xbf16>
    %cst = arith.constant dense<0.000000e+00> : vector<1x128xf32>
    %3 = tpu.matmul %1, %2, %cst {dimension_numbers = #tpu.dot_dimension_numbers<[1], [0], [0], [1], [0, 0, 1, 1], [], []>} : vector<1x128xbf16>, vector<128x128xbf16>, vector<1x128xf32> -> vector<1x128xf32>
    %c0_3 = arith.constant 0 : index
    %c0_4 = arith.constant 0 : index
    %4 = vector.load %arg2[%c0_3, %c0_4] : memref<1x128xf32, #tpu.memory_space<vmem>>, vector<1x128xf32>
    %5 = arith.addf %3, %4 : vector<1x128xf32>
    %6 = math.tanh %5 : vector<1x128xf32>
    %7 = arith.truncf %6 : vector<1x128xf32> to vector<1x128xbf16>
    %c0_5 = arith.constant 0 : index
    %c0_6 = arith.constant 0 : index
    %8 = vector.load %arg3[%c0_5, %c0_6] : memref<128x4xbf16, #tpu.memory_space<vmem>>, vector<128x4xbf16>
    %cst_7 = arith.constant dense<0.000000e+00> : vector<1x4xf32>
    %9 = tpu.matmul %7, %8, %cst_7 {dimension_numbers = #tpu.dot_dimension_numbers<[1], [0], [0], [1], [0, 0, 1, 1], [], []>} : vector<1x128xbf16>, vector<128x4xbf16>, vector<1x4xf32> -> vector<1x4xf32>
    %c0_8 = arith.constant 0 : index
    %c0_9 = arith.constant 0 : index
    %10 = vector.load %arg4[%c0_8, %c0_9] : memref<1x4xf32, #tpu.memory_space<vmem>>, vector<1x4xf32>
    %11 = arith.addf %9, %10 : vector<1x4xf32>
    %c0_10 = arith.constant 0 : index
    %c0_11 = arith.constant 0 : index
    %12 = vector.load %arg5[%c0_10, %c0_11] : memref<2x4xf32, #tpu.memory_space<vmem>>, vector<1x4xf32>
    tpu.vector_store %arg5[%c0_10, %c0_11], %11 {strides = array<i32>} : memref<2x4xf32, #tpu.memory_space<vmem>>, vector<1x4xf32>,
    %c8 = arith.constant 8 : index
    %c0_12 = arith.constant 0 : index
    %13 = vector.load %arg0[%c8, %c0_12] : memref<16x128xf32, #tpu.memory_space<vmem>>, vector<1x128xf32>
    %14 = arith.truncf %13 : vector<1x128xf32> to vector<1x128xbf16>
    %c0_13 = arith.constant 0 : index
    %c0_14 = arith.constant 0 : index
    %15 = vector.load %arg1[%c0_13, %c0_14] : memref<128x128xbf16, #tpu.memory_space<vmem>>, vector<128x128xbf16>
    %cst_15 = arith.constant dense<0.000000e+00> : vector<1x128xf32>
    %16 = tpu.matmul %14, %15, %cst_15 {dimension_numbers = #tpu.dot_dimension_numbers<[1], [0], [0], [1], [0, 0, 1, 1], [], []>} : vector<1x128xbf16>, vector<128x128xbf16>, vector<1x128xf32> -> vector<1x128xf32>
    %c0_16 = arith.constant 0 : index
    %c0_17 = arith.constant 0 : index
    %17 = vector.load %arg2[%c0_16, %c0_17] : memref<1x128xf32, #tpu.memory_space<vmem>>, vector<1x128xf32>
    %18 = arith.addf %16, %17 : vector<1x128xf32>
    %19 = math.tanh %18 : vector<1x128xf32>
    %20 = arith.truncf %19 : vector<1x128xf32> to vector<1x128xbf16>
    %c0_18 = arith.constant 0 : index
    %c0_19 = arith.constant 0 : index
    %21 = vector.load %arg3[%c0_18, %c0_19] : memref<128x4xbf16, #tpu.memory_space<vmem>>, vector<128x4xbf16>
    %cst_20 = arith.constant dense<0.000000e+00> : vector<1x4xf32>
    %22 = tpu.matmul %20, %21, %cst_20 {dimension_numbers = #tpu.dot_dimension_numbers<[1], [0], [0], [1], [0, 0, 1, 1], [], []>} : vector<1x128xbf16>, vector<128x4xbf16>, vector<1x4xf32> -> vector<1x4xf32>
    %c0_21 = arith.constant 0 : index
    %c0_22 = arith.constant 0 : index
    %23 = vector.load %arg4[%c0_21, %c0_22] : memref<1x4xf32, #tpu.memory_space<vmem>>, vector<1x4xf32>
    %24 = arith.addf %22, %23 : vector<1x4xf32>
    %c1 = arith.constant 1 : index
    %c0_23 = arith.constant 0 : index
    %25 = vector.load %arg5[%c1, %c0_23] : memref<2x4xf32, #tpu.memory_space<vmem>>, vector<1x4xf32>
    tpu.vector_store %arg5[%c1, %c0_23], %24 {strides = array<i32>} : memref<2x4xf32, #tpu.memory_space<vmem>>, vector<1x4xf32>,
    return
  }
}

</mosaic_0001>

<llo_original>
// kernel: bert_classifier_forward.4
$region0: #{bert_classifier_forward.4}
  #allocation0 [shape = 'u32[]', space=smem, size = 0x4, offset = 0x4, fixed_abs, tag = 'smem constant byte address 0x4 - core index']
  #allocation1 [shape = 'u32[144,128]{1,0:T(1,128)}', space=vmem, size = 0x12000, scoped, tag = 'internal scratch']
  %s0 = inlined_call_operand.vmem [shape: f32[16,128], index: 0, kind: input, shape index: {}]
  %s1 = inlined_call_operand.hbm [shape: f32[1,128], index: 1, kind: input, shape index: {}]
  %s2 = inlined_call_operand.hbm [shape: f32[1,128], index: 2, kind: input, shape index: {}]
  %s3 = inlined_call_operand.vmem [shape: f32[16,128], index: 3, kind: output, shape index: {}]
  %s4 = sld [smem:[#allocation0]]
  $region30: #{bert_classifier_forward.4} parent=0
    _
  %s6 = ssub.s32 1, %s4
  %s7 = scalar_select 0, %s6, %s4
  $region1: #{bert_classifier_forward.4} parent=0
    #allocation2 [shape = 'u8[512]{0}', space=vmem, size = 0x400, scoped, tag = 'input window, operand 1, single buffered']
    #allocation3 [shape = 's32[1]{0}', space=sflag, size = 0x4, scoped, tag = 'scoped memory for bert_classifier_forward.4']
    #allocation4 [shape = 'u8[512]{0}', space=vmem, size = 0x400, scoped, tag = 'input window, operand 2, single buffered']
    #allocation5 [shape = 's32[1]{0}', space=sflag, size = 0x4, scoped, tag = 'scoped memory for bert_classifier_forward.4']
    %8 = vsyncpa [#allocation3], 0
    %9 = vsyncpa [#allocation5], 0
    // Predicated region
    $region2: #{bert_classifier_forward.4} parent=1 // pred_check
      _
    $region3: #{bert_classifier_forward.4} parent=1 // pred_check_branch
      %11 = sbr.rel (0) target = $region5
    $region4: #{bert_classifier_forward.4} parent=1 // pred_region
      _
    $region5: #{bert_classifier_forward.4} parent=1 // pred_fallthru
      _
    // Predicated region
    $region6: #{bert_classifier_forward.4} parent=1 // pred_check
      _
    $region7: #{bert_classifier_forward.4} parent=1 // pred_check_branch
      %13 = sbr.rel (0) target = $region9
    $region8: #{bert_classifier_forward.4} parent=1 // pred_region
      %s15 = ssub.s32 16, 16
      %16 = vsyncadd [#allocation3], %s15
      %s18 = sshll.u32 [#allocation2], 4
      %s19 = int_to_ptr.vmem [resolvable:$true] %s18
      %21 = dma.hbm_to_vmem [thread:$0]  %s1, 16, %s19, [#allocation3]
    $region9: #{bert_classifier_forward.4} parent=1 // pred_fallthru
      _
    // Predicated region
    $region10: #{bert_classifier_forward.4} parent=1 // pred_check
      _
    $region11: #{bert_classifier_forward.4} parent=1 // pred_check_branch
      %23 = sbr.rel (0) target = $region13
    $region12: #{bert_classifier_forward.4} parent=1 // pred_region
      %s25 = ssub.s32 16, 16
      %26 = vsyncadd [#allocation5], %s25
      %s28 = sshll.u32 [#allocation4], 4
      %s29 = int_to_ptr.vmem [resolvable:$true] %s28
      %31 = dma.hbm_to_vmem [thread:$0]  %s2, 16, %s29, [#allocation5]
    $region13: #{bert_classifier_forward.4} parent=1 // pred_fallthru
      _
    // Predicated region
    $region14: #{bert_classifier_forward.4} parent=1 // pred_check
      _
    $region15: #{bert_classifier_forward.4} parent=1 // pred_check_branch
      %33 = sbr.rel (0) target = $region17
    $region16: #{bert_classifier_forward.4} parent=1 // pred_region
      %34 = dma.done [#allocation3], 16
    $region17: #{bert_classifier_forward.4} parent=1 // pred_fallthru
      _
    // Predicated region
    $region18: #{bert_classifier_forward.4} parent=1 // pred_check
      _
    $region19: #{bert_classifier_forward.4} parent=1 // pred_check_branch
      %36 = sbr.rel (0) target = $region21
    $region20: #{bert_classifier_forward.4} parent=1 // pred_region
      %37 = dma.done [#allocation5], 16
    $region21: #{bert_classifier_forward.4} parent=1 // pred_fallthru
      _
    %v38 = vld [vmem:[%s0] sm:$0xff]
    %v39 = vld [vmem:[%s0 + $0x8] sm:$0xff]
    %v40 = vld [vmem:[#allocation2] sm:$0x1]
    %v41 = vld [vmem:[#allocation4] sm:$0x1]
    %42 = vadd.xlane.f32.xlu0 %v38
    %v43 = vpop.xlane.xlu0 %42
    %44 = vadd.xlane.f32.xlu0 %v39
    %v45 = vpop.xlane.xlu0 %44
    %v46 = vrcp.pop 128.0
    %v47 = vmul.f32 %v43, %v46
    %v48 = vmul.f32 %v45, %v46
    %v49 = vsub.f32 %v38, %v47
    %v50 = vsub.f32 %v39, %v48
    %v51 = vmul.f32 %v49, %v49
    %v52 = vmul.f32 %v50, %v50
    %53 = vadd.xlane.f32.xlu0 %v51
    %v54 = vpop.xlane.xlu0 %53
    %55 = vadd.xlane.f32.xlu0 %v52
    %v56 = vpop.xlane.xlu0 %55
    %v57 = vmul.f32 %v54, %v46
    %v58 = vmul.f32 %v56, %v46
    %v59 = vadd.f32 %v57, 1e-12
    %v60 = vadd.f32 %v58, 1e-12
    %v61 = vrsqrt.pop %v59
    %v62 = vrsqrt.pop %v60
    %v63 = vmul.f32 %v49, %v61
    %v64 = vmul.f32 %v50, %v62
    %v66 = vlaneseq
    %v67 = vshrl.u32 %v66, 7
    %v68 = vsub.s32 0, %v67
    %v69 = vrot.slane %v40, %v68
    %v71 = vmul.f32 %v63, %v69
    %v72 = vmul.f32 %v64, %v69
    %v74 = vlaneseq
    %v75 = vshrl.u32 %v74, 7
    %v76 = vsub.s32 0, %v75
    %v77 = vrot.slane %v41, %v76
    %v79 = vadd.f32 %v71, %v77
    %v80 = vadd.f32 %v72, %v77
    %81 = vst [vmem:[%s3] sm:$0xff] %v79
    %82 = vst [vmem:[%s3 + $0x8] sm:$0xff] %v80
    // Predicated region
    $region22: #{bert_classifier_forward.4} parent=1 // pred_check
      _
    $region23: #{bert_classifier_forward.4} parent=1 // pred_check_branch
      %84 = sbr.rel (0) target = $region25
    $region24: #{bert_classifier_forward.4} parent=1 // pred_region
      _
    $region25: #{bert_classifier_forward.4} parent=1 // pred_fallthru
      _
    // Predicated region
    $region26: #{bert_classifier_forward.4} parent=1 // pred_check
      _
    $region27: #{bert_classifier_forward.4} parent=1 // pred_check_branch
      %86 = sbr.rel (0) target = $region29
    $region28: #{bert_classifier_forward.4} parent=1 // pred_region
      _
    $region29: #{bert_classifier_forward.4} parent=1 // pred_fallthru
      _
    %87 = vsyncpa [#allocation3], 1
    %88 = vsyncpa [#allocation5], 1

// kernel: bert_classifier_forward.7
$region0: #{bert_classifier_forward.7}
  #allocation0 [shape = 'u32[]', space=smem, size = 0x4, offset = 0x4, fixed_abs, tag = 'smem constant byte address 0x4 - core index']
  #allocation1 [shape = 'u32[144,128]{1,0:T(1,128)}', space=vmem, size = 0x12000, scoped, tag = 'internal scratch']
  %s0 = inlined_call_operand.vmem [shape: f32[16,128], index: 0, kind: input, shape index: {}]
  %s1 = inlined_call_operand.vmem [shape: bf16[128,128], index: 1, kind: input, shape index: {}]
  %s2 = inlined_call_operand.vmem [shape: f32[1,128], index: 2, kind: input, shape index: {}]
  %s3 = inlined_call_operand.vmem [shape: bf16[128,4], index: 3, kind: input, shape index: {}]
  %s4 = inlined_call_operand.vmem [shape: f32[1,4], index: 4, kind: input, shape index: {}]
  %s5 = inlined_call_operand.hbm [shape: f32[2,4], index: 5, kind: output, shape index: {}]
  %s6 = sld [smem:[#allocation0]]
  $region30: #{bert_classifier_forward.7} parent=0
    _
  %s8 = ssub.s32 1, %s6
  %s9 = scalar_select 0, %s8, %s6
  $region1: #{bert_classifier_forward.7} parent=0
    #allocation2 [shape = 'u8[1024]{0}', space=vmem, size = 0x400, scoped, tag = 'output window, operand 0, single buffered']
    #allocation3 [shape = 's32[1]{0}', space=sflag, size = 0x4, scoped, tag = 'scoped memory for bert_classifier_forward.7']
    %10 = vsyncpa [#allocation3], 0
    // Predicated region
    $region2: #{bert_classifier_forward.7} parent=1 // pred_check
      _
    $region3: #{bert_classifier_forward.7} parent=1 // pred_check_branch
      %12 = sbr.rel (0) target = $region5
    $region4: #{bert_classifier_forward.7} parent=1 // pred_region
      _
    $region5: #{bert_classifier_forward.7} parent=1 // pred_fallthru
      _
    // Predicated region
    $region6: #{bert_classifier_forward.7} parent=1 // pred_check
      _
    $region7: #{bert_classifier_forward.7} parent=1 // pred_check_branch
      %14 = sbr.rel (0) target = $region9
    $region8: #{bert_classifier_forward.7} parent=1 // pred_region
      _
    $region9: #{bert_classifier_forward.7} parent=1 // pred_fallthru
      _
    // Predicated region
    $region10: #{bert_classifier_forward.7} parent=1 // pred_check
      _
    $region11: #{bert_classifier_forward.7} parent=1 // pred_check_branch
      %16 = sbr.rel (0) target = $region13
    $region12: #{bert_classifier_forward.7} parent=1 // pred_region
      _
    $region13: #{bert_classifier_forward.7} parent=1 // pred_fallthru
      _
    // Predicated region
    $region14: #{bert_classifier_forward.7} parent=1 // pred_check
      _
    $region15: #{bert_classifier_forward.7} parent=1 // pred_check_branch
      %18 = sbr.rel (0) target = $region17
    $region16: #{bert_classifier_forward.7} parent=1 // pred_region
      _
    $region17: #{bert_classifier_forward.7} parent=1 // pred_fallthru
      _
    // Predicated region
    $region18: #{bert_classifier_forward.7} parent=1 // pred_check
      _
    $region19: #{bert_classifier_forward.7} parent=1 // pred_check_branch
      %20 = sbr.rel (0) target = $region21
    $region20: #{bert_classifier_forward.7} parent=1 // pred_region
      _
    $region21: #{bert_classifier_forward.7} parent=1 // pred_fallthru
      _
    %v22 = vld [vmem:[%s0] sm:$0x1]
    %v23 = vpack.c.bf16 %v22, %v22
    %v24 = vld [vmem:[%s1] sm:$0xf]
    %v25 = vld [vmem:[%s1 + $0x4] sm:$0xf]
    %v26 = vld [vmem:[%s1 + $0x8] sm:$0xf]
    %v27 = vld [vmem:[%s1 + $0xc] sm:$0xf]
    %v28 = vld [vmem:[%s1 + $0x10] sm:$0xf]
    %v29 = vld [vmem:[%s1 + $0x14] sm:$0xf]
    %v30 = vld [vmem:[%s1 + $0x18] sm:$0xf]
    %v31 = vld [vmem:[%s1 + $0x1c] sm:$0xf]
    %v32 = vld [vmem:[%s1 + $0x20] sm:$0xf]
    %v33 = vld [vmem:[%s1 + $0x24] sm:$0xf]
    %v34 = vld [vmem:[%s1 + $0x28] sm:$0xf]
    %v35 = vld [vmem:[%s1 + $0x2c] sm:$0xf]
    %v36 = vld [vmem:[%s1 + $0x30] sm:$0xf]
    %v37 = vld [vmem:[%s1 + $0x34] sm:$0xf]
    %v38 = vld [vmem:[%s1 + $0x38] sm:$0xf]
    %v39 = vld [vmem:[%s1 + $0x3c] sm:$0xf]
    %v40 = vld [vmem:[%s2] sm:$0x1]
    %v57 = vunpack.c.l.b16 %v24
    %v58 = vunpack.c.l.b16 %v25
    %v59 = vunpack.c.l.b16 %v26
    %v60 = vunpack.c.l.b16 %v27
    %v61 = vunpack.c.l.b16 %v28
    %v62 = vunpack.c.l.b16 %v29
    %v63 = vunpack.c.l.b16 %v30
    %v64 = vunpack.c.l.b16 %v31
    %v65 = vunpack.c.l.b16 %v32
    %v66 = vunpack.c.l.b16 %v33
    %v67 = vunpack.c.l.b16 %v34
    %v68 = vunpack.c.l.b16 %v35
    %v69 = vunpack.c.l.b16 %v36
    %v70 = vunpack.c.l.b16 %v37
    %v71 = vunpack.c.l.b16 %v38
    %v72 = vunpack.c.l.b16 %v39
    %v73 = vpack.c.b16 %v58, %v57
    %v74 = vpack.c.b16 %v60, %v59
    %v75 = vpack.c.b16 %v62, %v61
    %v76 = vpack.c.b16 %v64, %v63
    %v77 = vpack.c.b16 %v66, %v65
    %v78 = vpack.c.b16 %v68, %v67
    %v79 = vpack.c.b16 %v70, %v69
    %v80 = vpack.c.b16 %v72, %v71
    %89 = vmatprep.subr.bf16.mxu0 0
    %90 = vmatpush1.bf16.msra.mxu0 %v73
    %91 = vmatprep.subr.bf16.mxu0 0
    %92 = vmatpush1.bf16.msra.mxu0 %v74
    %93 = vmatprep.subr.bf16.mxu0 0
    %94 = vmatpush1.bf16.msra.mxu0 %v75
    %95 = vmatprep.subr.bf16.mxu0 0
    %96 = vmatpush1.bf16.msra.mxu0 %v76
    %97 = vmatprep.subr.bf16.mxu0 0
    %98 = vmatpush1.bf16.msra.mxu0 %v77
    %99 = vmatprep.subr.bf16.mxu0 0
    %100 = vmatpush1.bf16.msra.mxu0 %v78
    %101 = vmatprep.subr.bf16.mxu0 0
    %102 = vmatpush1.bf16.msra.mxu0 %v79
    %103 = vmatprep.subr.bf16.mxu0 0
    %104 = vmatpush1.bf16.msra.mxu0 %v80
    %105 = vmatprep.subr.bf16.mxu0 0
    %106 = vmatpush1.bf16.msra.mxu0 0
    %107 = vmatprep.subr.bf16.mxu0 0
    %108 = vmatpush1.bf16.msra.mxu0 0
    %109 = vmatprep.subr.bf16.mxu0 0
    %110 = vmatpush1.bf16.msra.mxu0 0
    %111 = vmatprep.subr.bf16.mxu0 0
    %112 = vmatpush1.bf16.msra.mxu0 0
    %113 = vmatprep.subr.bf16.mxu0 0
    %114 = vmatpush1.bf16.msra.mxu0 0
    %115 = vmatprep.subr.bf16.mxu0 0
    %116 = vmatpush1.bf16.msra.mxu0 0
    %117 = vmatprep.subr.bf16.mxu0 0
    %118 = vmatpush1.bf16.msra.mxu0 0
    %119 = vmatprep.subr.bf16.mxu0 0
    %120 = vmatpush1.bf16.msra.mxu0 0
    %121 = vmatprep.mubr.bf16.mxu0 0
    %122 = vmatmul.mubr.bf16.gmra.mrb[0].mxu0 %v23
    %v123 = vpop.f32.mrb[0].mxu0
    %v124 = vadd.f32 %v40, %v123
    %v125 = vpop.f32.mrb[0].mxu0
    %v126 = vpop.f32.mrb[0].mxu0
    %v127 = vpop.f32.mrb[0].mxu0
    %128 = vdwg.mxu0
    %v129 = vtanh.pop %v124
    %v130 = vpack.c.bf16 %v129, %v129
    %v131 = vld [vmem:[%s3] sm:$0xf]
    %v132 = vld [vmem:[%s3 + $0x4] sm:$0xf]
    %v133 = vld [vmem:[%s3 + $0x8] sm:$0xf]
    %v134 = vld [vmem:[%s3 + $0xc] sm:$0xf]
    %v135 = vld [vmem:[%s3 + $0x10] sm:$0xf]
    %v136 = vld [vmem:[%s3 + $0x14] sm:$0xf]
    %v137 = vld [vmem:[%s3 + $0x18] sm:$0xf]
    %v138 = vld [vmem:[%s3 + $0x1c] sm:$0xf]
    %v139 = vld [vmem:[%s3 + $0x20] sm:$0xf]
    %v140 = vld [vmem:[%s3 + $0x24] sm:$0xf]
    %v141 = vld [vmem:[%s3 + $0x28] sm:$0xf]
    %v142 = vld [vmem:[%s3 + $0x2c] sm:$0xf]
    %v143 = vld [vmem:[%s3 + $0x30] sm:$0xf]
    %v144 = vld [vmem:[%s3 + $0x34] sm:$0xf]
    %v145 = vld [vmem:[%s3 + $0x38] sm:$0xf]
    %v146 = vld [vmem:[%s3 + $0x3c] sm:$0xf]
    %v147 = vld [vmem:[%s4] sm:$0x1]
    %v164 = vunpack.c.l.b16 %v131
    %v165 = vunpack.c.l.b16 %v132
    %v166 = vunpack.c.l.b16 %v133
    %v167 = vunpack.c.l.b16 %v134
    %v168 = vunpack.c.l.b16 %v135
    %v169 = vunpack.c.l.b16 %v136
    %v170 = vunpack.c.l.b16 %v137
    %v171 = vunpack.c.l.b16 %v138
    %v172 = vunpack.c.l.b16 %v139
    %v173 = vunpack.c.l.b16 %v140
    %v174 = vunpack.c.l.b16 %v141
    %v175 = vunpack.c.l.b16 %v142
    %v176 = vunpack.c.l.b16 %v143
    %v177 = vunpack.c.l.b16 %v144
    %v178 = vunpack.c.l.b16 %v145
    %v179 = vunpack.c.l.b16 %v146
    %v180 = vpack.c.b16 %v165, %v164
    %v181 = vpack.c.b16 %v167, %v166
    %v182 = vpack.c.b16 %v169, %v168
    %v183 = vpack.c.b16 %v171, %v170
    %v184 = vpack.c.b16 %v173, %v172
    %v185 = vpack.c.b16 %v175, %v174
    %v186 = vpack.c.b16 %v177, %v176
    %v187 = vpack.c.b16 %v179, %v178
    %196 = vmatprep.subr.bf16.mxu0 0
    %197 = vmatpush1.bf16.msra.mxu0 %v180
    %198 = vmatprep.subr.bf16.mxu0 0
    %199 = vmatpush1.bf16.msra.mxu0 %v181
    %200 = vmatprep.subr.bf16.mxu0 0
    %201 = vmatpush1.bf16.msra.mxu0 %v182
    %202 = vmatprep.subr.bf16.mxu0 0
    %203 = vmatpush1.bf16.msra.mxu0 %v183
    %204 = vmatprep.subr.bf16.mxu0 0
    %205 = vmatpush1.bf16.msra.mxu0 %v184
    %206 = vmatprep.subr.bf16.mxu0 0
    %207 = vmatpush1.bf16.msra.mxu0 %v185
    %208 = vmatprep.subr.bf16.mxu0 0
    %209 = vmatpush1.bf16.msra.mxu0 %v186
    %210 = vmatprep.subr.bf16.mxu0 0
    %211 = vmatpush1.bf16.msra.mxu0 %v187
    %212 = vmatprep.subr.bf16.mxu0 0
    %213 = vmatpush1.bf16.msra.mxu0 0
    %214 = vmatprep.subr.bf16.mxu0 0
    %215 = vmatpush1.bf16.msra.mxu0 0
    %216 = vmatprep.subr.bf16.mxu0 0
    %217 = vmatpush1.bf16.msra.mxu0 0
    %218 = vmatprep.subr.bf16.mxu0 0
    %219 = vmatpush1.bf16.msra.mxu0 0
    %220 = vmatprep.subr.bf16.mxu0 0
    %221 = vmatpush1.bf16.msra.mxu0 0
    %222 = vmatprep.subr.bf16.mxu0 0
    %223 = vmatpush1.bf16.msra.mxu0 0
    %224 = vmatprep.subr.bf16.mxu0 0
    %225 = vmatpush1.bf16.msra.mxu0 0
    %226 = vmatprep.subr.bf16.mxu0 0
    %227 = vmatpush1.bf16.msra.mxu0 0
    %228 = vmatprep.mubr.bf16.mxu0 0
    %229 = vmatmul.mubr.bf16.gmra.mrb[0].mxu0 %v130
    %v230 = vpop.f32.mrb[0].mxu0
    %v231 = vadd.f32 %v147, %v230
    %v232 = vpop.f32.mrb[0].mxu0
    %v233 = vpop.f32.mrb[0].mxu0
    %v234 = vpop.f32.mrb[0].mxu0
    %235 = vdwg.mxu0
    %vm236 = vcmask 24576
    %237 = vst.msk [vmem:[#allocation2] sm:$0x1] %vm236, %v231
    %v238 = vld [vmem:[%s0 + $0x8] sm:$0x1]
    %v239 = vpack.c.bf16 %v238, %v238
    %v240 = vld [vmem:[%s1] sm:$0xf]
    %v241 = vld [vmem:[%s1 + $0x4] sm:$0xf]
    %v242 = vld [vmem:[%s1 + $0x8] sm:$0xf]
    %v243 = vld [vmem:[%s1 + $0xc] sm:$0xf]
    %v244 = vld [vmem:[%s1 + $0x10] sm:$0xf]
    %v245 = vld [vmem:[%s1 + $0x14] sm:$0xf]
    %v246 = vld [vmem:[%s1 + $0x18] sm:$0xf]
    %v247 = vld [vmem:[%s1 + $0x1c] sm:$0xf]
    %v248 = vld [vmem:[%s1 + $0x20] sm:$0xf]
    %v249 = vld [vmem:[%s1 + $0x24] sm:$0xf]
    %v250 = vld [vmem:[%s1 + $0x28] sm:$0xf]
    %v251 = vld [vmem:[%s1 + $0x2c] sm:$0xf]
    %v252 = vld [vmem:[%s1 + $0x30] sm:$0xf]
    %v253 = vld [vmem:[%s1 + $0x34] sm:$0xf]
    %v254 = vld [vmem:[%s1 + $0x38] sm:$0xf]
    %v255 = vld [vmem:[%s1 + $0x3c] sm:$0xf]
    %v256 = vld [vmem:[%s2] sm:$0x1]
    %v273 = vunpack.c.l.b16 %v240
    %v274 = vunpack.c.l.b16 %v241
    %v275 = vunpack.c.l.b16 %v242
    %v276 = vunpack.c.l.b16 %v243
    %v277 = vunpack.c.l.b16 %v244
    %v278 = vunpack.c.l.b16 %v245
    %v279 = vunpack.c.l.b16 %v246
    %v280 = vunpack.c.l.b16 %v247
    %v281 = vunpack.c.l.b16 %v248
    %v282 = vunpack.c.l.b16 %v249
    %v283 = vunpack.c.l.b16 %v250
    %v284 = vunpack.c.l.b16 %v251
    %v285 = vunpack.c.l.b16 %v252
    %v286 = vunpack.c.l.b16 %v253
    %v287 = vunpack.c.l.b16 %v254
    %v288 = vunpack.c.l.b16 %v255
    %v289 = vpack.c.b16 %v274, %v273
    %v290 = vpack.c.b16 %v276, %v275
    %v291 = vpack.c.b16 %v278, %v277
    %v292 = vpack.c.b16 %v280, %v279
    %v293 = vpack.c.b16 %v282, %v281
    %v294 = vpack.c.b16 %v284, %v283
    %v295 = vpack.c.b16 %v286, %v285
    %v296 = vpack.c.b16 %v288, %v287
    %305 = vmatprep.subr.bf16.mxu0 0
    %306 = vmatpush1.bf16.msra.mxu0 %v289
    %307 = vmatprep.subr.bf16.mxu0 0
    %308 = vmatpush1.bf16.msra.mxu0 %v290
    %309 = vmatprep.subr.bf16.mxu0 0
    %310 = vmatpush1.bf16.msra.mxu0 %v291
    %311 = vmatprep.subr.bf16.mxu0 0
    %312 = vmatpush1.bf16.msra.mxu0 %v292
    %313 = vmatprep.subr.bf16.mxu0 0
    %314 = vmatpush1.bf16.msra.mxu0 %v293
    %315 = vmatprep.subr.bf16.mxu0 0
    %316 = vmatpush1.bf16.msra.mxu0 %v294
    %317 = vmatprep.subr.bf16.mxu0 0
    %318 = vmatpush1.bf16.msra.mxu0 %v295
    %319 = vmatprep.subr.bf16.mxu0 0
    %320 = vmatpush1.bf16.msra.mxu0 %v296
    %321 = vmatprep.subr.bf16.mxu0 0
    %322 = vmatpush1.bf16.msra.mxu0 0
    %323 = vmatprep.subr.bf16.mxu0 0
    %324 = vmatpush1.bf16.msra.mxu0 0
    %325 = vmatprep.subr.bf16.mxu0 0
    %326 = vmatpush1.bf16.msra.mxu0 0
    %327 = vmatprep.subr.bf16.mxu0 0
    %328 = vmatpush1.bf16.msra.mxu0 0
    %329 = vmatprep.subr.bf16.mxu0 0
    %330 = vmatpush1.bf16.msra.mxu0 0
    %331 = vmatprep.subr.bf16.mxu0 0
    %332 = vmatpush1.bf16.msra.mxu0 0
    %333 = vmatprep.subr.bf16.mxu0 0
    %334 = vmatpush1.bf16.msra.mxu0 0
    %335 = vmatprep.subr.bf16.mxu0 0
    %336 = vmatpush1.bf16.msra.mxu0 0
    %337 = vmatprep.mubr.bf16.mxu0 0
    %338 = vmatmul.mubr.bf16.gmra.mrb[0].mxu0 %v239
    %v339 = vpop.f32.mrb[0].mxu0
    %v340 = vadd.f32 %v256, %v339
    %v341 = vpop.f32.mrb[0].mxu0
    %v342 = vpop.f32.mrb[0].mxu0
    %v343 = vpop.f32.mrb[0].mxu0
    %344 = vdwg.mxu0
    %v345 = vtanh.pop %v340
    %v346 = vpack.c.bf16 %v345, %v345
    %v347 = vld [vmem:[%s3] sm:$0xf]
    %v348 = vld [vmem:[%s3 + $0x4] sm:$0xf]
    %v349 = vld [vmem:[%s3 + $0x8] sm:$0xf]
    %v350 = vld [vmem:[%s3 + $0xc] sm:$0xf]
    %v351 = vld [vmem:[%s3 + $0x10] sm:$0xf]
    %v352 = vld [vmem:[%s3 + $0x14] sm:$0xf]
    %v353 = vld [vmem:[%s3 + $0x18] sm:$0xf]
    %v354 = vld [vmem:[%s3 + $0x1c] sm:$0xf]
    %v355 = vld [vmem:[%s3 + $0x20] sm:$0xf]
    %v356 = vld [vmem:[%s3 + $0x24] sm:$0xf]
    %v357 = vld [vmem:[%s3 + $0x28] sm:$0xf]
    %v358 = vld [vmem:[%s3 + $0x2c] sm:$0xf]
    %v359 = vld [vmem:[%s3 + $0x30] sm:$0xf]
    %v360 = vld [vmem:[%s3 + $0x34] sm:$0xf]
    %v361 = vld [vmem:[%s3 + $0x38] sm:$0xf]
    %v362 = vld [vmem:[%s3 + $0x3c] sm:$0xf]
    %v363 = vld [vmem:[%s4] sm:$0x1]
    %v380 = vunpack.c.l.b16 %v347
    %v381 = vunpack.c.l.b16 %v348
    %v382 = vunpack.c.l.b16 %v349
    %v383 = vunpack.c.l.b16 %v350
    %v384 = vunpack.c.l.b16 %v351
    %v385 = vunpack.c.l.b16 %v352
    %v386 = vunpack.c.l.b16 %v353
    %v387 = vunpack.c.l.b16 %v354
    %v388 = vunpack.c.l.b16 %v355
    %v389 = vunpack.c.l.b16 %v356
    %v390 = vunpack.c.l.b16 %v357
    %v391 = vunpack.c.l.b16 %v358
    %v392 = vunpack.c.l.b16 %v359
    %v393 = vunpack.c.l.b16 %v360
    %v394 = vunpack.c.l.b16 %v361
    %v395 = vunpack.c.l.b16 %v362
    %v396 = vpack.c.b16 %v381, %v380
    %v397 = vpack.c.b16 %v383, %v382
    %v398 = vpack.c.b16 %v385, %v384
    %v399 = vpack.c.b16 %v387, %v386
    %v400 = vpack.c.b16 %v389, %v388
    %v401 = vpack.c.b16 %v391, %v390
    %v402 = vpack.c.b16 %v393, %v392
    %v403 = vpack.c.b16 %v395, %v394
    %412 = vmatprep.subr.bf16.mxu0 0
    %413 = vmatpush1.bf16.msra.mxu0 %v396
    %414 = vmatprep.subr.bf16.mxu0 0
    %415 = vmatpush1.bf16.msra.mxu0 %v397
    %416 = vmatprep.subr.bf16.mxu0 0
    %417 = vmatpush1.bf16.msra.mxu0 %v398
    %418 = vmatprep.subr.bf16.mxu0 0
    %419 = vmatpush1.bf16.msra.mxu0 %v399
    %420 = vmatprep.subr.bf16.mxu0 0
    %421 = vmatpush1.bf16.msra.mxu0 %v400
    %422 = vmatprep.subr.bf16.mxu0 0
    %423 = vmatpush1.bf16.msra.mxu0 %v401
    %424 = vmatprep.subr.bf16.mxu0 0
    %425 = vmatpush1.bf16.msra.mxu0 %v402
    %426 = vmatprep.subr.bf16.mxu0 0
    %427 = vmatpush1.bf16.msra.mxu0 %v403
    %428 = vmatprep.subr.bf16.mxu0 0
    %429 = vmatpush1.bf16.msra.mxu0 0
    %430 = vmatprep.subr.bf16.mxu0 0
    %431 = vmatpush1.bf16.msra.mxu0 0
    %432 = vmatprep.subr.bf16.mxu0 0
    %433 = vmatpush1.bf16.msra.mxu0 0
    %434 = vmatprep.subr.bf16.mxu0 0
    %435 = vmatpush1.bf16.msra.mxu0 0
    %436 = vmatprep.subr.bf16.mxu0 0
    %437 = vmatpush1.bf16.msra.mxu0 0
    %438 = vmatprep.subr.bf16.mxu0 0
    %439 = vmatpush1.bf16.msra.mxu0 0
    %440 = vmatprep.subr.bf16.mxu0 0
    %441 = vmatpush1.bf16.msra.mxu0 0
    %442 = vmatprep.subr.bf16.mxu0 0
    %443 = vmatpush1.bf16.msra.mxu0 0
    %444 = vmatprep.mubr.bf16.mxu0 0
    %445 = vmatmul.mubr.bf16.gmra.mrb[0].mxu0 %v346
    %v446 = vpop.f32.mrb[0].mxu0
    %v447 = vadd.f32 %v363, %v446
    %v448 = vpop.f32.mrb[0].mxu0
    %v449 = vpop.f32.mrb[0].mxu0
    %v450 = vpop.f32.mrb[0].mxu0
    %451 = vdwg.mxu0
    %452 = vst.msk [vmem:[#allocation2 + $0x1] sm:$0x1] %vm236, %v447
    // Predicated region
    $region22: #{bert_classifier_forward.7} parent=1 // pred_check
      _
    $region23: #{bert_classifier_forward.7} parent=1 // pred_check_branch
      %454 = sbr.rel (0) target = $region25
    $region24: #{bert_classifier_forward.7} parent=1 // pred_region
      %s456 = ssub.s32 32, 32
      %457 = vsyncadd [#allocation3], %s456
      %s459 = sshll.u32 [#allocation2], 4
      %s460 = int_to_ptr.vmem [resolvable:$true] %s459
      %462 = dma.vmem_to_hbm [thread:$0]  %s460, 32, %s5, [#allocation3]
    $region25: #{bert_classifier_forward.7} parent=1 // pred_fallthru
      _
    // Predicated region
    $region26: #{bert_classifier_forward.7} parent=1 // pred_check
      _
    $region27: #{bert_classifier_forward.7} parent=1 // pred_check_branch
      %464 = sbr.rel (0) target = $region29
    $region28: #{bert_classifier_forward.7} parent=1 // pred_region
      %465 = dma.done [#allocation3], 32
    $region29: #{bert_classifier_forward.7} parent=1 // pred_fallthru
      _
    %466 = vsyncpa [#allocation3], 1

// kernel: bert_classifier_forward.6
$region0: #{bert_classifier_forward.6}
  #allocation0 [shape = 'u32[]', space=smem, size = 0x4, offset = 0x4, fixed_abs, tag = 'smem constant byte address 0x4 - core index']
  #allocation1 [shape = 'u32[144,128]{1,0:T(1,128)}', space=vmem, size = 0x12000, scoped, tag = 'internal scratch']
  #allocation2 [shape = 'f32[16,128]{1,0:T(8,128)}', space=vmem, size = 0x2000, scoped, tag = 'scratch operand']
  %s0 = inlined_call_operand.vmem [shape: f32[16,128], index: 0, kind: input, shape index: {}]
  %s1 = inlined_call_operand.vmem [shape: f32[2,8], index: 1, kind: input, shape index: {}]
  %s2 = inlined_call_operand.vmem [shape: bf16[128,384], index: 2, kind: input, shape index: {}]
  %s3 = inlined_call_operand.vmem [shape: f32[1,384], index: 3, kind: input, shape index: {}]
  %s4 = inlined_call_operand.vmem [shape: bf16[128,128], index: 4, kind: input, shape index: {}]
  %s5 = inlined_call_operand.vmem [shape: f32[1,128], index: 5, kind: input, shape index: {}]
  %s6 = inlined_call_operand.vmem [shape: f32[1,128], index: 6, kind: input, shape index: {}]
  %s7 = inlined_call_operand.vmem [shape: f32[1,128], index: 7, kind: input, shape index: {}]
  %s8 = inlined_call_operand.vmem [shape: bf16[128,512], index: 8, kind: input, shape index: {}]
  %s9 = inlined_call_operand.vmem [shape: f32[1,512], index: 9, kind: input, shape index: {}]
  %s10 = inlined_call_operand.vmem [shape: bf16[512,128], index: 10, kind: input, shape index: {}]
  %s11 = inlined_call_operand.vmem [shape: f32[1,128], index: 11, kind: input, shape index: {}]
  %s12 = inlined_call_operand.vmem [shape: f32[1,128], index: 12, kind: input, shape index: {}]
  %s13 = inlined_call_operand.vmem [shape: f32[1,128], index: 13, kind: input, shape index: {}]
  %s14 = inlined_call_operand.vmem [shape: f32[16,128], index: 14, kind: output, shape index: {}]
  %s15 = sld [smem:[#allocation0]]
  $region66: #{bert_classifier_forward.6} parent=0
    _
  %s17 = ssub.s32 1, %s15
  %s18 = scalar_select 0, %s17, %s15
  // Predicated region
  $region2: #{bert_classifier_forward.6} parent=0 // pred_check
    _
  $region3: #{bert_classifier_forward.6} parent=0 // pred_check_branch
    %20 = sbr.rel (0) target = $region5
  $region4: #{bert_classifier_forward.6} parent=0 // pred_region
    _
  $region5: #{bert_classifier_forward.6} parent=0 // pred_fallthru
    _
  // Predicated region
  $region6: #{bert_classifier_forward.6} parent=0 // pred_check
    _
  $region7: #{bert_classifier_forward.6} parent=0 // pred_check_branch
    %22 = sbr.rel (0) target = $region9
  $region8: #{bert_classifier_forward.6} parent=0 // pred_region
    _
  $region9: #{bert_classifier_forward.6} parent=0 // pred_fallthru
    _
  // Predicated region
  $region10: #{bert_classifier_forward.6} parent=0 // pred_check
    _
  $region11: #{bert_classifier_forward.6} parent=0 // pred_check_branch
    %24 = sbr.rel (0) target = $region13
  $region12: #{bert_classifier_forward.6} parent=0 // pred_region
    _
  $region13: #{bert_classifier_forward.6} parent=0 // pred_fallthru
    _
  // Predicated region
  $region14: #{bert_classifier_forward.6} parent=0 // pred_check
    _
  $region15: #{bert_classifier_forward.6} parent=0 // pred_check_branch
    %26 = sbr.rel (0) target = $region17
  $region16: #{bert_classifier_forward.6} parent=0 // pred_region
    _
  $region17: #{bert_classifier_forward.6} parent=0 // pred_fallthru
    _
  // Predicated region
  $region18: #{bert_classifier_forward.6} parent=0 // pred_check
    _
  $region19: #{bert_classifier_forward.6} parent=0 // pred_check_branch
    %28 = sbr.rel (0) target = $region21
  $region20: #{bert_classifier_forward.6} parent=0 // pred_region
    _
  $region21: #{bert_classifier_forward.6} parent=0 // pred_fallthru
    _
  // Predicated region
  $region22: #{bert_classifier_forward.6} parent=0 // pred_check
    _
  $region23: #{bert_classifier_forward.6} parent=0 // pred_check_branch
    %30 = sbr.rel (0) target = $region25
  $region24: #{bert_classifier_forward.6} parent=0 // pred_region
    _
  $region25: #{bert_classifier_forward.6} parent=0 // pred_fallthru
    _
  // Predicated region
  $region26: #{bert_classifier_forward.6} parent=0 // pred_check
    _
  $region27: #{bert_classifier_forward.6} parent=0 // pred_check_branch
    %32 = sbr.rel (0) target = $region29
  $region28: #{bert_classifier_forward.6} parent=0 // pred_region
    _
  $region29: #{bert_classifier_forward.6} parent=0 // pred_fallthru
    _
  // Predicated region
  $region30: #{bert_classifier_forward.6} parent=0 // pred_check
    _
  $region31: #{bert_classifier_forward.6} parent=0 // pred_check_branch
    %34 = sbr.rel (0) target = $region33
  $region32: #{bert_classifier_forward.6} parent=0 // pred_region
    _
  $region33: #{bert_classifier_forward.6} parent=0 // pred_fallthru
    _
  // Predicated region
  $region34: #{bert_classifier_forward.6} parent=0 // pred_check
    _
  $region35: #{bert_classifier_forward.6} parent=0 // pred_check_branch
    %36 = sbr.rel (0) target = $region37
  $region36: #{bert_classifier_forward.6} parent=0 // pred_region
    _
  $region37: #{bert_classifier_forward.6} parent=0 // pred_fallthru
    _
  // Predicated region
  $region38: #{bert_classifier_forward.6} parent=0 // pred_check
    _
  $region39: #{bert_classifier_forward.6} parent=0 // pred_check_branch
    %38 = sbr.rel (0) target = $region41
  $region40: #{bert_classifier_forward.6} parent=0 // pred_region
    _
  $region41: #{bert_classifier_forward.6} parent=0 // pred_fallthru
    _
  // Predicated region
  $region42: #{bert_classifier_forward.6} parent=0 // pred_check
    _
  $region43: #{bert_classifier_forward.6} parent=0 // pred_check_branch
    %40 = sbr.rel (0) target = $region45
  $region44: #{bert_classifier_forward.6} parent=0 // pred_region
    _
  $region45: #{bert_classifier_forward.6} parent=0 // pred_fallthru
    _
  // Predicated region
  $region46: #{bert_classifier_forward.6} parent=0 // pred_check
    _
  $region47: #{bert_classifier_forward.6} parent=0 // pred_check_branch
    %42 = sbr.rel (0) target = $region49
  $region48: #{bert_classifier_forward.6} parent=0 // pred_region
    _
  $region49: #{bert_classifier_forward.6} parent=0 // pred_fallthru
    _
  // Predicated region
  $region50: #{bert_classifier_forward.6} parent=0 // pred_check
    _
  $region51: #{bert_classifier_forward.6} parent=0 // pred_check_branch
    %44 = sbr.rel (0) target = $region53
  $region52: #{bert_classifier_forward.6} parent=0 // pred_region
    _
  $region53: #{bert_classifier_forward.6} parent=0 // pred_fallthru
    _
  // Predicated region
  $region54: #{bert_classifier_forward.6} parent=0 // pred_check
    _
  $region55: #{bert_classifier_forward.6} parent=0 // pred_check_branch
    %46 = sbr.rel (0) target = $region57
  $region56: #{bert_classifier_forward.6} parent=0 // pred_region
    _
  $region57: #{bert_classifier_forward.6} parent=0 // pred_fallthru
    _
  %v48 = vld [vmem:[%s0] sm:$0xff]
  %v49 = vld [vmem:[%s0 + $0x8] sm:$0xff]
  %v50 = vld [vmem:[%s1] sm:$0x3]
  %v51 = vpack.c.bf16 %v49, %v48
  %v52 = vld [vmem:[%s2] sm:$0xff]
  %v53 = vld [vmem:[%s2 + $0x8] sm:$0xf]
  %v54 = vld [vmem:[%s2 + $0xc] sm:$0xff]
  %v55 = vld [vmem:[%s2 + $0x14] sm:$0xf]
  %v56 = vld [vmem:[%s2 + $0x18] sm:$0xff]
  %v57 = vld [vmem:[%s2 + $0x20] sm:$0xf]
  %v58 = vld [vmem:[%s2 + $0x24] sm:$0xff]
  %v59 = vld [vmem:[%s2 + $0x2c] sm:$0xf]
  %v60 = vld [vmem:[%s2 + $0x30] sm:$0xff]
  %v61 = vld [vmem:[%s2 + $0x38] sm:$0xf]
  %v62 = vld [vmem:[%s2 + $0x3c] sm:$0xff]
  %v63 = vld [vmem:[%s2 + $0x44] sm:$0xf]
  %v64 = vld [vmem:[%s2 + $0x48] sm:$0xff]
  %v65 = vld [vmem:[%s2 + $0x50] sm:$0xf]
  %v66 = vld [vmem:[%s2 + $0x54] sm:$0xff]
  %v67 = vld [vmem:[%s2 + $0x5c] sm:$0xf]
  %v68 = vld [vmem:[%s2 + $0x60] sm:$0xff]
  %v69 = vld [vmem:[%s2 + $0x68] sm:$0xf]
  %v70 = vld [vmem:[%s2 + $0x6c] sm:$0xff]
  %v71 = vld [vmem:[%s2 + $0x74] sm:$0xf]
  %v72 = vld [vmem:[%s2 + $0x78] sm:$0xff]
  %v73 = vld [vmem:[%s2 + $0x80] sm:$0xf]
  %v74 = vld [vmem:[%s2 + $0x84] sm:$0xff]
  %v75 = vld [vmem:[%s2 + $0x8c] sm:$0xf]
  %v76 = vld [vmem:[%s2 + $0x90] sm:$0xff]
  %v77 = vld [vmem:[%s2 + $0x98] sm:$0xf]
  %v78 = vld [vmem:[%s2 + $0x9c] sm:$0xff]
  %v79 = vld [vmem:[%s2 + $0xa4] sm:$0xf]
  %v80 = vld [vmem:[%s2 + $0xa8] sm:$0xff]
  %v81 = vld [vmem:[%s2 + $0xb0] sm:$0xf]
  %v82 = vld [vmem:[%s2 + $0xb4] sm:$0xff]
  %v83 = vld [vmem:[%s2 + $0xbc] sm:$0xf]
  %v84 = vld [vmem:[%s3] sm:$0x7]
  %v86 = vlaneseq
  %v87 = vshrl.u32 %v86, 7
  %v88 = vsub.s32 0, %v87
  %v89 = vrot.slane %v84, %v88
  %v90 = vlaneseq
  %v91 = vshrl.u32 %v90, 7
  %v92 = vsub.s32 1, %v91
  %v93 = vrot.slane %v84, %v92
  %v94 = vlaneseq
  %v95 = vshrl.u32 %v94, 7
  %v96 = vsub.s32 2, %v95
  %v97 = vrot.slane %v84, %v96
  %v133 = vunpack.c.l.b16 %v52
  %v134 = vunpack.c.h.b16 %v52
  %v135 = vunpack.c.l.b16 %v53
  %v136 = vunpack.c.l.b16 %v54
  %v137 = vunpack.c.h.b16 %v54
  %v138 = vunpack.c.l.b16 %v55
  %v139 = vunpack.c.l.b16 %v56
  %v140 = vunpack.c.h.b16 %v56
  %v141 = vunpack.c.l.b16 %v57
  %v142 = vunpack.c.l.b16 %v58
  %v143 = vunpack.c.h.b16 %v58
  %v144 = vunpack.c.l.b16 %v59
  %v145 = vunpack.c.l.b16 %v60
  %v146 = vunpack.c.h.b16 %v60
  %v147 = vunpack.c.l.b16 %v61
  %v148 = vunpack.c.l.b16 %v62
  %v149 = vunpack.c.h.b16 %v62
  %v150 = vunpack.c.l.b16 %v63
  %v151 = vunpack.c.l.b16 %v64
  %v152 = vunpack.c.h.b16 %v64
  %v153 = vunpack.c.l.b16 %v65
  %v154 = vunpack.c.l.b16 %v66
  %v155 = vunpack.c.h.b16 %v66
  %v156 = vunpack.c.l.b16 %v67
  %v157 = vunpack.c.l.b16 %v68
  %v158 = vunpack.c.h.b16 %v68
  %v159 = vunpack.c.l.b16 %v69
  %v160 = vunpack.c.l.b16 %v70
  %v161 = vunpack.c.h.b16 %v70
  %v162 = vunpack.c.l.b16 %v71
  %v163 = vunpack.c.l.b16 %v72
  %v164 = vunpack.c.h.b16 %v72
  %v165 = vunpack.c.l.b16 %v73
  %v166 = vunpack.c.l.b16 %v74
  %v167 = vunpack.c.h.b16 %v74
  %v168 = vunpack.c.l.b16 %v75
  %v169 = vunpack.c.l.b16 %v76
  %v170 = vunpack.c.h.b16 %v76
  %v171 = vunpack.c.l.b16 %v77
  %v172 = vunpack.c.l.b16 %v78
  %v173 = vunpack.c.h.b16 %v78
  %v174 = vunpack.c.l.b16 %v79
  %v175 = vunpack.c.l.b16 %v80
  %v176 = vunpack.c.h.b16 %v80
  %v177 = vunpack.c.l.b16 %v81
  %v178 = vunpack.c.l.b16 %v82
  %v179 = vunpack.c.h.b16 %v82
  %v180 = vunpack.c.l.b16 %v83
  %v181 = vpack.c.b16 %v136, %v133
  %v182 = vpack.c.b16 %v137, %v134
  %v183 = vpack.c.b16 %v138, %v135
  %v184 = vpack.c.b16 %v142, %v139
  %v185 = vpack.c.b16 %v143, %v140
  %v186 = vpack.c.b16 %v144, %v141
  %v187 = vpack.c.b16 %v148, %v145
  %v188 = vpack.c.b16 %v149, %v146
  %v189 = vpack.c.b16 %v150, %v147
  %v190 = vpack.c.b16 %v154, %v151
  %v191 = vpack.c.b16 %v155, %v152
  %v192 = vpack.c.b16 %v156, %v153
  %v193 = vpack.c.b16 %v160, %v157
  %v194 = vpack.c.b16 %v161, %v158
  %v195 = vpack.c.b16 %v162, %v159
  %v196 = vpack.c.b16 %v166, %v163
  %v197 = vpack.c.b16 %v167, %v164
  %v198 = vpack.c.b16 %v168, %v165
  %v199 = vpack.c.b16 %v172, %v169
  %v200 = vpack.c.b16 %v173, %v170
  %v201 = vpack.c.b16 %v174, %v171
  %v202 = vpack.c.b16 %v178, %v175
  %v203 = vpack.c.b16 %v179, %v176
  %v204 = vpack.c.b16 %v180, %v177
  %229 = vmatprep.subr.bf16.mxu0 %v182
  %230 = vmatpush1.bf16.msra.mxu0 %v181
  %231 = vmatprep.subr.bf16.mxu0 %v185
  %232 = vmatpush1.bf16.msra.mxu0 %v184
  %233 = vmatprep.subr.bf16.mxu0 %v188
  %234 = vmatpush1.bf16.msra.mxu0 %v187
  %235 = vmatprep.subr.bf16.mxu0 %v191
  %236 = vmatpush1.bf16.msra.mxu0 %v190
  %237 = vmatprep.subr.bf16.mxu0 %v194
  %238 = vmatpush1.bf16.msra.mxu0 %v193
  %239 = vmatprep.subr.bf16.mxu0 %v197
  %240 = vmatpush1.bf16.msra.mxu0 %v196
  %241 = vmatprep.subr.bf16.mxu0 %v200
  %242 = vmatpush1.bf16.msra.mxu0 %v199
  %243 = vmatprep.subr.bf16.mxu0 %v203
  %244 = vmatpush1.bf16.msra.mxu0 %v202
  %245 = vmatprep.subr.bf16.mxu0 0
  %246 = vmatpush1.bf16.msra.mxu0 0
  %247 = vmatprep.subr.bf16.mxu0 0
  %248 = vmatpush1.bf16.msra.mxu0 0
  %249 = vmatprep.subr.bf16.mxu0 0
  %250 = vmatpush1.bf16.msra.mxu0 0
  %251 = vmatprep.subr.bf16.mxu0 0
  %252 = vmatpush1.bf16.msra.mxu0 0
  %253 = vmatprep.subr.bf16.mxu0 0
  %254 = vmatpush1.bf16.msra.mxu0 0
  %255 = vmatprep.subr.bf16.mxu0 0
  %256 = vmatpush1.bf16.msra.mxu0 0
  %257 = vmatprep.subr.bf16.mxu0 0
  %258 = vmatpush1.bf16.msra.mxu0 0
  %259 = vmatprep.subr.bf16.mxu0 0
  %260 = vmatpush1.bf16.msra.mxu0 0
  %261 = vmatprep.mubr.bf16.mxu0 0
  %262 = vmatmul.mubr.bf16.gmra.mrb[0].mxu0 %v51
  %v263 = vpop.f32.mrb[0].mxu0
  %v264 = vadd.f32 %v89, %v263
  %v265 = vpop.f32.mrb[0].mxu0
  %v266 = vadd.f32 %v93, %v265
  %v267 = vpop.f32.mrb[0].mxu0
  %v268 = vadd.f32 %v89, %v267
  %v269 = vpop.f32.mrb[0].mxu0
  %v270 = vadd.f32 %v93, %v269
  %271 = vdwg.mxu0
  %272 = vmatprep.subr.bf16.mxu0 0
  %273 = vmatpush1.bf16.msra.mxu0 %v183
  %274 = vmatprep.subr.bf16.mxu0 0
  %275 = vmatpush1.bf16.msra.mxu0 %v186
  %276 = vmatprep.subr.bf16.mxu0 0
  %277 = vmatpush1.bf16.msra.mxu0 %v189
  %278 = vmatprep.subr.bf16.mxu0 0
  %279 = vmatpush1.bf16.msra.mxu0 %v192
  %280 = vmatprep.subr.bf16.mxu0 0
  %281 = vmatpush1.bf16.msra.mxu0 %v195
  %282 = vmatprep.subr.bf16.mxu0 0
  %283 = vmatpush1.bf16.msra.mxu0 %v198
  %284 = vmatprep.subr.bf16.mxu0 0
  %285 = vmatpush1.bf16.msra.mxu0 %v201
  %286 = vmatprep.subr.bf16.mxu0 0
  %287 = vmatpush1.bf16.msra.mxu0 %v204
  %288 = vmatprep.subr.bf16.mxu0 0
  %289 = vmatpush1.bf16.msra.mxu0 0
  %290 = vmatprep.subr.bf16.mxu0 0
  %291 = vmatpush1.bf16.msra.mxu0 0
  %292 = vmatprep.subr.bf16.mxu0 0
  %293 = vmatpush1.bf16.msra.mxu0 0
  %294 = vmatprep.subr.bf16.mxu0 0
  %295 = vmatpush1.bf16.msra.mxu0 0
  %296 = vmatprep.subr.bf16.mxu0 0
  %297 = vmatpush1.bf16.msra.mxu0 0
  %298 = vmatprep.subr.bf16.mxu0 0
  %299 = vmatpush1.bf16.msra.mxu0 0
  %300 = vmatprep.subr.bf16.mxu0 0
  %301 = vmatpush1.bf16.msra.mxu0 0
  %302 = vmatprep.subr.bf16.mxu0 0
  %303 = vmatpush1.bf16.msra.mxu0 0
  %304 = vmatprep.mubr.bf16.mxu0 0
  %305 = vmatmul.mubr.bf16.gmra.mrb[0].mxu0 %v51
  %v306 = vpop.f32.mrb[0].mxu0
  %v307 = vadd.f32 %v97, %v306
  %v308 = vpop.f32.mrb[0].mxu0
  %v309 = vpop.f32.mrb[0].mxu0
  %v310 = vadd.f32 %v97, %v309
  %v311 = vpop.f32.mrb[0].mxu0
  %312 = vdwg.mxu0
  %v313 = vpack.c.bf16 %v264, %v264
  %v314 = vpack.c.bf16 %v266, %v266
  %vm315 = vcmask 523264
  %v317 = vsel %vm315, %v313, 0
  %v320 = vsel %vm315, %v314, 0
  %322 = vmatprep.subr.bf16.mxu0 0
  %323 = vmatpush1.bf16.xpose.msra.mxu0 %v320
  %324 = vmatprep.subr.bf16.mxu0 0
  %325 = vmatpush1.bf16.xpose.msra.mxu0 0
  %326 = vmatprep.subr.bf16.mxu0 0
  %327 = vmatpush1.bf16.xpose.msra.mxu0 0
  %328 = vmatprep.subr.bf16.mxu0 0
  %329 = vmatpush1.bf16.xpose.msra.mxu0 0
  %330 = vmatprep.subr.bf16.mxu0 0
  %331 = vmatpush1.bf16.xpose.msra.mxu0 0
  %332 = vmatprep.subr.bf16.mxu0 0
  %333 = vmatpush1.bf16.xpose.msra.mxu0 0
  %334 = vmatprep.subr.bf16.mxu0 0
  %335 = vmatpush1.bf16.xpose.msra.mxu0 0
  %336 = vmatprep.subr.bf16.mxu0 0
  %337 = vmatpush1.bf16.xpose.msra.mxu0 0
  %338 = vmatprep.subr.bf16.mxu0 0
  %339 = vmatpush1.bf16.xpose.msra.mxu0 0
  %340 = vmatprep.subr.bf16.mxu0 0
  %341 = vmatpush1.bf16.xpose.msra.mxu0 0
  %342 = vmatprep.subr.bf16.mxu0 0
  %343 = vmatpush1.bf16.xpose.msra.mxu0 0
  %344 = vmatprep.subr.bf16.mxu0 0
  %345 = vmatpush1.bf16.xpose.msra.mxu0 0
  %346 = vmatprep.subr.bf16.mxu0 0
  %347 = vmatpush1.bf16.xpose.msra.mxu0 0
  %348 = vmatprep.subr.bf16.mxu0 0
  %349 = vmatpush1.bf16.xpose.msra.mxu0 0
  %350 = vmatprep.subr.bf16.mxu0 0
  %351 = vmatpush1.bf16.xpose.msra.mxu0 0
  %352 = vmatprep.subr.bf16.mxu0 0
  %353 = vmatpush1.bf16.xpose.msra.mxu0 0
  %354 = vmatprep.mubr.bf16.mxu0 0
  %355 = vmatmul.mubr.bf16.gmra.mrb[0].mxu0 %v317
  %v356 = vpop.f32.mrb[0].mxu0
  %v357 = vadd.f32 0.0, %v356
  %v358 = vpop.f32.mrb[0].mxu0
  %v359 = vpop.f32.mrb[0].mxu0
  %v360 = vpop.f32.mrb[0].mxu0
  %361 = vdwg.mxu0
  %v362 = vmul.f32 %v357, 0.125
  %v363 = vlaneseq
  %v364 = vshrl.u32 %v363, 7
  %v365 = vsub.s32 0, %v364
  %v366 = vrot.slane %v50, %v365
  %v367 = vadd.f32 %v362, %v366
  %vm368 = vcmask 64512
  %v369 = vsel %vm368, %v367, -inf
  %370 = vmax.xlane.f32.xlu0 %v369
  %v371 = vpop.xlane.xlu0 %370
  %v372 = vsub.f32 %v367, %v371
  %v373 = vmul.f32 %v372, 1.442695
  %v374 = vpow.pop %v373
  %v375 = vsel %vm368, %v374, 0.0
  %376 = vadd.xlane.f32.xlu0 %v375
  %v377 = vpop.xlane.xlu0 %376
  %v378 = vrcp.pop %v377
  %v379 = vmul.f32 %v374, %v378
  %v380 = vpack.c.bf16 %v379, %v379
  %v381 = vpack.c.bf16 %v307, %v307
  %v383 = vsel %vm368, %v380, 0
  %vm385 = vcmask 1043456
  %v387 = vsel %vm385, %v381, 0
  %389 = vmatprep.subr.bf16.mxu0 0
  %390 = vmatpush1.bf16.msra.mxu0 %v387
  %391 = vmatprep.subr.bf16.mxu0 0
  %392 = vmatpush1.bf16.msra.mxu0 0
  %393 = vmatprep.subr.bf16.mxu0 0
  %394 = vmatpush1.bf16.msra.mxu0 0
  %395 = vmatprep.subr.bf16.mxu0 0
  %396 = vmatpush1.bf16.msra.mxu0 0
  %397 = vmatprep.subr.bf16.mxu0 0
  %398 = vmatpush1.bf16.msra.mxu0 0
  %399 = vmatprep.subr.bf16.mxu0 0
  %400 = vmatpush1.bf16.msra.mxu0 0
  %401 = vmatprep.subr.bf16.mxu0 0
  %402 = vmatpush1.bf16.msra.mxu0 0
  %403 = vmatprep.subr.bf16.mxu0 0
  %404 = vmatpush1.bf16.msra.mxu0 0
  %405 = vmatprep.subr.bf16.mxu0 0
  %406 = vmatpush1.bf16.msra.mxu0 0
  %407 = vmatprep.subr.bf16.mxu0 0
  %408 = vmatpush1.bf16.msra.mxu0 0
  %409 = vmatprep.subr.bf16.mxu0 0
  %410 = vmatpush1.bf16.msra.mxu0 0
  %411 = vmatprep.subr.bf16.mxu0 0
  %412 = vmatpush1.bf16.msra.mxu0 0
  %413 = vmatprep.subr.bf16.mxu0 0
  %414 = vmatpush1.bf16.msra.mxu0 0
  %415 = vmatprep.subr.bf16.mxu0 0
  %416 = vmatpush1.bf16.msra.mxu0 0
  %417 = vmatprep.subr.bf16.mxu0 0
  %418 = vmatpush1.bf16.msra.mxu0 0
  %419 = vmatprep.subr.bf16.mxu0 0
  %420 = vmatpush1.bf16.msra.mxu0 0
  %421 = vmatprep.mubr.bf16.mxu0 0
  %422 = vmatmul.mubr.bf16.gmra.mrb[0].mxu0 %v383
  %v423 = vpop.f32.mrb[0].mxu0
  %v424 = vadd.f32 0.0, %v423
  %v425 = vpop.f32.mrb[0].mxu0
  %v426 = vpop.f32.mrb[0].mxu0
  %v427 = vpop.f32.mrb[0].mxu0
  %428 = vdwg.mxu0
  %429 = vst.msk [vmem:[#allocation2] sm:$0xff] %vm315, %v424
  %431 = vrot.lane.b32.xlu0 %v313, 64
  %v432 = vpop.permute.xlu0 %431
  %434 = vrot.lane.b32.xlu0 %v314, 64
  %v435 = vpop.permute.xlu0 %434
  %v437 = vsel %vm315, %v432, 0
  %v440 = vsel %vm315, %v435, 0
  %442 = vmatprep.subr.bf16.mxu0 0
  %443 = vmatpush1.bf16.xpose.msra.mxu0 %v440
  %444 = vmatprep.subr.bf16.mxu0 0
  %445 = vmatpush1.bf16.xpose.msra.mxu0 0
  %446 = vmatprep.subr.bf16.mxu0 0
  %447 = vmatpush1.bf16.xpose.msra.mxu0 0
  %448 = vmatprep.subr.bf16.mxu0 0
  %449 = vmatpush1.bf16.xpose.msra.mxu0 0
  %450 = vmatprep.subr.bf16.mxu0 0
  %451 = vmatpush1.bf16.xpose.msra.mxu0 0
  %452 = vmatprep.subr.bf16.mxu0 0
  %453 = vmatpush1.bf16.xpose.msra.mxu0 0
  %454 = vmatprep.subr.bf16.mxu0 0
  %455 = vmatpush1.bf16.xpose.msra.mxu0 0
  %456 = vmatprep.subr.bf16.mxu0 0
  %457 = vmatpush1.bf16.xpose.msra.mxu0 0
  %458 = vmatprep.subr.bf16.mxu0 0
  %459 = vmatpush1.bf16.xpose.msra.mxu0 0
  %460 = vmatprep.subr.bf16.mxu0 0
  %461 = vmatpush1.bf16.xpose.msra.mxu0 0
  %462 = vmatprep.subr.bf16.mxu0 0
  %463 = vmatpush1.bf16.xpose.msra.mxu0 0
  %464 = vmatprep.subr.bf16.mxu0 0
  %465 = vmatpush1.bf16.xpose.msra.mxu0 0
  %466 = vmatprep.subr.bf16.mxu0 0
  %467 = vmatpush1.bf16.xpose.msra.mxu0 0
  %468 = vmatprep.subr.bf16.mxu0 0
  %469 = vmatpush1.bf16.xpose.msra.mxu0 0
  %470 = vmatprep.subr.bf16.mxu0 0
  %471 = vmatpush1.bf16.xpose.msra.mxu0 0
  %472 = vmatprep.subr.bf16.mxu0 0
  %473 = vmatpush1.bf16.xpose.msra.mxu0 0
  %474 = vmatprep.mubr.bf16.mxu0 0
  %475 = vmatmul.mubr.bf16.gmra.mrb[0].mxu0 %v437
  %v476 = vpop.f32.mrb[0].mxu0
  %v477 = vadd.f32 0.0, %v476
  %v478 = vpop.f32.mrb[0].mxu0
  %v479 = vpop.f32.mrb[0].mxu0
  %v480 = vpop.f32.mrb[0].mxu0
  %481 = vdwg.mxu0
  %v482 = vmul.f32 %v477, 0.125
  %v483 = vadd.f32 %v482, %v366
  %v484 = vsel %vm368, %v483, -inf
  %485 = vmax.xlane.f32.xlu0 %v484
  %v486 = vpop.xlane.xlu0 %485
  %v487 = vsub.f32 %v483, %v486
  %v488 = vmul.f32 %v487, 1.442695
  %v489 = vpow.pop %v488
  %v490 = vsel %vm368, %v489, 0.0
  %491 = vadd.xlane.f32.xlu0 %v490
  %v492 = vpop.xlane.xlu0 %491
  %v493 = vrcp.pop %v492
  %v494 = vmul.f32 %v489, %v493
  %v495 = vpack.c.bf16 %v494, %v494
  %497 = vrot.lane.b32.xlu0 %v381, 64
  %v498 = vpop.permute.xlu0 %497
  %v500 = vsel %vm368, %v495, 0
  %v503 = vsel %vm385, %v498, 0
  %505 = vmatprep.subr.bf16.mxu0 0
  %506 = vmatpush1.bf16.msra.mxu0 %v503
  %507 = vmatprep.subr.bf16.mxu0 0
  %508 = vmatpush1.bf16.msra.mxu0 0
  %509 = vmatprep.subr.bf16.mxu0 0
  %510 = vmatpush1.bf16.msra.mxu0 0
  %511 = vmatprep.subr.bf16.mxu0 0
  %512 = vmatpush1.bf16.msra.mxu0 0
  %513 = vmatprep.subr.bf16.mxu0 0
  %514 = vmatpush1.bf16.msra.mxu0 0
  %515 = vmatprep.subr.bf16.mxu0 0
  %516 = vmatpush1.bf16.msra.mxu0 0
  %517 = vmatprep.subr.bf16.mxu0 0
  %518 = vmatpush1.bf16.msra.mxu0 0
  %519 = vmatprep.subr.bf16.mxu0 0
  %520 = vmatpush1.bf16.msra.mxu0 0
  %521 = vmatprep.subr.bf16.mxu0 0
  %522 = vmatpush1.bf16.msra.mxu0 0
  %523 = vmatprep.subr.bf16.mxu0 0
  %524 = vmatpush1.bf16.msra.mxu0 0
  %525 = vmatprep.subr.bf16.mxu0 0
  %526 = vmatpush1.bf16.msra.mxu0 0
  %527 = vmatprep.subr.bf16.mxu0 0
  %528 = vmatpush1.bf16.msra.mxu0 0
  %529 = vmatprep.subr.bf16.mxu0 0
  %530 = vmatpush1.bf16.msra.mxu0 0
  %531 = vmatprep.subr.bf16.mxu0 0
  %532 = vmatpush1.bf16.msra.mxu0 0
  %533 = vmatprep.subr.bf16.mxu0 0
  %534 = vmatpush1.bf16.msra.mxu0 0
  %535 = vmatprep.subr.bf16.mxu0 0
  %536 = vmatpush1.bf16.msra.mxu0 0
  %537 = vmatprep.mubr.bf16.mxu0 0
  %538 = vmatmul.mubr.bf16.gmra.mrb[0].mxu0 %v500
  %v539 = vpop.f32.mrb[0].mxu0
  %v540 = vadd.f32 0.0, %v539
  %v541 = vpop.f32.mrb[0].mxu0
  %v542 = vpop.f32.mrb[0].mxu0
  %v543 = vpop.f32.mrb[0].mxu0
  %544 = vdwg.mxu0
  %546 = vrot.lane.b32.xlu0 %v540, 64
  %v547 = vpop.permute.xlu0 %546
  %vm549 = vcmask 1048064
  %550 = vst.msk [vmem:[#allocation2] sm:$0xff] %vm549, %v547
  %v551 = vpack.c.bf16 %v268, %v268
  %v552 = vpack.c.bf16 %v270, %v270
  %v554 = vsel %vm315, %v551, 0
  %v557 = vsel %vm315, %v552, 0
  %559 = vmatprep.subr.bf16.mxu0 0
  %560 = vmatpush1.bf16.xpose.msra.mxu0 %v557
  %561 = vmatprep.subr.bf16.mxu0 0
  %562 = vmatpush1.bf16.xpose.msra.mxu0 0
  %563 = vmatprep.subr.bf16.mxu0 0
  %564 = vmatpush1.bf16.xpose.msra.mxu0 0
  %565 = vmatprep.subr.bf16.mxu0 0
  %566 = vmatpush1.bf16.xpose.msra.mxu0 0
  %567 = vmatprep.subr.bf16.mxu0 0
  %568 = vmatpush1.bf16.xpose.msra.mxu0 0
  %569 = vmatprep.subr.bf16.mxu0 0
  %570 = vmatpush1.bf16.xpose.msra.mxu0 0
  %571 = vmatprep.subr.bf16.mxu0 0
  %572 = vmatpush1.bf16.xpose.msra.mxu0 0
  %573 = vmatprep.subr.bf16.mxu0 0
  %574 = vmatpush1.bf16.xpose.msra.mxu0 0
  %575 = vmatprep.subr.bf16.mxu0 0
  %576 = vmatpush1.bf16.xpose.msra.mxu0 0
  %577 = vmatprep.subr.bf16.mxu0 0
  %578 = vmatpush1.bf16.xpose.msra.mxu0 0
  %579 = vmatprep.subr.bf16.mxu0 0
  %580 = vmatpush1.bf16.xpose.msra.mxu0 0
  %581 = vmatprep.subr.bf16.mxu0 0
  %582 = vmatpush1.bf16.xpose.msra.mxu0 0
  %583 = vmatprep.subr.bf16.mxu0 0
  %584 = vmatpush1.bf16.xpose.msra.mxu0 0
  %585 = vmatprep.subr.bf16.mxu0 0
  %586 = vmatpush1.bf16.xpose.msra.mxu0 0
  %587 = vmatprep.subr.bf16.mxu0 0
  %588 = vmatpush1.bf16.xpose.msra.mxu0 0
  %589 = vmatprep.subr.bf16.mxu0 0
  %590 = vmatpush1.bf16.xpose.msra.mxu0 0
  %591 = vmatprep.mubr.bf16.mxu0 0
  %592 = vmatmul.mubr.bf16.gmra.mrb[0].mxu0 %v554
  %v593 = vpop.f32.mrb[0].mxu0
  %v594 = vadd.f32 0.0, %v593
  %v595 = vpop.f32.mrb[0].mxu0
  %v596 = vpop.f32.mrb[0].mxu0
  %v597 = vpop.f32.mrb[0].mxu0
  %598 = vdwg.mxu0
  %v599 = vmul.f32 %v594, 0.125
  %v600 = vlaneseq
  %v601 = vshrl.u32 %v600, 7
  %v602 = vsub.s32 1, %v601
  %v603 = vrot.slane %v50, %v602
  %v604 = vadd.f32 %v599, %v603
  %v605 = vsel %vm368, %v604, -inf
  %606 = vmax.xlane.f32.xlu0 %v605
  %v607 = vpop.xlane.xlu0 %606
  %v608 = vsub.f32 %v604, %v607
  %v609 = vmul.f32 %v608, 1.442695
  %v610 = vpow.pop %v609
  %v611 = vsel %vm368, %v610, 0.0
  %612 = vadd.xlane.f32.xlu0 %v611
  %v613 = vpop.xlane.xlu0 %612
  %v614 = vrcp.pop %v613
  %v615 = vmul.f32 %v610, %v614
  %v616 = vpack.c.bf16 %v615, %v615
  %v617 = vpack.c.bf16 %v310, %v310
  %v619 = vsel %vm368, %v616, 0
  %v622 = vsel %vm385, %v617, 0
  %624 = vmatprep.subr.bf16.mxu0 0
  %625 = vmatpush1.bf16.msra.mxu0 %v622
  %626 = vmatprep.subr.bf16.mxu0 0
  %627 = vmatpush1.bf16.msra.mxu0 0
  %628 = vmatprep.subr.bf16.mxu0 0
  %629 = vmatpush1.bf16.msra.mxu0 0
  %630 = vmatprep.subr.bf16.mxu0 0
  %631 = vmatpush1.bf16.msra.mxu0 0
  %632 = vmatprep.subr.bf16.mxu0 0
  %633 = vmatpush1.bf16.msra.mxu0 0
  %634 = vmatprep.subr.bf16.mxu0 0
  %635 = vmatpush1.bf16.msra.mxu0 0
  %636 = vmatprep.subr.bf16.mxu0 0
  %637 = vmatpush1.bf16.msra.mxu0 0
  %638 = vmatprep.subr.bf16.mxu0 0
  %639 = vmatpush1.bf16.msra.mxu0 0
  %640 = vmatprep.subr.bf16.mxu0 0
  %641 = vmatpush1.bf16.msra.mxu0 0
  %642 = vmatprep.subr.bf16.mxu0 0
  %643 = vmatpush1.bf16.msra.mxu0 0
  %644 = vmatprep.subr.bf16.mxu0 0
  %645 = vmatpush1.bf16.msra.mxu0 0
  %646 = vmatprep.subr.bf16.mxu0 0
  %647 = vmatpush1.bf16.msra.mxu0 0
  %648 = vmatprep.subr.bf16.mxu0 0
  %649 = vmatpush1.bf16.msra.mxu0 0
  %650 = vmatprep.subr.bf16.mxu0 0
  %651 = vmatpush1.bf16.msra.mxu0 0
  %652 = vmatprep.subr.bf16.mxu0 0
  %653 = vmatpush1.bf16.msra.mxu0 0
  %654 = vmatprep.subr.bf16.mxu0 0
  %655 = vmatpush1.bf16.msra.mxu0 0
  %656 = vmatprep.mubr.bf16.mxu0 0
  %657 = vmatmul.mubr.bf16.gmra.mrb[0].mxu0 %v619
  %v658 = vpop.f32.mrb[0].mxu0
  %v659 = vadd.f32 0.0, %v658
  %v660 = vpop.f32.mrb[0].mxu0
  %v661 = vpop.f32.mrb[0].mxu0
  %v662 = vpop.f32.mrb[0].mxu0
  %663 = vdwg.mxu0
  %664 = vst.msk [vmem:[#allocation2 + $0x8] sm:$0xff] %vm315, %v659
  %666 = vrot.lane.b32.xlu0 %v551, 64
  %v667 = vpop.permute.xlu0 %666
  %669 = vrot.lane.b32.xlu0 %v552, 64
  %v670 = vpop.permute.xlu0 %669
  %v672 = vsel %vm315, %v667, 0
  %v675 = vsel %vm315, %v670, 0
  %677 = vmatprep.subr.bf16.mxu0 0
  %678 = vmatpush1.bf16.xpose.msra.mxu0 %v675
  %679 = vmatprep.subr.bf16.mxu0 0
  %680 = vmatpush1.bf16.xpose.msra.mxu0 0
  %681 = vmatprep.subr.bf16.mxu0 0
  %682 = vmatpush1.bf16.xpose.msra.mxu0 0
  %683 = vmatprep.subr.bf16.mxu0 0
  %684 = vmatpush1.bf16.xpose.msra.mxu0 0
  %685 = vmatprep.subr.bf16.mxu0 0
  %686 = vmatpush1.bf16.xpose.msra.mxu0 0
  %687 = vmatprep.subr.bf16.mxu0 0
  %688 = vmatpush1.bf16.xpose.msra.mxu0 0
  %689 = vmatprep.subr.bf16.mxu0 0
  %690 = vmatpush1.bf16.xpose.msra.mxu0 0
  %691 = vmatprep.subr.bf16.mxu0 0
  %692 = vmatpush1.bf16.xpose.msra.mxu0 0
  %693 = vmatprep.subr.bf16.mxu0 0
  %694 = vmatpush1.bf16.xpose.msra.mxu0 0
  %695 = vmatprep.subr.bf16.mxu0 0
  %696 = vmatpush1.bf16.xpose.msra.mxu0 0
  %697 = vmatprep.subr.bf16.mxu0 0
  %698 = vmatpush1.bf16.xpose.msra.mxu0 0
  %699 = vmatprep.subr.bf16.mxu0 0
  %700 = vmatpush1.bf16.xpose.msra.mxu0 0
  %701 = vmatprep.subr.bf16.mxu0 0
  %702 = vmatpush1.bf16.xpose.msra.mxu0 0
  %703 = vmatprep.subr.bf16.mxu0 0
  %704 = vmatpush1.bf16.xpose.msra.mxu0 0
  %705 = vmatprep.subr.bf16.mxu0 0
  %706 = vmatpush1.bf16.xpose.msra.mxu0 0
  %707 = vmatprep.subr.bf16.mxu0 0
  %708 = vmatpush1.bf16.xpose.msra.mxu0 0
  %709 = vmatprep.mubr.bf16.mxu0 0
  %710 = vmatmul.mubr.bf16.gmra.mrb[0].mxu0 %v672
  %v711 = vpop.f32.mrb[0].mxu0
  %v712 = vadd.f32 0.0, %v711
  %v713 = vpop.f32.mrb[0].mxu0
  %v714 = vpop.f32.mrb[0].mxu0
  %v715 = vpop.f32.mrb[0].mxu0
  %716 = vdwg.mxu0
  %v717 = vmul.f32 %v712, 0.125
  %v718 = vadd.f32 %v717, %v603
  %v719 = vsel %vm368, %v718, -inf
  %720 = vmax.xlane.f32.xlu0 %v719
  %v721 = vpop.xlane.xlu0 %720
  %v722 = vsub.f32 %v718, %v721
  %v723 = vmul.f32 %v722, 1.442695
  %v724 = vpow.pop %v723
  %v725 = vsel %vm368, %v724, 0.0
  %726 = vadd.xlane.f32.xlu0 %v725
  %v727 = vpop.xlane.xlu0 %726
  %v728 = vrcp.pop %v727
  %v729 = vmul.f32 %v724, %v728
  %v730 = vpack.c.bf16 %v729, %v729
  %732 = vrot.lane.b32.xlu0 %v617, 64
  %v733 = vpop.permute.xlu0 %732
  %v735 = vsel %vm368, %v730, 0
  %v738 = vsel %vm385, %v733, 0
  %740 = vmatprep.subr.bf16.mxu0 0
  %741 = vmatpush1.bf16.msra.mxu0 %v738
  %742 = vmatprep.subr.bf16.mxu0 0
  %743 = vmatpush1.bf16.msra.mxu0 0
  %744 = vmatprep.subr.bf16.mxu0 0
  %745 = vmatpush1.bf16.msra.mxu0 0
  %746 = vmatprep.subr.bf16.mxu0 0
  %747 = vmatpush1.bf16.msra.mxu0 0
  %748 = vmatprep.subr.bf16.mxu0 0
  %749 = vmatpush1.bf16.msra.mxu0 0
  %750 = vmatprep.subr.bf16.mxu0 0
  %751 = vmatpush1.bf16.msra.mxu0 0
  %752 = vmatprep.subr.bf16.mxu0 0
  %753 = vmatpush1.bf16.msra.mxu0 0
  %754 = vmatprep.subr.bf16.mxu0 0
  %755 = vmatpush1.bf16.msra.mxu0 0
  %756 = vmatprep.subr.bf16.mxu0 0
  %757 = vmatpush1.bf16.msra.mxu0 0
  %758 = vmatprep.subr.bf16.mxu0 0
  %759 = vmatpush1.bf16.msra.mxu0 0
  %760 = vmatprep.subr.bf16.mxu0 0
  %761 = vmatpush1.bf16.msra.mxu0 0
  %762 = vmatprep.subr.bf16.mxu0 0
  %763 = vmatpush1.bf16.msra.mxu0 0
  %764 = vmatprep.subr.bf16.mxu0 0
  %765 = vmatpush1.bf16.msra.mxu0 0
  %766 = vmatprep.subr.bf16.mxu0 0
  %767 = vmatpush1.bf16.msra.mxu0 0
  %768 = vmatprep.subr.bf16.mxu0 0
  %769 = vmatpush1.bf16.msra.mxu0 0
  %770 = vmatprep.subr.bf16.mxu0 0
  %771 = vmatpush1.bf16.msra.mxu0 0
  %772 = vmatprep.mubr.bf16.mxu0 0
  %773 = vmatmul.mubr.bf16.gmra.mrb[0].mxu0 %v735
  %v774 = vpop.f32.mrb[0].mxu0
  %v775 = vadd.f32 0.0, %v774
  %v776 = vpop.f32.mrb[0].mxu0
  %v777 = vpop.f32.mrb[0].mxu0
  %v778 = vpop.f32.mrb[0].mxu0
  %779 = vdwg.mxu0
  %781 = vrot.lane.b32.xlu0 %v775, 64
  %v782 = vpop.permute.xlu0 %781
  %784 = vst.msk [vmem:[#allocation2 + $0x8] sm:$0xff] %vm549, %v782
  %v785 = vld [vmem:[#allocation2] sm:$0xff]
  %v786 = vld [vmem:[#allocation2 + $0x8] sm:$0xff]
  %v787 = vpack.c.bf16 %v786, %v785
  %v788 = vld [vmem:[%s4] sm:$0xf]
  %v789 = vld [vmem:[%s4 + $0x4] sm:$0xf]
  %v790 = vld [vmem:[%s4 + $0x8] sm:$0xf]
  %v791 = vld [vmem:[%s4 + $0xc] sm:$0xf]
  %v792 = vld [vmem:[%s4 + $0x10] sm:$0xf]
  %v793 = vld [vmem:[%s4 + $0x14] sm:$0xf]
  %v794 = vld [vmem:[%s4 + $0x18] sm:$0xf]
  %v795 = vld [vmem:[%s4 + $0x1c] sm:$0xf]
  %v796 = vld [vmem:[%s4 + $0x20] sm:$0xf]
  %v797 = vld [vmem:[%s4 + $0x24] sm:$0xf]
  %v798 = vld [vmem:[%s4 + $0x28] sm:$0xf]
  %v799 = vld [vmem:[%s4 + $0x2c] sm:$0xf]
  %v800 = vld [vmem:[%s4 + $0x30] sm:$0xf]
  %v801 = vld [vmem:[%s4 + $0x34] sm:$0xf]
  %v802 = vld [vmem:[%s4 + $0x38] sm:$0xf]
  %v803 = vld [vmem:[%s4 + $0x3c] sm:$0xf]
  %v804 = vld [vmem:[%s5] sm:$0x1]
  %v806 = vlaneseq
  %v807 = vshrl.u32 %v806, 7
  %v808 = vsub.s32 0, %v807
  %v809 = vrot.slane %v804, %v808
  %v827 = vunpack.c.l.b16 %v788
  %v828 = vunpack.c.l.b16 %v789
  %v829 = vunpack.c.l.b16 %v790
  %v830 = vunpack.c.l.b16 %v791
  %v831 = vunpack.c.l.b16 %v792
  %v832 = vunpack.c.l.b16 %v793
  %v833 = vunpack.c.l.b16 %v794
  %v834 = vunpack.c.l.b16 %v795
  %v835 = vunpack.c.l.b16 %v796
  %v836 = vunpack.c.l.b16 %v797
  %v837 = vunpack.c.l.b16 %v798
  %v838 = vunpack.c.l.b16 %v799
  %v839 = vunpack.c.l.b16 %v800
  %v840 = vunpack.c.l.b16 %v801
  %v841 = vunpack.c.l.b16 %v802
  %v842 = vunpack.c.l.b16 %v803
  %v843 = vpack.c.b16 %v828, %v827
  %v844 = vpack.c.b16 %v830, %v829
  %v845 = vpack.c.b16 %v832, %v831
  %v846 = vpack.c.b16 %v834, %v833
  %v847 = vpack.c.b16 %v836, %v835
  %v848 = vpack.c.b16 %v838, %v837
  %v849 = vpack.c.b16 %v840, %v839
  %v850 = vpack.c.b16 %v842, %v841
  %859 = vmatprep.subr.bf16.mxu0 0
  %860 = vmatpush1.bf16.msra.mxu0 %v843
  %861 = vmatprep.subr.bf16.mxu0 0
  %862 = vmatpush1.bf16.msra.mxu0 %v844
  %863 = vmatprep.subr.bf16.mxu0 0
  %864 = vmatpush1.bf16.msra.mxu0 %v845
  %865 = vmatprep.subr.bf16.mxu0 0
  %866 = vmatpush1.bf16.msra.mxu0 %v846
  %867 = vmatprep.subr.bf16.mxu0 0
  %868 = vmatpush1.bf16.msra.mxu0 %v847
  %869 = vmatprep.subr.bf16.mxu0 0
  %870 = vmatpush1.bf16.msra.mxu0 %v848
  %871 = vmatprep.subr.bf16.mxu0 0
  %872 = vmatpush1.bf16.msra.mxu0 %v849
  %873 = vmatprep.subr.bf16.mxu0 0
  %874 = vmatpush1.bf16.msra.mxu0 %v850
  %875 = vmatprep.subr.bf16.mxu0 0
  %876 = vmatpush1.bf16.msra.mxu0 0
  %877 = vmatprep.subr.bf16.mxu0 0
  %878 = vmatpush1.bf16.msra.mxu0 0
  %879 = vmatprep.subr.bf16.mxu0 0
  %880 = vmatpush1.bf16.msra.mxu0 0
  %881 = vmatprep.subr.bf16.mxu0 0
  %882 = vmatpush1.bf16.msra.mxu0 0
  %883 = vmatprep.subr.bf16.mxu0 0
  %884 = vmatpush1.bf16.msra.mxu0 0
  %885 = vmatprep.subr.bf16.mxu0 0
  %886 = vmatpush1.bf16.msra.mxu0 0
  %887 = vmatprep.subr.bf16.mxu0 0
  %888 = vmatpush1.bf16.msra.mxu0 0
  %889 = vmatprep.subr.bf16.mxu0 0
  %890 = vmatpush1.bf16.msra.mxu0 0
  %891 = vmatprep.mubr.bf16.mxu0 0
  %892 = vmatmul.mubr.bf16.gmra.mrb[0].mxu0 %v787
  %v893 = vpop.f32.mrb[0].mxu0
  %v894 = vadd.f32 %v809, %v893
  %v895 = vpop.f32.mrb[0].mxu0
  %v896 = vpop.f32.mrb[0].mxu0
  %v897 = vadd.f32 %v809, %v896
  %v898 = vpop.f32.mrb[0].mxu0
  %899 = vdwg.mxu0
  %v900 = vadd.f32 %v894, %v48
  %v901 = vadd.f32 %v897, %v49
  %v902 = vld [vmem:[%s6] sm:$0x1]
  %v903 = vld [vmem:[%s7] sm:$0x1]
  %904 = vadd.xlane.f32.xlu0 %v900
  %v905 = vpop.xlane.xlu0 %904
  %906 = vadd.xlane.f32.xlu0 %v901
  %v907 = vpop.xlane.xlu0 %906
  %v908 = vrcp.pop 128.0
  %v909 = vmul.f32 %v905, %v908
  %v910 = vmul.f32 %v907, %v908
  %v911 = vsub.f32 %v900, %v909
  %v912 = vsub.f32 %v901, %v910
  %v913 = vmul.f32 %v911, %v911
  %v914 = vmul.f32 %v912, %v912
  %915 = vadd.xlane.f32.xlu0 %v913
  %v916 = vpop.xlane.xlu0 %915
  %917 = vadd.xlane.f32.xlu0 %v914
  %v918 = vpop.xlane.xlu0 %917
  %v919 = vmul.f32 %v916, %v908
  %v920 = vmul.f32 %v918, %v908
  %v921 = vadd.f32 %v919, 1e-12
  %v922 = vadd.f32 %v920, 1e-12
  %v923 = vrsqrt.pop %v921
  %v924 = vrsqrt.pop %v922
  %v925 = vmul.f32 %v911, %v923
  %v926 = vmul.f32 %v912, %v924
  %v928 = vlaneseq
  %v929 = vshrl.u32 %v928, 7
  %v930 = vsub.s32 0, %v929
  %v931 = vrot.slane %v902, %v930
  %v933 = vmul.f32 %v925, %v931
  %v934 = vmul.f32 %v926, %v931
  %v936 = vlaneseq
  %v937 = vshrl.u32 %v936, 7
  %v938 = vsub.s32 0, %v937
  %v939 = vrot.slane %v903, %v938
  %v941 = vadd.f32 %v933, %v939
  %v942 = vadd.f32 %v934, %v939
  %v943 = vpack.c.bf16 %v942, %v941
  %v944 = vld [vmem:[%s8] sm:$0xff]
  %v945 = vld [vmem:[%s8 + $0x8] sm:$0xff]
  %v946 = vld [vmem:[%s8 + $0x10] sm:$0xff]
  %v947 = vld [vmem:[%s8 + $0x18] sm:$0xff]
  %v948 = vld [vmem:[%s8 + $0x20] sm:$0xff]
  %v949 = vld [vmem:[%s8 + $0x28] sm:$0xff]
  %v950 = vld [vmem:[%s8 + $0x30] sm:$0xff]
  %v951 = vld [vmem:[%s8 + $0x38] sm:$0xff]
  %v952 = vld [vmem:[%s8 + $0x40] sm:$0xff]
  %v953 = vld [vmem:[%s8 + $0x48] sm:$0xff]
  %v954 = vld [vmem:[%s8 + $0x50] sm:$0xff]
  %v955 = vld [vmem:[%s8 + $0x58] sm:$0xff]
  %v956 = vld [vmem:[%s8 + $0x60] sm:$0xff]
  %v957 = vld [vmem:[%s8 + $0x68] sm:$0xff]
  %v958 = vld [vmem:[%s8 + $0x70] sm:$0xff]
  %v959 = vld [vmem:[%s8 + $0x78] sm:$0xff]
  %v960 = vld [vmem:[%s8 + $0x80] sm:$0xff]
  %v961 = vld [vmem:[%s8 + $0x88] sm:$0xff]
  %v962 = vld [vmem:[%s8 + $0x90] sm:$0xff]
  %v963 = vld [vmem:[%s8 + $0x98] sm:$0xff]
  %v964 = vld [vmem:[%s8 + $0xa0] sm:$0xff]
  %v965 = vld [vmem:[%s8 + $0xa8] sm:$0xff]
  %v966 = vld [vmem:[%s8 + $0xb0] sm:$0xff]
  %v967 = vld [vmem:[%s8 + $0xb8] sm:$0xff]
  %v968 = vld [vmem:[%s8 + $0xc0] sm:$0xff]
  %v969 = vld [vmem:[%s8 + $0xc8] sm:$0xff]
  %v970 = vld [vmem:[%s8 + $0xd0] sm:$0xff]
  %v971 = vld [vmem:[%s8 + $0xd8] sm:$0xff]
  %v972 = vld [vmem:[%s8 + $0xe0] sm:$0xff]
  %v973 = vld [vmem:[%s8 + $0xe8] sm:$0xff]
  %v974 = vld [vmem:[%s8 + $0xf0] sm:$0xff]
  %v975 = vld [vmem:[%s8 + $0xf8] sm:$0xff]
  %v976 = vld [vmem:[%s9] sm:$0xf]
  %v978 = vlaneseq
  %v979 = vshrl.u32 %v978, 7
  %v980 = vsub.s32 0, %v979
  %v981 = vrot.slane %v976, %v980
  %v982 = vlaneseq
  %v983 = vshrl.u32 %v982, 7
  %v984 = vsub.s32 1, %v983
  %v985 = vrot.slane %v976, %v984
  %v986 = vlaneseq
  %v987 = vshrl.u32 %v986, 7
  %v988 = vsub.s32 2, %v987
  %v989 = vrot.slane %v976, %v988
  %v990 = vlaneseq
  %v991 = vshrl.u32 %v990, 7
  %v992 = vsub.s32 3, %v991
  %v993 = vrot.slane %v976, %v992
  %v1030 = vunpack.c.l.b16 %v944
  %v1031 = vunpack.c.h.b16 %v944
  %v1032 = vunpack.c.l.b16 %v945
  %v1033 = vunpack.c.h.b16 %v945
  %v1034 = vunpack.c.l.b16 %v946
  %v1035 = vunpack.c.h.b16 %v946
  %v1036 = vunpack.c.l.b16 %v947
  %v1037 = vunpack.c.h.b16 %v947
  %v1038 = vunpack.c.l.b16 %v948
  %v1039 = vunpack.c.h.b16 %v948
  %v1040 = vunpack.c.l.b16 %v949
  %v1041 = vunpack.c.h.b16 %v949
  %v1042 = vunpack.c.l.b16 %v950
  %v1043 = vunpack.c.h.b16 %v950
  %v1044 = vunpack.c.l.b16 %v951
  %v1045 = vunpack.c.h.b16 %v951
  %v1046 = vunpack.c.l.b16 %v952
  %v1047 = vunpack.c.h.b16 %v952
  %v1048 = vunpack.c.l.b16 %v953
  %v1049 = vunpack.c.h.b16 %v953
  %v1050 = vunpack.c.l.b16 %v954
  %v1051 = vunpack.c.h.b16 %v954
  %v1052 = vunpack.c.l.b16 %v955
  %v1053 = vunpack.c.h.b16 %v955
  %v1054 = vunpack.c.l.b16 %v956
  %v1055 = vunpack.c.h.b16 %v956
  %v1056 = vunpack.c.l.b16 %v957
  %v1057 = vunpack.c.h.b16 %v957
  %v1058 = vunpack.c.l.b16 %v958
  %v1059 = vunpack.c.h.b16 %v958
  %v1060 = vunpack.c.l.b16 %v959
  %v1061 = vunpack.c.h.b16 %v959
  %v1062 = vunpack.c.l.b16 %v960
  %v1063 = vunpack.c.h.b16 %v960
  %v1064 = vunpack.c.l.b16 %v961
  %v1065 = vunpack.c.h.b16 %v961
  %v1066 = vunpack.c.l.b16 %v962
  %v1067 = vunpack.c.h.b16 %v962
  %v1068 = vunpack.c.l.b16 %v963
  %v1069 = vunpack.c.h.b16 %v963
  %v1070 = vunpack.c.l.b16 %v964
  %v1071 = vunpack.c.h.b16 %v964
  %v1072 = vunpack.c.l.b16 %v965
  %v1073 = vunpack.c.h.b16 %v965
  %v1074 = vunpack.c.l.b16 %v966
  %v1075 = vunpack.c.h.b16 %v966
  %v1076 = vunpack.c.l.b16 %v967
  %v1077 = vunpack.c.h.b16 %v967
  %v1078 = vunpack.c.l.b16 %v968
  %v1079 = vunpack.c.h.b16 %v968
  %v1080 = vunpack.c.l.b16 %v969
  %v1081 = vunpack.c.h.b16 %v969
  %v1082 = vunpack.c.l.b16 %v970
  %v1083 = vunpack.c.h.b16 %v970
  %v1084 = vunpack.c.l.b16 %v971
  %v1085 = vunpack.c.h.b16 %v971
  %v1086 = vunpack.c.l.b16 %v972
  %v1087 = vunpack.c.h.b16 %v972
  %v1088 = vunpack.c.l.b16 %v973
  %v1089 = vunpack.c.h.b16 %v973
  %v1090 = vunpack.c.l.b16 %v974
  %v1091 = vunpack.c.h.b16 %v974
  %v1092 = vunpack.c.l.b16 %v975
  %v1093 = vunpack.c.h.b16 %v975
  %v1094 = vpack.c.b16 %v1034, %v1030
  %v1095 = vpack.c.b16 %v1035, %v1031
  %v1096 = vpack.c.b16 %v1036, %v1032
  %v1097 = vpack.c.b16 %v1037, %v1033
  %v1098 = vpack.c.b16 %v1042, %v1038
  %v1099 = vpack.c.b16 %v1043, %v1039
  %v1100 = vpack.c.b16 %v1044, %v1040
  %v1101 = vpack.c.b16 %v1045, %v1041
  %v1102 = vpack.c.b16 %v1050, %v1046
  %v1103 = vpack.c.b16 %v1051, %v1047
  %v1104 = vpack.c.b16 %v1052, %v1048
  %v1105 = vpack.c.b16 %v1053, %v1049
  %v1106 = vpack.c.b16 %v1058, %v1054
  %v1107 = vpack.c.b16 %v1059, %v1055
  %v1108 = vpack.c.b16 %v1060, %v1056
  %v1109 = vpack.c.b16 %v1061, %v1057
  %v1110 = vpack.c.b16 %v1066, %v1062
  %v1111 = vpack.c.b16 %v1067, %v1063
  %v1112 = vpack.c.b16 %v1068, %v1064
  %v1113 = vpack.c.b16 %v1069, %v1065
  %v1114 = vpack.c.b16 %v1074, %v1070
  %v1115 = vpack.c.b16 %v1075, %v1071
  %v1116 = vpack.c.b16 %v1076, %v1072
  %v1117 = vpack.c.b16 %v1077, %v1073
  %v1118 = vpack.c.b16 %v1082, %v1078
  %v1119 = vpack.c.b16 %v1083, %v1079
  %v1120 = vpack.c.b16 %v1084, %v1080
  %v1121 = vpack.c.b16 %v1085, %v1081
  %v1122 = vpack.c.b16 %v1090, %v1086
  %v1123 = vpack.c.b16 %v1091, %v1087
  %v1124 = vpack.c.b16 %v1092, %v1088
  %v1125 = vpack.c.b16 %v1093, %v1089
  %1158 = vmatprep.subr.bf16.mxu0 %v1095
  %1159 = vmatpush1.bf16.msra.mxu0 %v1094
  %1160 = vmatprep.subr.bf16.mxu0 %v1099
  %1161 = vmatpush1.bf16.msra.mxu0 %v1098
  %1162 = vmatprep.subr.bf16.mxu0 %v1103
  %1163 = vmatpush1.bf16.msra.mxu0 %v1102
  %1164 = vmatprep.subr.bf16.mxu0 %v1107
  %1165 = vmatpush1.bf16.msra.mxu0 %v1106
  %1166 = vmatprep.subr.bf16.mxu0 %v1111
  %1167 = vmatpush1.bf16.msra.mxu0 %v1110
  %1168 = vmatprep.subr.bf16.mxu0 %v1115
  %1169 = vmatpush1.bf16.msra.mxu0 %v1114
  %1170 = vmatprep.subr.bf16.mxu0 %v1119
  %1171 = vmatpush1.bf16.msra.mxu0 %v1118
  %1172 = vmatprep.subr.bf16.mxu0 %v1123
  %1173 = vmatpush1.bf16.msra.mxu0 %v1122
  %1174 = vmatprep.subr.bf16.mxu0 0
  %1175 = vmatpush1.bf16.msra.mxu0 0
  %1176 = vmatprep.subr.bf16.mxu0 0
  %1177 = vmatpush1.bf16.msra.mxu0 0
  %1178 = vmatprep.subr.bf16.mxu0 0
  %1179 = vmatpush1.bf16.msra.mxu0 0
  %1180 = vmatprep.subr.bf16.mxu0 0
  %1181 = vmatpush1.bf16.msra.mxu0 0
  %1182 = vmatprep.subr.bf16.mxu0 0
  %1183 = vmatpush1.bf16.msra.mxu0 0
  %1184 = vmatprep.subr.bf16.mxu0 0
  %1185 = vmatpush1.bf16.msra.mxu0 0
  %1186 = vmatprep.subr.bf16.mxu0 0
  %1187 = vmatpush1.bf16.msra.mxu0 0
  %1188 = vmatprep.subr.bf16.mxu0 0
  %1189 = vmatpush1.bf16.msra.mxu0 0
  %1190 = vmatprep.mubr.bf16.mxu0 0
  %1191 = vmatmul.mubr.bf16.gmra.mrb[0].mxu0 %v943
  %v1192 = vpop.f32.mrb[0].mxu0
  %v1193 = vadd.f32 %v981, %v1192
  %v1194 = vpop.f32.mrb[0].mxu0
  %v1195 = vadd.f32 %v985, %v1194
  %v1196 = vpop.f32.mrb[0].mxu0
  %v1197 = vadd.f32 %v981, %v1196
  %v1198 = vpop.f32.mrb[0].mxu0
  %v1199 = vadd.f32 %v985, %v1198
  %1200 = vdwg.mxu0
  %1201 = vmatprep.subr.bf16.mxu0 %v1097
  %1202 = vmatpush1.bf16.msra.mxu0 %v1096
  %1203 = vmatprep.subr.bf16.mxu0 %v1101
  %1204 = vmatpush1.bf16.msra.mxu0 %v1100
  %1205 = vmatprep.subr.bf16.mxu0 %v1105
  %1206 = vmatpush1.bf16.msra.mxu0 %v1104
  %1207 = vmatprep.subr.bf16.mxu0 %v1109
  %1208 = vmatpush1.bf16.msra.mxu0 %v1108
  %1209 = vmatprep.subr.bf16.mxu0 %v1113
  %1210 = vmatpush1.bf16.msra.mxu0 %v1112
  %1211 = vmatprep.subr.bf16.mxu0 %v1117
  %1212 = vmatpush1.bf16.msra.mxu0 %v1116
  %1213 = vmatprep.subr.bf16.mxu0 %v1121
  %1214 = vmatpush1.bf16.msra.mxu0 %v1120
  %1215 = vmatprep.subr.bf16.mxu0 %v1125
  %1216 = vmatpush1.bf16.msra.mxu0 %v1124
  %1217 = vmatprep.subr.bf16.mxu0 0
  %1218 = vmatpush1.bf16.msra.mxu0 0
  %1219 = vmatprep.subr.bf16.mxu0 0
  %1220 = vmatpush1.bf16.msra.mxu0 0
  %1221 = vmatprep.subr.bf16.mxu0 0
  %1222 = vmatpush1.bf16.msra.mxu0 0
  %1223 = vmatprep.subr.bf16.mxu0 0
  %1224 = vmatpush1.bf16.msra.mxu0 0
  %1225 = vmatprep.subr.bf16.mxu0 0
  %1226 = vmatpush1.bf16.msra.mxu0 0
  %1227 = vmatprep.subr.bf16.mxu0 0
  %1228 = vmatpush1.bf16.msra.mxu0 0
  %1229 = vmatprep.subr.bf16.mxu0 0
  %1230 = vmatpush1.bf16.msra.mxu0 0
  %1231 = vmatprep.subr.bf16.mxu0 0
  %1232 = vmatpush1.bf16.msra.mxu0 0
  %1233 = vmatprep.mubr.bf16.mxu0 0
  %1234 = vmatmul.mubr.bf16.gmra.mrb[0].mxu0 %v943
  %v1235 = vpop.f32.mrb[0].mxu0
  %v1236 = vadd.f32 %v989, %v1235
  %v1237 = vpop.f32.mrb[0].mxu0
  %v1238 = vadd.f32 %v993, %v1237
  %v1239 = vpop.f32.mrb[0].mxu0
  %v1240 = vadd.f32 %v989, %v1239
  %v1241 = vpop.f32.mrb[0].mxu0
  %v1242 = vadd.f32 %v993, %v1241
  %1243 = vdwg.mxu0
  %v1244 = vmul.f32 %v1193, 0.5
  %v1245 = vmul.f32 %v1195, 0.5
  %v1246 = vmul.f32 %v1236, 0.5
  %v1247 = vmul.f32 %v1238, 0.5
  %v1248 = vmul.f32 %v1197, 0.5
  %v1249 = vmul.f32 %v1199, 0.5
  %v1250 = vmul.f32 %v1240, 0.5
  %v1251 = vmul.f32 %v1242, 0.5
  %v1252 = vmul.f32 %v1193, 0.044715
  %v1253 = vmul.f32 %v1195, 0.044715
  %v1254 = vmul.f32 %v1236, 0.044715
  %v1255 = vmul.f32 %v1238, 0.044715
  %v1256 = vmul.f32 %v1197, 0.044715
  %v1257 = vmul.f32 %v1199, 0.044715
  %v1258 = vmul.f32 %v1240, 0.044715
  %v1259 = vmul.f32 %v1242, 0.044715
  %v1260 = vmul.f32 %v1252, %v1193
  %v1261 = vmul.f32 %v1253, %v1195
  %v1262 = vmul.f32 %v1254, %v1236
  %v1263 = vmul.f32 %v1255, %v1238
  %v1264 = vmul.f32 %v1256, %v1197
  %v1265 = vmul.f32 %v1257, %v1199
  %v1266 = vmul.f32 %v1258, %v1240
  %v1267 = vmul.f32 %v1259, %v1242
  %v1268 = vmul.f32 %v1260, %v1193
  %v1269 = vmul.f32 %v1261, %v1195
  %v1270 = vmul.f32 %v1262, %v1236
  %v1271 = vmul.f32 %v1263, %v1238
  %v1272 = vmul.f32 %v1264, %v1197
  %v1273 = vmul.f32 %v1265, %v1199
  %v1274 = vmul.f32 %v1266, %v1240
  %v1275 = vmul.f32 %v1267, %v1242
  %v1276 = vadd.f32 %v1193, %v1268
  %v1277 = vadd.f32 %v1195, %v1269
  %v1278 = vadd.f32 %v1236, %v1270
  %v1279 = vadd.f32 %v1238, %v1271
  %v1280 = vadd.f32 %v1197, %v1272
  %v1281 = vadd.f32 %v1199, %v1273
  %v1282 = vadd.f32 %v1240, %v1274
  %v1283 = vadd.f32 %v1242, %v1275
  %v1284 = vmul.f32 %v1276, 0.7978846
  %v1285 = vmul.f32 %v1277, 0.7978846
  %v1286 = vmul.f32 %v1278, 0.7978846
  %v1287 = vmul.f32 %v1279, 0.7978846
  %v1288 = vmul.f32 %v1280, 0.7978846
  %v1289 = vmul.f32 %v1281, 0.7978846
  %v1290 = vmul.f32 %v1282, 0.7978846
  %v1291 = vmul.f32 %v1283, 0.7978846
  %v1292 = vtanh.pop %v1284
  %v1293 = vtanh.pop %v1285
  %v1294 = vtanh.pop %v1286
  %v1295 = vtanh.pop %v1287
  %v1296 = vtanh.pop %v1288
  %v1297 = vtanh.pop %v1289
  %v1298 = vtanh.pop %v1290
  %v1299 = vtanh.pop %v1291
  %v1300 = vadd.f32 %v1292, 1.0
  %v1301 = vadd.f32 %v1293, 1.0
  %v1302 = vadd.f32 %v1294, 1.0
  %v1303 = vadd.f32 %v1295, 1.0
  %v1304 = vadd.f32 %v1296, 1.0
  %v1305 = vadd.f32 %v1297, 1.0
  %v1306 = vadd.f32 %v1298, 1.0
  %v1307 = vadd.f32 %v1299, 1.0
  %v1308 = vmul.f32 %v1244, %v1300
  %v1309 = vmul.f32 %v1245, %v1301
  %v1310 = vmul.f32 %v1246, %v1302
  %v1311 = vmul.f32 %v1247, %v1303
  %v1312 = vmul.f32 %v1248, %v1304
  %v1313 = vmul.f32 %v1249, %v1305
  %v1314 = vmul.f32 %v1250, %v1306
  %v1315 = vmul.f32 %v1251, %v1307
  %v1316 = vpack.c.bf16 %v1312, %v1308
  %v1317 = vpack.c.bf16 %v1313, %v1309
  %v1318 = vpack.c.bf16 %v1314, %v1310
  %v1319 = vpack.c.bf16 %v1315, %v1311
  %v1320 = vld [vmem:[%s10] sm:$0xf]
  %v1321 = vld [vmem:[%s10 + $0x4] sm:$0xf]
  %v1322 = vld [vmem:[%s10 + $0x8] sm:$0xf]
  %v1323 = vld [vmem:[%s10 + $0xc] sm:$0xf]
  %v1324 = vld [vmem:[%s10 + $0x10] sm:$0xf]
  %v1325 = vld [vmem:[%s10 + $0x14] sm:$0xf]
  %v1326 = vld [vmem:[%s10 + $0x18] sm:$0xf]
  %v1327 = vld [vmem:[%s10 + $0x1c] sm:$0xf]
  %v1328 = vld [vmem:[%s10 + $0x20] sm:$0xf]
  %v1329 = vld [vmem:[%s10 + $0x24] sm:$0xf]
  %v1330 = vld [vmem:[%s10 + $0x28] sm:$0xf]
  %v1331 = vld [vmem:[%s10 + $0x2c] sm:$0xf]
  %v1332 = vld [vmem:[%s10 + $0x30] sm:$0xf]
  %v1333 = vld [vmem:[%s10 + $0x34] sm:$0xf]
  %v1334 = vld [vmem:[%s10 + $0x38] sm:$0xf]
  %v1335 = vld [vmem:[%s10 + $0x3c] sm:$0xf]
  %v1336 = vld [vmem:[%s10 + $0x40] sm:$0xf]
  %v1337 = vld [vmem:[%s10 + $0x44] sm:$0xf]
  %v1338 = vld [vmem:[%s10 + $0x48] sm:$0xf]
  %v1339 = vld [vmem:[%s10 + $0x4c] sm:$0xf]
  %v1340 = vld [vmem:[%s10 + $0x50] sm:$0xf]
  %v1341 = vld [vmem:[%s10 + $0x54] sm:$0xf]
  %v1342 = vld [vmem:[%s10 + $0x58] sm:$0xf]
  %v1343 = vld [vmem:[%s10 + $0x5c] sm:$0xf]
  %v1344 = vld [vmem:[%s10 + $0x60] sm:$0xf]
  %v1345 = vld [vmem:[%s10 + $0x64] sm:$0xf]
  %v1346 = vld [vmem:[%s10 + $0x68] sm:$0xf]
  %v1347 = vld [vmem:[%s10 + $0x6c] sm:$0xf]
  %v1348 = vld [vmem:[%s10 + $0x70] sm:$0xf]
  %v1349 = vld [vmem:[%s10 + $0x74] sm:$0xf]
  %v1350 = vld [vmem:[%s10 + $0x78] sm:$0xf]
  %v1351 = vld [vmem:[%s10 + $0x7c] sm:$0xf]
  %v1352 = vld [vmem:[%s10 + $0x80] sm:$0xf]
  %v1353 = vld [vmem:[%s10 + $0x84] sm:$0xf]
  %v1354 = vld [vmem:[%s10 + $0x88] sm:$0xf]
  %v1355 = vld [vmem:[%s10 + $0x8c] sm:$0xf]
  %v1356 = vld [vmem:[%s10 + $0x90] sm:$0xf]
  %v1357 = vld [vmem:[%s10 + $0x94] sm:$0xf]
  %v1358 = vld [vmem:[%s10 + $0x98] sm:$0xf]
  %v1359 = vld [vmem:[%s10 + $0x9c] sm:$0xf]
  %v1360 = vld [vmem:[%s10 + $0xa0] sm:$0xf]
  %v1361 = vld [vmem:[%s10 + $0xa4] sm:$0xf]
  %v1362 = vld [vmem:[%s10 + $0xa8] sm:$0xf]
  %v1363 = vld [vmem:[%s10 + $0xac] sm:$0xf]
  %v1364 = vld [vmem:[%s10 + $0xb0] sm:$0xf]
  %v1365 = vld [vmem:[%s10 + $0xb4] sm:$0xf]
  %v1366 = vld [vmem:[%s10 + $0xb8] sm:$0xf]
  %v1367 = vld [vmem:[%s10 + $0xbc] sm:$0xf]
  %v1368 = vld [vmem:[%s10 + $0xc0] sm:$0xf]
  %v1369 = vld [vmem:[%s10 + $0xc4] sm:$0xf]
  %v1370 = vld [vmem:[%s10 + $0xc8] sm:$0xf]
  %v1371 = vld [vmem:[%s10 + $0xcc] sm:$0xf]
  %v1372 = vld [vmem:[%s10 + $0xd0] sm:$0xf]
  %v1373 = vld [vmem:[%s10 + $0xd4] sm:$0xf]
  %v1374 = vld [vmem:[%s10 + $0xd8] sm:$0xf]
  %v1375 = vld [vmem:[%s10 + $0xdc] sm:$0xf]
  %v1376 = vld [vmem:[%s10 + $0xe0] sm:$0xf]
  %v1377 = vld [vmem:[%s10 + $0xe4] sm:$0xf]
  %v1378 = vld [vmem:[%s10 + $0xe8] sm:$0xf]
  %v1379 = vld [vmem:[%s10 + $0xec] sm:$0xf]
  %v1380 = vld [vmem:[%s10 + $0xf0] sm:$0xf]
  %v1381 = vld [vmem:[%s10 + $0xf4] sm:$0xf]
  %v1382 = vld [vmem:[%s10 + $0xf8] sm:$0xf]
  %v1383 = vld [vmem:[%s10 + $0xfc] sm:$0xf]
  %v1384 = vld [vmem:[%s11] sm:$0x1]
  %v1386 = vlaneseq
  %v1387 = vshrl.u32 %v1386, 7
  %v1388 = vsub.s32 0, %v1387
  %v1389 = vrot.slane %v1384, %v1388
  %v1455 = vunpack.c.l.b16 %v1320
  %v1456 = vunpack.c.l.b16 %v1321
  %v1457 = vunpack.c.l.b16 %v1322
  %v1458 = vunpack.c.l.b16 %v1323
  %v1459 = vunpack.c.l.b16 %v1324
  %v1460 = vunpack.c.l.b16 %v1325
  %v1461 = vunpack.c.l.b16 %v1326
  %v1462 = vunpack.c.l.b16 %v1327
  %v1463 = vunpack.c.l.b16 %v1328
  %v1464 = vunpack.c.l.b16 %v1329
  %v1465 = vunpack.c.l.b16 %v1330
  %v1466 = vunpack.c.l.b16 %v1331
  %v1467 = vunpack.c.l.b16 %v1332
  %v1468 = vunpack.c.l.b16 %v1333
  %v1469 = vunpack.c.l.b16 %v1334
  %v1470 = vunpack.c.l.b16 %v1335
  %v1471 = vunpack.c.l.b16 %v1336
  %v1472 = vunpack.c.l.b16 %v1337
  %v1473 = vunpack.c.l.b16 %v1338
  %v1474 = vunpack.c.l.b16 %v1339
  %v1475 = vunpack.c.l.b16 %v1340
  %v1476 = vunpack.c.l.b16 %v1341
  %v1477 = vunpack.c.l.b16 %v1342
  %v1478 = vunpack.c.l.b16 %v1343
  %v1479 = vunpack.c.l.b16 %v1344
  %v1480 = vunpack.c.l.b16 %v1345
  %v1481 = vunpack.c.l.b16 %v1346
  %v1482 = vunpack.c.l.b16 %v1347
  %v1483 = vunpack.c.l.b16 %v1348
  %v1484 = vunpack.c.l.b16 %v1349
  %v1485 = vunpack.c.l.b16 %v1350
  %v1486 = vunpack.c.l.b16 %v1351
  %v1487 = vunpack.c.l.b16 %v1352
  %v1488 = vunpack.c.l.b16 %v1353
  %v1489 = vunpack.c.l.b16 %v1354
  %v1490 = vunpack.c.l.b16 %v1355
  %v1491 = vunpack.c.l.b16 %v1356
  %v1492 = vunpack.c.l.b16 %v1357
  %v1493 = vunpack.c.l.b16 %v1358
  %v1494 = vunpack.c.l.b16 %v1359
  %v1495 = vunpack.c.l.b16 %v1360
  %v1496 = vunpack.c.l.b16 %v1361
  %v1497 = vunpack.c.l.b16 %v1362
  %v1498 = vunpack.c.l.b16 %v1363
  %v1499 = vunpack.c.l.b16 %v1364
  %v1500 = vunpack.c.l.b16 %v1365
  %v1501 = vunpack.c.l.b16 %v1366
  %v1502 = vunpack.c.l.b16 %v1367
  %v1503 = vunpack.c.l.b16 %v1368
  %v1504 = vunpack.c.l.b16 %v1369
  %v1505 = vunpack.c.l.b16 %v1370
  %v1506 = vunpack.c.l.b16 %v1371
  %v1507 = vunpack.c.l.b16 %v1372
  %v1508 = vunpack.c.l.b16 %v1373
  %v1509 = vunpack.c.l.b16 %v1374
  %v1510 = vunpack.c.l.b16 %v1375
  %v1511 = vunpack.c.l.b16 %v1376
  %v1512 = vunpack.c.l.b16 %v1377
  %v1513 = vunpack.c.l.b16 %v1378
  %v1514 = vunpack.c.l.b16 %v1379
  %v1515 = vunpack.c.l.b16 %v1380
  %v1516 = vunpack.c.l.b16 %v1381
  %v1517 = vunpack.c.l.b16 %v1382
  %v1518 = vunpack.c.l.b16 %v1383
  %v1519 = vpack.c.b16 %v1456, %v1455
  %v1520 = vpack.c.b16 %v1458, %v1457
  %v1521 = vpack.c.b16 %v1460, %v1459
  %v1522 = vpack.c.b16 %v1462, %v1461
  %v1523 = vpack.c.b16 %v1464, %v1463
  %v1524 = vpack.c.b16 %v1466, %v1465
  %v1525 = vpack.c.b16 %v1468, %v1467
  %v1526 = vpack.c.b16 %v1470, %v1469
  %v1527 = vpack.c.b16 %v1472, %v1471
  %v1528 = vpack.c.b16 %v1474, %v1473
  %v1529 = vpack.c.b16 %v1476, %v1475
  %v1530 = vpack.c.b16 %v1478, %v1477
  %v1531 = vpack.c.b16 %v1480, %v1479
  %v1532 = vpack.c.b16 %v1482, %v1481
  %v1533 = vpack.c.b16 %v1484, %v1483
  %v1534 = vpack.c.b16 %v1486, %v1485
  %v1535 = vpack.c.b16 %v1488, %v1487
  %v1536 = vpack.c.b16 %v1490, %v1489
  %v1537 = vpack.c.b16 %v1492, %v1491
  %v1538 = vpack.c.b16 %v1494, %v1493
  %v1539 = vpack.c.b16 %v1496, %v1495
  %v1540 = vpack.c.b16 %v1498, %v1497
  %v1541 = vpack.c.b16 %v1500, %v1499
  %v1542 = vpack.c.b16 %v1502, %v1501
  %v1543 = vpack.c.b16 %v1504, %v1503
  %v1544 = vpack.c.b16 %v1506, %v1505
  %v1545 = vpack.c.b16 %v1508, %v1507
  %v1546 = vpack.c.b16 %v1510, %v1509
  %v1547 = vpack.c.b16 %v1512, %v1511
  %v1548 = vpack.c.b16 %v1514, %v1513
  %v1549 = vpack.c.b16 %v1516, %v1515
  %v1550 = vpack.c.b16 %v1518, %v1517
  %1583 = vmatprep.subr.bf16.mxu0 0
  %1584 = vmatpush1.bf16.msra.mxu0 %v1519
  %1585 = vmatprep.subr.bf16.mxu0 0
  %1586 = vmatpush1.bf16.msra.mxu0 %v1520
  %1587 = vmatprep.subr.bf16.mxu0 0
  %1588 = vmatpush1.bf16.msra.mxu0 %v1521
  %1589 = vmatprep.subr.bf16.mxu0 0
  %1590 = vmatpush1.bf16.msra.mxu0 %v1522
  %1591 = vmatprep.subr.bf16.mxu0 0
  %1592 = vmatpush1.bf16.msra.mxu0 %v1523
  %1593 = vmatprep.subr.bf16.mxu0 0
  %1594 = vmatpush1.bf16.msra.mxu0 %v1524
  %1595 = vmatprep.subr.bf16.mxu0 0
  %1596 = vmatpush1.bf16.msra.mxu0 %v1525
  %1597 = vmatprep.subr.bf16.mxu0 0
  %1598 = vmatpush1.bf16.msra.mxu0 %v1526
  %1599 = vmatprep.subr.bf16.mxu0 0
  %1600 = vmatpush1.bf16.msra.mxu0 %v1527
  %1601 = vmatprep.subr.bf16.mxu0 0
  %1602 = vmatpush1.bf16.msra.mxu0 %v1528
  %1603 = vmatprep.subr.bf16.mxu0 0
  %1604 = vmatpush1.bf16.msra.mxu0 %v1529
  %1605 = vmatprep.subr.bf16.mxu0 0
  %1606 = vmatpush1.bf16.msra.mxu0 %v1530
  %1607 = vmatprep.subr.bf16.mxu0 0
  %1608 = vmatpush1.bf16.msra.mxu0 %v1531
  %1609 = vmatprep.subr.bf16.mxu0 0
  %1610 = vmatpush1.bf16.msra.mxu0 %v1532
  %1611 = vmatprep.subr.bf16.mxu0 0
  %1612 = vmatpush1.bf16.msra.mxu0 %v1533
  %1613 = vmatprep.subr.bf16.mxu0 0
  %1614 = vmatpush1.bf16.msra.mxu0 %v1534
  %1615 = vmatprep.mubr.bf16.mxu0 %v1317
  %1616 = vmatmul.mubr.bf16.gmra.mrb[0].mxu0 %v1316
  %v1617 = vpop.f32.mrb[0].mxu0
  %v1618 = vadd.f32 %v1389, %v1617
  %v1619 = vpop.f32.mrb[0].mxu0
  %v1620 = vpop.f32.mrb[0].mxu0
  %v1621 = vadd.f32 %v1389, %v1620
  %v1622 = vpop.f32.mrb[0].mxu0
  %1623 = vdwg.mxu0
  %1624 = vmatprep.subr.bf16.mxu0 0
  %1625 = vmatpush1.bf16.msra.mxu0 %v1535
  %1626 = vmatprep.subr.bf16.mxu0 0
  %1627 = vmatpush1.bf16.msra.mxu0 %v1536
  %1628 = vmatprep.subr.bf16.mxu0 0
  %1629 = vmatpush1.bf16.msra.mxu0 %v1537
  %1630 = vmatprep.subr.bf16.mxu0 0
  %1631 = vmatpush1.bf16.msra.mxu0 %v1538
  %1632 = vmatprep.subr.bf16.mxu0 0
  %1633 = vmatpush1.bf16.msra.mxu0 %v1539
  %1634 = vmatprep.subr.bf16.mxu0 0
  %1635 = vmatpush1.bf16.msra.mxu0 %v1540
  %1636 = vmatprep.subr.bf16.mxu0 0
  %1637 = vmatpush1.bf16.msra.mxu0 %v1541
  %1638 = vmatprep.subr.bf16.mxu0 0
  %1639 = vmatpush1.bf16.msra.mxu0 %v1542
  %1640 = vmatprep.subr.bf16.mxu0 0
  %1641 = vmatpush1.bf16.msra.mxu0 %v1543
  %1642 = vmatprep.subr.bf16.mxu0 0
  %1643 = vmatpush1.bf16.msra.mxu0 %v1544
  %1644 = vmatprep.subr.bf16.mxu0 0
  %1645 = vmatpush1.bf16.msra.mxu0 %v1545
  %1646 = vmatprep.subr.bf16.mxu0 0
  %1647 = vmatpush1.bf16.msra.mxu0 %v1546
  %1648 = vmatprep.subr.bf16.mxu0 0
  %1649 = vmatpush1.bf16.msra.mxu0 %v1547
  %1650 = vmatprep.subr.bf16.mxu0 0
  %1651 = vmatpush1.bf16.msra.mxu0 %v1548
  %1652 = vmatprep.subr.bf16.mxu0 0
  %1653 = vmatpush1.bf16.msra.mxu0 %v1549
  %1654 = vmatprep.subr.bf16.mxu0 0
  %1655 = vmatpush1.bf16.msra.mxu0 %v1550
  %1656 = vmatprep.mubr.bf16.mxu0 %v1319
  %1657 = vmatmul.mubr.bf16.gmra.mrb[0].mxu0 %v1318
  %v1658 = vpop.f32.mrb[0].mxu0
  %v1659 = vadd.f32 %v1618, %v1658
  %v1660 = vpop.f32.mrb[0].mxu0
  %v1661 = vpop.f32.mrb[0].mxu0
  %v1662 = vadd.f32 %v1621, %v1661
  %v1663 = vpop.f32.mrb[0].mxu0
  %1664 = vdwg.mxu0
  %v1665 = vadd.f32 %v1659, %v941
  %v1666 = vadd.f32 %v1662, %v942
  %v1667 = vld [vmem:[%s12] sm:$0x1]
  %v1668 = vld [vmem:[%s13] sm:$0x1]
  %1669 = vadd.xlane.f32.xlu0 %v1665
  %v1670 = vpop.xlane.xlu0 %1669
  %1671 = vadd.xlane.f32.xlu0 %v1666
  %v1672 = vpop.xlane.xlu0 %1671
  %v1673 = vmul.f32 %v1670, %v908
  %v1674 = vmul.f32 %v1672, %v908
  %v1675 = vsub.f32 %v1665, %v1673
  %v1676 = vsub.f32 %v1666, %v1674
  %v1677 = vmul.f32 %v1675, %v1675
  %v1678 = vmul.f32 %v1676, %v1676
  %1679 = vadd.xlane.f32.xlu0 %v1677
  %v1680 = vpop.xlane.xlu0 %1679
  %1681 = vadd.xlane.f32.xlu0 %v1678
  %v1682 = vpop.xlane.xlu0 %1681
  %v1683 = vmul.f32 %v1680, %v908
  %v1684 = vmul.f32 %v1682, %v908
  %v1685 = vadd.f32 %v1683, 1e-12
  %v1686 = vadd.f32 %v1684, 1e-12
  %v1687 = vrsqrt.pop %v1685
  %v1688 = vrsqrt.pop %v1686
  %v1689 = vmul.f32 %v1675, %v1687
  %v1690 = vmul.f32 %v1676, %v1688
  %v1692 = vlaneseq
  %v1693 = vshrl.u32 %v1692, 7
  %v1694 = vsub.s32 0, %v1693
  %v1695 = vrot.slane %v1667, %v1694
  %v1697 = vmul.f32 %v1689, %v1695
  %v1698 = vmul.f32 %v1690, %v1695
  %v1700 = vlaneseq
  %v1701 = vshrl.u32 %v1700, 7
  %v1702 = vsub.s32 0, %v1701
  %v1703 = vrot.slane %v1668, %v1702
  %v1705 = vadd.f32 %v1697, %v1703
  %v1706 = vadd.f32 %v1698, %v1703
  %1707 = vst [vmem:[%s14] sm:$0xff] %v1705
  %1708 = vst [vmem:[%s14 + $0x8] sm:$0xff] %v1706
  // Predicated region
  $region58: #{bert_classifier_forward.6} parent=0 // pred_check
    _
  $region59: #{bert_classifier_forward.6} parent=0 // pred_check_branch
    %1710 = sbr.rel (0) target = $region61
  $region60: #{bert_classifier_forward.6} parent=0 // pred_region
    _
  $region61: #{bert_classifier_forward.6} parent=0 // pred_fallthru
    _
  // Predicated region
  $region62: #{bert_classifier_forward.6} parent=0 // pred_check
    _
  $region63: #{bert_classifier_forward.6} parent=0 // pred_check_branch
    %1712 = sbr.rel (0) target = $region65
  $region64: #{bert_classifier_forward.6} parent=0 // pred_region
    _
  $region65: #{bert_classifier_forward.6} parent=0 // pred_fallthru
    _

// kernel: bert_classifier_forward.5
$region0: #{bert_classifier_forward.5}
  #allocation0 [shape = 'u32[]', space=smem, size = 0x4, offset = 0x4, fixed_abs, tag = 'smem constant byte address 0x4 - core index']
  #allocation1 [shape = 'u32[144,128]{1,0:T(1,128)}', space=vmem, size = 0x12000, scoped, tag = 'internal scratch']
  #allocation2 [shape = 'f32[16,128]{1,0:T(8,128)}', space=vmem, size = 0x2000, scoped, tag = 'scratch operand']
  %s0 = inlined_call_operand.vmem [shape: f32[16,128], index: 0, kind: input, shape index: {}]
  %s1 = inlined_call_operand.vmem [shape: f32[2,8], index: 1, kind: input, shape index: {}]
  %s2 = inlined_call_operand.vmem [shape: bf16[128,384], index: 2, kind: input, shape index: {}]
  %s3 = inlined_call_operand.vmem [shape: f32[1,384], index: 3, kind: input, shape index: {}]
  %s4 = inlined_call_operand.hbm [shape: bf16[128,128], index: 4, kind: input, shape index: {}]
  %s5 = inlined_call_operand.hbm [shape: f32[1,128], index: 5, kind: input, shape index: {}]
  %s6 = inlined_call_operand.vmem [shape: f32[1,128], index: 6, kind: input, shape index: {}]
  %s7 = inlined_call_operand.hbm [shape: f32[1,128], index: 7, kind: input, shape index: {}]
  %s8 = inlined_call_operand.vmem [shape: bf16[128,512], index: 8, kind: input, shape index: {}]
  %s9 = inlined_call_operand.hbm [shape: f32[1,512], index: 9, kind: input, shape index: {}]
  %s10 = inlined_call_operand.hbm [shape: bf16[512,128], index: 10, kind: input, shape index: {}]
  %s11 = inlined_call_operand.hbm [shape: f32[1,128], index: 11, kind: input, shape index: {}]
  %s12 = inlined_call_operand.vmem [shape: f32[1,128], index: 12, kind: input, shape index: {}]
  %s13 = inlined_call_operand.hbm [shape: f32[1,128], index: 13, kind: input, shape index: {}]
  %s14 = inlined_call_operand.vmem [shape: f32[16,128], index: 14, kind: output, shape index: {}]
  %s15 = sld [smem:[#allocation0]]
  $region94: #{bert_classifier_forward.5} parent=0
    _
  %s17 = ssub.s32 1, %s15
  %s18 = scalar_select 0, %s17, %s15
  $region1: #{bert_classifier_forward.5} parent=0
    #allocation3 [shape = 'u8[32768]{0}', space=vmem, size = 0x8000, scoped, tag = 'input window, operand 4, single buffered']
    #allocation4 [shape = 's32[1]{0}', space=sflag, size = 0x4, scoped, tag = 'scoped memory for bert_classifier_forward.5']
    #allocation5 [shape = 'u8[512]{0}', space=vmem, size = 0x400, scoped, tag = 'input window, operand 5, single buffered']
    #allocation6 [shape = 's32[1]{0}', space=sflag, size = 0x4, scoped, tag = 'scoped memory for bert_classifier_forward.5']
    #allocation7 [shape = 'u8[512]{0}', space=vmem, size = 0x400, scoped, tag = 'input window, operand 7, single buffered']
    #allocation8 [shape = 'u8[2048]{0}', space=vmem, size = 0x800, scoped, tag = 'input window, operand 9, single buffered']
    #allocation9 [shape = 's32[1]{0}', space=sflag, size = 0x4, scoped, tag = 'scoped memory for bert_classifier_forward.5']
    #allocation10 [shape = 'u8[131072]{0}', space=vmem, size = 0x20000, scoped, tag = 'input window, operand 10, single buffered']
    #allocation11 [shape = 'u8[512]{0}', space=vmem, size = 0x400, scoped, tag = 'input window, operand 11, single buffered']
    #allocation12 [shape = 's32[1]{0}', space=sflag, size = 0x4, scoped, tag = 'scoped memory for bert_classifier_forward.5']
    #allocation13 [shape = 'u8[512]{0}', space=vmem, size = 0x400, scoped, tag = 'input window, operand 13, single buffered']
    %19 = vsyncpa [#allocation4], 0
    %20 = vsyncpa [#allocation6], 0
    %21 = vsyncpa [#allocation9], 0
    %22 = vsyncpa [#allocation12], 0
    // Predicated region
    $region2: #{bert_classifier_forward.5} parent=1 // pred_check
      _
    $region3: #{bert_classifier_forward.5} parent=1 // pred_check_branch
      %24 = sbr.rel (0) target = $region5
    $region4: #{bert_classifier_forward.5} parent=1 // pred_region
      _
    $region5: #{bert_classifier_forward.5} parent=1 // pred_fallthru
      _
    // Predicated region
    $region6: #{bert_classifier_forward.5} parent=1 // pred_check
      _
    $region7: #{bert_classifier_forward.5} parent=1 // pred_check_branch
      %26 = sbr.rel (0) target = $region9
    $region8: #{bert_classifier_forward.5} parent=1 // pred_region
      _
    $region9: #{bert_classifier_forward.5} parent=1 // pred_fallthru
      _
    // Predicated region
    $region10: #{bert_classifier_forward.5} parent=1 // pred_check
      _
    $region11: #{bert_classifier_forward.5} parent=1 // pred_check_branch
      %28 = sbr.rel (0) target = $region13
    $region12: #{bert_classifier_forward.5} parent=1 // pred_region
      _
    $region13: #{bert_classifier_forward.5} parent=1 // pred_fallthru
      _
    // Predicated region
    $region14: #{bert_classifier_forward.5} parent=1 // pred_check
      _
    $region15: #{bert_classifier_forward.5} parent=1 // pred_check_branch
      %30 = sbr.rel (0) target = $region17
    $region16: #{bert_classifier_forward.5} parent=1 // pred_region
      _
    $region17: #{bert_classifier_forward.5} parent=1 // pred_fallthru
      _
    // Predicated region
    $region18: #{bert_classifier_forward.5} parent=1 // pred_check
      _
    $region19: #{bert_classifier_forward.5} parent=1 // pred_check_branch
      %32 = sbr.rel (0) target = $region21
    $region20: #{bert_classifier_forward.5} parent=1 // pred_region
      %s34 = ssub.s32 1024, 1024
      %35 = vsyncadd [#allocation4], %s34
      %s36 = sshll.u32 [#allocation3], 4
      %s37 = int_to_ptr.vmem [resolvable:$true] %s36
      %42 = dma.hbm_to_vmem [thread:$0]  %s4, 1024, %s37, [#allocation4], 64, 64, 4
    $region21: #{bert_classifier_forward.5} parent=1 // pred_fallthru
      _
    // Predicated region
    $region22: #{bert_classifier_forward.5} parent=1 // pred_check
      _
    $region23: #{bert_classifier_forward.5} parent=1 // pred_check_branch
      %44 = sbr.rel (0) target = $region25
    $region24: #{bert_classifier_forward.5} parent=1 // pred_region
      %s46 = ssub.s32 16, 16
      %47 = vsyncadd [#allocation6], %s46
      %s49 = sshll.u32 [#allocation5], 4
      %s50 = int_to_ptr.vmem [resolvable:$true] %s49
      %52 = dma.hbm_to_vmem [thread:$0]  %s5, 16, %s50, [#allocation6]
    $region25: #{bert_classifier_forward.5} parent=1 // pred_fallthru
      _
    // Predicated region
    $region26: #{bert_classifier_forward.5} parent=1 // pred_check
      _
    $region27: #{bert_classifier_forward.5} parent=1 // pred_check_branch
      %54 = sbr.rel (0) target = $region29
    $region28: #{bert_classifier_forward.5} parent=1 // pred_region
      _
    $region29: #{bert_classifier_forward.5} parent=1 // pred_fallthru
      _
    // Predicated region
    $region30: #{bert_classifier_forward.5} parent=1 // pred_check
      _
    $region31: #{bert_classifier_forward.5} parent=1 // pred_check_branch
      %56 = sbr.rel (0) target = $region33
    $region32: #{bert_classifier_forward.5} parent=1 // pred_region
      %s58 = ssub.s32 16, 16
      %59 = vsyncadd [#allocation6], %s58
      %s61 = sshll.u32 [#allocation7], 4
      %s62 = int_to_ptr.vmem [resolvable:$true] %s61
      %64 = dma.hbm_to_vmem [thread:$0]  %s7, 16, %s62, [#allocation6]
    $region33: #{bert_classifier_forward.5} parent=1 // pred_fallthru
      _
    // Predicated region
    $region34: #{bert_classifier_forward.5} parent=1 // pred_check
      _
    $region35: #{bert_classifier_forward.5} parent=1 // pred_check_branch
      %66 = sbr.rel (0) target = $region37
    $region36: #{bert_classifier_forward.5} parent=1 // pred_region
      _
    $region37: #{bert_classifier_forward.5} parent=1 // pred_fallthru
      _
    // Predicated region
    $region38: #{bert_classifier_forward.5} parent=1 // pred_check
      _
    $region39: #{bert_classifier_forward.5} parent=1 // pred_check_branch
      %68 = sbr.rel (0) target = $region41
    $region40: #{bert_classifier_forward.5} parent=1 // pred_region
      %s70 = ssub.s32 64, 64
      %71 = vsyncadd [#allocation9], %s70
      %s73 = sshll.u32 [#allocation8], 4
      %s74 = int_to_ptr.vmem [resolvable:$true] %s73
      %76 = dma.hbm_to_vmem [thread:$0]  %s9, 64, %s74, [#allocation9]
    $region41: #{bert_classifier_forward.5} parent=1 // pred_fallthru
      _
    // Predicated region
    $region42: #{bert_classifier_forward.5} parent=1 // pred_check
      _
    $region43: #{bert_classifier_forward.5} parent=1 // pred_check_branch
      %78 = sbr.rel (0) target = $region45
    $region44: #{bert_classifier_forward.5} parent=1 // pred_region
      %s80 = ssub.s32 4096, 4096
      %81 = vsyncadd [#allocation9], %s80
      %s82 = sshll.u32 [#allocation10], 4
      %s83 = int_to_ptr.vmem [resolvable:$true] %s82
      %88 = dma.hbm_to_vmem [thread:$0]  %s10, 4096, %s83, [#allocation9], 64, 64, 4
    $region45: #{bert_classifier_forward.5} parent=1 // pred_fallthru
      _
    // Predicated region
    $region46: #{bert_classifier_forward.5} parent=1 // pred_check
      _
    $region47: #{bert_classifier_forward.5} parent=1 // pred_check_branch
      %90 = sbr.rel (0) target = $region49
    $region48: #{bert_classifier_forward.5} parent=1 // pred_region
      %s92 = ssub.s32 16, 16
      %93 = vsyncadd [#allocation12], %s92
      %s95 = sshll.u32 [#allocation11], 4
      %s96 = int_to_ptr.vmem [resolvable:$true] %s95
      %98 = dma.hbm_to_vmem [thread:$0]  %s11, 16, %s96, [#allocation12]
    $region49: #{bert_classifier_forward.5} parent=1 // pred_fallthru
      _
    // Predicated region
    $region50: #{bert_classifier_forward.5} parent=1 // pred_check
      _
    $region51: #{bert_classifier_forward.5} parent=1 // pred_check_branch
      %100 = sbr.rel (0) target = $region53
    $region52: #{bert_classifier_forward.5} parent=1 // pred_region
      _
    $region53: #{bert_classifier_forward.5} parent=1 // pred_fallthru
      _
    // Predicated region
    $region54: #{bert_classifier_forward.5} parent=1 // pred_check
      _
    $region55: #{bert_classifier_forward.5} parent=1 // pred_check_branch
      %102 = sbr.rel (0) target = $region57
    $region56: #{bert_classifier_forward.5} parent=1 // pred_region
      %s104 = ssub.s32 16, 16
      %105 = vsyncadd [#allocation12], %s104
      %s107 = sshll.u32 [#allocation13], 4
      %s108 = int_to_ptr.vmem [resolvable:$true] %s107
      %110 = dma.hbm_to_vmem [thread:$0]  %s13, 16, %s108, [#allocation12]
    $region57: #{bert_classifier_forward.5} parent=1 // pred_fallthru
      _
    // Predicated region
    $region58: #{bert_classifier_forward.5} parent=1 // pred_check
      _
    $region59: #{bert_classifier_forward.5} parent=1 // pred_check_branch
      %112 = sbr.rel (0) target = $region61
    $region60: #{bert_classifier_forward.5} parent=1 // pred_region
      %113 = dma.done [#allocation4], 1024
    $region61: #{bert_classifier_forward.5} parent=1 // pred_fallthru
      _
    // Predicated region
    $region62: #{bert_classifier_forward.5} parent=1 // pred_check
      _
    $region63: #{bert_classifier_forward.5} parent=1 // pred_check_branch
      %115 = sbr.rel (0) target = $region65
    $region64: #{bert_classifier_forward.5} parent=1 // pred_region
      %116 = dma.done [#allocation6], 16
    $region65: #{bert_classifier_forward.5} parent=1 // pred_fallthru
      _
    // Predicated region
    $region66: #{bert_classifier_forward.5} parent=1 // pred_check
      _
    $region67: #{bert_classifier_forward.5} parent=1 // pred_check_branch
      %118 = sbr.rel (0) target = $region69
    $region68: #{bert_classifier_forward.5} parent=1 // pred_region
      %119 = dma.done [#allocation6], 16
    $region69: #{bert_classifier_forward.5} parent=1 // pred_fallthru
      _
    // Predicated region
    $region70: #{bert_classifier_forward.5} parent=1 // pred_check
      _
    $region71: #{bert_classifier_forward.5} parent=1 // pred_check_branch
      %121 = sbr.rel (0) target = $region73
    $region72: #{bert_classifier_forward.5} parent=1 // pred_region
      %122 = dma.done [#allocation9], 64
    $region73: #{bert_classifier_forward.5} parent=1 // pred_fallthru
      _
    // Predicated region
    $region74: #{bert_classifier_forward.5} parent=1 // pred_check
      _
    $region75: #{bert_classifier_forward.5} parent=1 // pred_check_branch
      %124 = sbr.rel (0) target = $region77
    $region76: #{bert_classifier_forward.5} parent=1 // pred_region
      %125 = dma.done [#allocation9], 4096
    $region77: #{bert_classifier_forward.5} parent=1 // pred_fallthru
      _
    // Predicated region
    $region78: #{bert_classifier_forward.5} parent=1 // pred_check
      _
    $region79: #{bert_classifier_forward.5} parent=1 // pred_check_branch
      %127 = sbr.rel (0) target = $region81
    $region80: #{bert_classifier_forward.5} parent=1 // pred_region
      %128 = dma.done [#allocation12], 16
    $region81: #{bert_classifier_forward.5} parent=1 // pred_fallthru
      _
    // Predicated region
    $region82: #{bert_classifier_forward.5} parent=1 // pred_check
      _
    $region83: #{bert_classifier_forward.5} parent=1 // pred_check_branch
      %130 = sbr.rel (0) target = $region85
    $region84: #{bert_classifier_forward.5} parent=1 // pred_region
      %131 = dma.done [#allocation12], 16
    $region85: #{bert_classifier_forward.5} parent=1 // pred_fallthru
      _
    %v133 = vld [vmem:[%s0] sm:$0xff]
    %v134 = vld [vmem:[%s0 + $0x8] sm:$0xff]
    %v135 = vld [vmem:[%s1] sm:$0x3]
    %v136 = vpack.c.bf16 %v134, %v133
    %v137 = vld [vmem:[%s2] sm:$0xff]
    %v138 = vld [vmem:[%s2 + $0x8] sm:$0xf]
    %v139 = vld [vmem:[%s2 + $0xc] sm:$0xff]
    %v140 = vld [vmem:[%s2 + $0x14] sm:$0xf]
    %v141 = vld [vmem:[%s2 + $0x18] sm:$0xff]
    %v142 = vld [vmem:[%s2 + $0x20] sm:$0xf]
    %v143 = vld [vmem:[%s2 + $0x24] sm:$0xff]
    %v144 = vld [vmem:[%s2 + $0x2c] sm:$0xf]
    %v145 = vld [vmem:[%s2 + $0x30] sm:$0xff]
    %v146 = vld [vmem:[%s2 + $0x38] sm:$0xf]
    %v147 = vld [vmem:[%s2 + $0x3c] sm:$0xff]
    %v148 = vld [vmem:[%s2 + $0x44] sm:$0xf]
    %v149 = vld [vmem:[%s2 + $0x48] sm:$0xff]
    %v150 = vld [vmem:[%s2 + $0x50] sm:$0xf]
    %v151 = vld [vmem:[%s2 + $0x54] sm:$0xff]
    %v152 = vld [vmem:[%s2 + $0x5c] sm:$0xf]
    %v153 = vld [vmem:[%s2 + $0x60] sm:$0xff]
    %v154 = vld [vmem:[%s2 + $0x68] sm:$0xf]
    %v155 = vld [vmem:[%s2 + $0x6c] sm:$0xff]
    %v156 = vld [vmem:[%s2 + $0x74] sm:$0xf]
    %v157 = vld [vmem:[%s2 + $0x78] sm:$0xff]
    %v158 = vld [vmem:[%s2 + $0x80] sm:$0xf]
    %v159 = vld [vmem:[%s2 + $0x84] sm:$0xff]
    %v160 = vld [vmem:[%s2 + $0x8c] sm:$0xf]
    %v161 = vld [vmem:[%s2 + $0x90] sm:$0xff]
    %v162 = vld [vmem:[%s2 + $0x98] sm:$0xf]
    %v163 = vld [vmem:[%s2 + $0x9c] sm:$0xff]
    %v164 = vld [vmem:[%s2 + $0xa4] sm:$0xf]
    %v165 = vld [vmem:[%s2 + $0xa8] sm:$0xff]
    %v166 = vld [vmem:[%s2 + $0xb0] sm:$0xf]
    %v167 = vld [vmem:[%s2 + $0xb4] sm:$0xff]
    %v168 = vld [vmem:[%s2 + $0xbc] sm:$0xf]
    %v169 = vld [vmem:[%s3] sm:$0x7]
    %v171 = vlaneseq
    %v172 = vshrl.u32 %v171, 7
    %v173 = vsub.s32 0, %v172
    %v174 = vrot.slane %v169, %v173
    %v175 = vlaneseq
    %v176 = vshrl.u32 %v175, 7
    %v177 = vsub.s32 1, %v176
    %v178 = vrot.slane %v169, %v177
    %v179 = vlaneseq
    %v180 = vshrl.u32 %v179, 7
    %v181 = vsub.s32 2, %v180
    %v182 = vrot.slane %v169, %v181
    %v218 = vunpack.c.l.b16 %v137
    %v219 = vunpack.c.h.b16 %v137
    %v220 = vunpack.c.l.b16 %v138
    %v221 = vunpack.c.l.b16 %v139
    %v222 = vunpack.c.h.b16 %v139
    %v223 = vunpack.c.l.b16 %v140
    %v224 = vunpack.c.l.b16 %v141
    %v225 = vunpack.c.h.b16 %v141
    %v226 = vunpack.c.l.b16 %v142
    %v227 = vunpack.c.l.b16 %v143
    %v228 = vunpack.c.h.b16 %v143
    %v229 = vunpack.c.l.b16 %v144
    %v230 = vunpack.c.l.b16 %v145
    %v231 = vunpack.c.h.b16 %v145
    %v232 = vunpack.c.l.b16 %v146
    %v233 = vunpack.c.l.b16 %v147
    %v234 = vunpack.c.h.b16 %v147
    %v235 = vunpack.c.l.b16 %v148
    %v236 = vunpack.c.l.b16 %v149
    %v237 = vunpack.c.h.b16 %v149
    %v238 = vunpack.c.l.b16 %v150
    %v239 = vunpack.c.l.b16 %v151
    %v240 = vunpack.c.h.b16 %v151
    %v241 = vunpack.c.l.b16 %v152
    %v242 = vunpack.c.l.b16 %v153
    %v243 = vunpack.c.h.b16 %v153
    %v244 = vunpack.c.l.b16 %v154
    %v245 = vunpack.c.l.b16 %v155
    %v246 = vunpack.c.h.b16 %v155
    %v247 = vunpack.c.l.b16 %v156
    %v248 = vunpack.c.l.b16 %v157
    %v249 = vunpack.c.h.b16 %v157
    %v250 = vunpack.c.l.b16 %v158
    %v251 = vunpack.c.l.b16 %v159
    %v252 = vunpack.c.h.b16 %v159
    %v253 = vunpack.c.l.b16 %v160
    %v254 = vunpack.c.l.b16 %v161
    %v255 = vunpack.c.h.b16 %v161
    %v256 = vunpack.c.l.b16 %v162
    %v257 = vunpack.c.l.b16 %v163
    %v258 = vunpack.c.h.b16 %v163
    %v259 = vunpack.c.l.b16 %v164
    %v260 = vunpack.c.l.b16 %v165
    %v261 = vunpack.c.h.b16 %v165
    %v262 = vunpack.c.l.b16 %v166
    %v263 = vunpack.c.l.b16 %v167
    %v264 = vunpack.c.h.b16 %v167
    %v265 = vunpack.c.l.b16 %v168
    %v266 = vpack.c.b16 %v221, %v218
    %v267 = vpack.c.b16 %v222, %v219
    %v268 = vpack.c.b16 %v223, %v220
    %v269 = vpack.c.b16 %v227, %v224
    %v270 = vpack.c.b16 %v228, %v225
    %v271 = vpack.c.b16 %v229, %v226
    %v272 = vpack.c.b16 %v233, %v230
    %v273 = vpack.c.b16 %v234, %v231
    %v274 = vpack.c.b16 %v235, %v232
    %v275 = vpack.c.b16 %v239, %v236
    %v276 = vpack.c.b16 %v240, %v237
    %v277 = vpack.c.b16 %v241, %v238
    %v278 = vpack.c.b16 %v245, %v242
    %v279 = vpack.c.b16 %v246, %v243
    %v280 = vpack.c.b16 %v247, %v244
    %v281 = vpack.c.b16 %v251, %v248
    %v282 = vpack.c.b16 %v252, %v249
    %v283 = vpack.c.b16 %v253, %v250
    %v284 = vpack.c.b16 %v257, %v254
    %v285 = vpack.c.b16 %v258, %v255
    %v286 = vpack.c.b16 %v259, %v256
    %v287 = vpack.c.b16 %v263, %v260
    %v288 = vpack.c.b16 %v264, %v261
    %v289 = vpack.c.b16 %v265, %v262
    %314 = vmatprep.subr.bf16.mxu0 %v267
    %315 = vmatpush1.bf16.msra.mxu0 %v266
    %316 = vmatprep.subr.bf16.mxu0 %v270
    %317 = vmatpush1.bf16.msra.mxu0 %v269
    %318 = vmatprep.subr.bf16.mxu0 %v273
    %319 = vmatpush1.bf16.msra.mxu0 %v272
    %320 = vmatprep.subr.bf16.mxu0 %v276
    %321 = vmatpush1.bf16.msra.mxu0 %v275
    %322 = vmatprep.subr.bf16.mxu0 %v279
    %323 = vmatpush1.bf16.msra.mxu0 %v278
    %324 = vmatprep.subr.bf16.mxu0 %v282
    %325 = vmatpush1.bf16.msra.mxu0 %v281
    %326 = vmatprep.subr.bf16.mxu0 %v285
    %327 = vmatpush1.bf16.msra.mxu0 %v284
    %328 = vmatprep.subr.bf16.mxu0 %v288
    %329 = vmatpush1.bf16.msra.mxu0 %v287
    %330 = vmatprep.subr.bf16.mxu0 0
    %331 = vmatpush1.bf16.msra.mxu0 0
    %332 = vmatprep.subr.bf16.mxu0 0
    %333 = vmatpush1.bf16.msra.mxu0 0
    %334 = vmatprep.subr.bf16.mxu0 0
    %335 = vmatpush1.bf16.msra.mxu0 0
    %336 = vmatprep.subr.bf16.mxu0 0
    %337 = vmatpush1.bf16.msra.mxu0 0
    %338 = vmatprep.subr.bf16.mxu0 0
    %339 = vmatpush1.bf16.msra.mxu0 0
    %340 = vmatprep.subr.bf16.mxu0 0
    %341 = vmatpush1.bf16.msra.mxu0 0
    %342 = vmatprep.subr.bf16.mxu0 0
    %343 = vmatpush1.bf16.msra.mxu0 0
    %344 = vmatprep.subr.bf16.mxu0 0
    %345 = vmatpush1.bf16.msra.mxu0 0
    %346 = vmatprep.mubr.bf16.mxu0 0
    %347 = vmatmul.mubr.bf16.gmra.mrb[0].mxu0 %v136
    %v348 = vpop.f32.mrb[0].mxu0
    %v349 = vadd.f32 %v174, %v348
    %v350 = vpop.f32.mrb[0].mxu0
    %v351 = vadd.f32 %v178, %v350
    %v352 = vpop.f32.mrb[0].mxu0
    %v353 = vadd.f32 %v174, %v352
    %v354 = vpop.f32.mrb[0].mxu0
    %v355 = vadd.f32 %v178, %v354
    %356 = vdwg.mxu0
    %357 = vmatprep.subr.bf16.mxu0 0
    %358 = vmatpush1.bf16.msra.mxu0 %v268
    %359 = vmatprep.subr.bf16.mxu0 0
    %360 = vmatpush1.bf16.msra.mxu0 %v271
    %361 = vmatprep.subr.bf16.mxu0 0
    %362 = vmatpush1.bf16.msra.mxu0 %v274
    %363 = vmatprep.subr.bf16.mxu0 0
    %364 = vmatpush1.bf16.msra.mxu0 %v277
    %365 = vmatprep.subr.bf16.mxu0 0
    %366 = vmatpush1.bf16.msra.mxu0 %v280
    %367 = vmatprep.subr.bf16.mxu0 0
    %368 = vmatpush1.bf16.msra.mxu0 %v283
    %369 = vmatprep.subr.bf16.mxu0 0
    %370 = vmatpush1.bf16.msra.mxu0 %v286
    %371 = vmatprep.subr.bf16.mxu0 0
    %372 = vmatpush1.bf16.msra.mxu0 %v289
    %373 = vmatprep.subr.bf16.mxu0 0
    %374 = vmatpush1.bf16.msra.mxu0 0
    %375 = vmatprep.subr.bf16.mxu0 0
    %376 = vmatpush1.bf16.msra.mxu0 0
    %377 = vmatprep.subr.bf16.mxu0 0
    %378 = vmatpush1.bf16.msra.mxu0 0
    %379 = vmatprep.subr.bf16.mxu0 0
    %380 = vmatpush1.bf16.msra.mxu0 0
    %381 = vmatprep.subr.bf16.mxu0 0
    %382 = vmatpush1.bf16.msra.mxu0 0
    %383 = vmatprep.subr.bf16.mxu0 0
    %384 = vmatpush1.bf16.msra.mxu0 0
    %385 = vmatprep.subr.bf16.mxu0 0
    %386 = vmatpush1.bf16.msra.mxu0 0
    %387 = vmatprep.subr.bf16.mxu0 0
    %388 = vmatpush1.bf16.msra.mxu0 0
    %389 = vmatprep.mubr.bf16.mxu0 0
    %390 = vmatmul.mubr.bf16.gmra.mrb[0].mxu0 %v136
    %v391 = vpop.f32.mrb[0].mxu0
    %v392 = vadd.f32 %v182, %v391
    %v393 = vpop.f32.mrb[0].mxu0
    %v394 = vpop.f32.mrb[0].mxu0
    %v395 = vadd.f32 %v182, %v394
    %v396 = vpop.f32.mrb[0].mxu0
    %397 = vdwg.mxu0
    %v398 = vpack.c.bf16 %v349, %v349
    %v399 = vpack.c.bf16 %v351, %v351
    %vm400 = vcmask 523264
    %v402 = vsel %vm400, %v398, 0
    %v405 = vsel %vm400, %v399, 0
    %407 = vmatprep.subr.bf16.mxu0 0
    %408 = vmatpush1.bf16.xpose.msra.mxu0 %v405
    %409 = vmatprep.subr.bf16.mxu0 0
    %410 = vmatpush1.bf16.xpose.msra.mxu0 0
    %411 = vmatprep.subr.bf16.mxu0 0
    %412 = vmatpush1.bf16.xpose.msra.mxu0 0
    %413 = vmatprep.subr.bf16.mxu0 0
    %414 = vmatpush1.bf16.xpose.msra.mxu0 0
    %415 = vmatprep.subr.bf16.mxu0 0
    %416 = vmatpush1.bf16.xpose.msra.mxu0 0
    %417 = vmatprep.subr.bf16.mxu0 0
    %418 = vmatpush1.bf16.xpose.msra.mxu0 0
    %419 = vmatprep.subr.bf16.mxu0 0
    %420 = vmatpush1.bf16.xpose.msra.mxu0 0
    %421 = vmatprep.subr.bf16.mxu0 0
    %422 = vmatpush1.bf16.xpose.msra.mxu0 0
    %423 = vmatprep.subr.bf16.mxu0 0
    %424 = vmatpush1.bf16.xpose.msra.mxu0 0
    %425 = vmatprep.subr.bf16.mxu0 0
    %426 = vmatpush1.bf16.xpose.msra.mxu0 0
    %427 = vmatprep.subr.bf16.mxu0 0
    %428 = vmatpush1.bf16.xpose.msra.mxu0 0
    %429 = vmatprep.subr.bf16.mxu0 0
    %430 = vmatpush1.bf16.xpose.msra.mxu0 0
    %431 = vmatprep.subr.bf16.mxu0 0
    %432 = vmatpush1.bf16.xpose.msra.mxu0 0
    %433 = vmatprep.subr.bf16.mxu0 0
    %434 = vmatpush1.bf16.xpose.msra.mxu0 0
    %435 = vmatprep.subr.bf16.mxu0 0
    %436 = vmatpush1.bf16.xpose.msra.mxu0 0
    %437 = vmatprep.subr.bf16.mxu0 0
    %438 = vmatpush1.bf16.xpose.msra.mxu0 0
    %439 = vmatprep.mubr.bf16.mxu0 0
    %440 = vmatmul.mubr.bf16.gmra.mrb[0].mxu0 %v402
    %v441 = vpop.f32.mrb[0].mxu0
    %v442 = vadd.f32 0.0, %v441
    %v443 = vpop.f32.mrb[0].mxu0
    %v444 = vpop.f32.mrb[0].mxu0
    %v445 = vpop.f32.mrb[0].mxu0
    %446 = vdwg.mxu0
    %v447 = vmul.f32 %v442, 0.125
    %v448 = vlaneseq
    %v449 = vshrl.u32 %v448, 7
    %v450 = vsub.s32 0, %v449
    %v451 = vrot.slane %v135, %v450
    %v452 = vadd.f32 %v447, %v451
    %vm453 = vcmask 64512
    %v454 = vsel %vm453, %v452, -inf
    %455 = vmax.xlane.f32.xlu0 %v454
    %v456 = vpop.xlane.xlu0 %455
    %v457 = vsub.f32 %v452, %v456
    %v458 = vmul.f32 %v457, 1.442695
    %v459 = vpow.pop %v458
    %v460 = vsel %vm453, %v459, 0.0
    %461 = vadd.xlane.f32.xlu0 %v460
    %v462 = vpop.xlane.xlu0 %461
    %v463 = vrcp.pop %v462
    %v464 = vmul.f32 %v459, %v463
    %v465 = vpack.c.bf16 %v464, %v464
    %v466 = vpack.c.bf16 %v392, %v392
    %v468 = vsel %vm453, %v465, 0
    %vm470 = vcmask 1043456
    %v472 = vsel %vm470, %v466, 0
    %474 = vmatprep.subr.bf16.mxu0 0
    %475 = vmatpush1.bf16.msra.mxu0 %v472
    %476 = vmatprep.subr.bf16.mxu0 0
    %477 = vmatpush1.bf16.msra.mxu0 0
    %478 = vmatprep.subr.bf16.mxu0 0
    %479 = vmatpush1.bf16.msra.mxu0 0
    %480 = vmatprep.subr.bf16.mxu0 0
    %481 = vmatpush1.bf16.msra.mxu0 0
    %482 = vmatprep.subr.bf16.mxu0 0
    %483 = vmatpush1.bf16.msra.mxu0 0
    %484 = vmatprep.subr.bf16.mxu0 0
    %485 = vmatpush1.bf16.msra.mxu0 0
    %486 = vmatprep.subr.bf16.mxu0 0
    %487 = vmatpush1.bf16.msra.mxu0 0
    %488 = vmatprep.subr.bf16.mxu0 0
    %489 = vmatpush1.bf16.msra.mxu0 0
    %490 = vmatprep.subr.bf16.mxu0 0
    %491 = vmatpush1.bf16.msra.mxu0 0
    %492 = vmatprep.subr.bf16.mxu0 0
    %493 = vmatpush1.bf16.msra.mxu0 0
    %494 = vmatprep.subr.bf16.mxu0 0
    %495 = vmatpush1.bf16.msra.mxu0 0
    %496 = vmatprep.subr.bf16.mxu0 0
    %497 = vmatpush1.bf16.msra.mxu0 0
    %498 = vmatprep.subr.bf16.mxu0 0
    %499 = vmatpush1.bf16.msra.mxu0 0
    %500 = vmatprep.subr.bf16.mxu0 0
    %501 = vmatpush1.bf16.msra.mxu0 0
    %502 = vmatprep.subr.bf16.mxu0 0
    %503 = vmatpush1.bf16.msra.mxu0 0
    %504 = vmatprep.subr.bf16.mxu0 0
    %505 = vmatpush1.bf16.msra.mxu0 0
    %506 = vmatprep.mubr.bf16.mxu0 0
    %507 = vmatmul.mubr.bf16.gmra.mrb[0].mxu0 %v468
    %v508 = vpop.f32.mrb[0].mxu0
    %v509 = vadd.f32 0.0, %v508
    %v510 = vpop.f32.mrb[0].mxu0
    %v511 = vpop.f32.mrb[0].mxu0
    %v512 = vpop.f32.mrb[0].mxu0
    %513 = vdwg.mxu0
    %514 = vst.msk [vmem:[#allocation2] sm:$0xff] %vm400, %v509
    %516 = vrot.lane.b32.xlu0 %v398, 64
    %v517 = vpop.permute.xlu0 %516
    %519 = vrot.lane.b32.xlu0 %v399, 64
    %v520 = vpop.permute.xlu0 %519
    %v522 = vsel %vm400, %v517, 0
    %v525 = vsel %vm400, %v520, 0
    %527 = vmatprep.subr.bf16.mxu0 0
    %528 = vmatpush1.bf16.xpose.msra.mxu0 %v525
    %529 = vmatprep.subr.bf16.mxu0 0
    %530 = vmatpush1.bf16.xpose.msra.mxu0 0
    %531 = vmatprep.subr.bf16.mxu0 0
    %532 = vmatpush1.bf16.xpose.msra.mxu0 0
    %533 = vmatprep.subr.bf16.mxu0 0
    %534 = vmatpush1.bf16.xpose.msra.mxu0 0
    %535 = vmatprep.subr.bf16.mxu0 0
    %536 = vmatpush1.bf16.xpose.msra.mxu0 0
    %537 = vmatprep.subr.bf16.mxu0 0
    %538 = vmatpush1.bf16.xpose.msra.mxu0 0
    %539 = vmatprep.subr.bf16.mxu0 0
    %540 = vmatpush1.bf16.xpose.msra.mxu0 0
    %541 = vmatprep.subr.bf16.mxu0 0
    %542 = vmatpush1.bf16.xpose.msra.mxu0 0
    %543 = vmatprep.subr.bf16.mxu0 0
    %544 = vmatpush1.bf16.xpose.msra.mxu0 0
    %545 = vmatprep.subr.bf16.mxu0 0
    %546 = vmatpush1.bf16.xpose.msra.mxu0 0
    %547 = vmatprep.subr.bf16.mxu0 0
    %548 = vmatpush1.bf16.xpose.msra.mxu0 0
    %549 = vmatprep.subr.bf16.mxu0 0
    %550 = vmatpush1.bf16.xpose.msra.mxu0 0
    %551 = vmatprep.subr.bf16.mxu0 0
    %552 = vmatpush1.bf16.xpose.msra.mxu0 0
    %553 = vmatprep.subr.bf16.mxu0 0
    %554 = vmatpush1.bf16.xpose.msra.mxu0 0
    %555 = vmatprep.subr.bf16.mxu0 0
    %556 = vmatpush1.bf16.xpose.msra.mxu0 0
    %557 = vmatprep.subr.bf16.mxu0 0
    %558 = vmatpush1.bf16.xpose.msra.mxu0 0
    %559 = vmatprep.mubr.bf16.mxu0 0
    %560 = vmatmul.mubr.bf16.gmra.mrb[0].mxu0 %v522
    %v561 = vpop.f32.mrb[0].mxu0
    %v562 = vadd.f32 0.0, %v561
    %v563 = vpop.f32.mrb[0].mxu0
    %v564 = vpop.f32.mrb[0].mxu0
    %v565 = vpop.f32.mrb[0].mxu0
    %566 = vdwg.mxu0
    %v567 = vmul.f32 %v562, 0.125
    %v568 = vadd.f32 %v567, %v451
    %v569 = vsel %vm453, %v568, -inf
    %570 = vmax.xlane.f32.xlu0 %v569
    %v571 = vpop.xlane.xlu0 %570
    %v572 = vsub.f32 %v568, %v571
    %v573 = vmul.f32 %v572, 1.442695
    %v574 = vpow.pop %v573
    %v575 = vsel %vm453, %v574, 0.0
    %576 = vadd.xlane.f32.xlu0 %v575
    %v577 = vpop.xlane.xlu0 %576
    %v578 = vrcp.pop %v577
    %v579 = vmul.f32 %v574, %v578
    %v580 = vpack.c.bf16 %v579, %v579
    %582 = vrot.lane.b32.xlu0 %v466, 64
    %v583 = vpop.permute.xlu0 %582
    %v585 = vsel %vm453, %v580, 0
    %v588 = vsel %vm470, %v583, 0
    %590 = vmatprep.subr.bf16.mxu0 0
    %591 = vmatpush1.bf16.msra.mxu0 %v588
    %592 = vmatprep.subr.bf16.mxu0 0
    %593 = vmatpush1.bf16.msra.mxu0 0
    %594 = vmatprep.subr.bf16.mxu0 0
    %595 = vmatpush1.bf16.msra.mxu0 0
    %596 = vmatprep.subr.bf16.mxu0 0
    %597 = vmatpush1.bf16.msra.mxu0 0
    %598 = vmatprep.subr.bf16.mxu0 0
    %599 = vmatpush1.bf16.msra.mxu0 0
    %600 = vmatprep.subr.bf16.mxu0 0
    %601 = vmatpush1.bf16.msra.mxu0 0
    %602 = vmatprep.subr.bf16.mxu0 0
    %603 = vmatpush1.bf16.msra.mxu0 0
    %604 = vmatprep.subr.bf16.mxu0 0
    %605 = vmatpush1.bf16.msra.mxu0 0
    %606 = vmatprep.subr.bf16.mxu0 0
    %607 = vmatpush1.bf16.msra.mxu0 0
    %608 = vmatprep.subr.bf16.mxu0 0
    %609 = vmatpush1.bf16.msra.mxu0 0
    %610 = vmatprep.subr.bf16.mxu0 0
    %611 = vmatpush1.bf16.msra.mxu0 0
    %612 = vmatprep.subr.bf16.mxu0 0
    %613 = vmatpush1.bf16.msra.mxu0 0
    %614 = vmatprep.subr.bf16.mxu0 0
    %615 = vmatpush1.bf16.msra.mxu0 0
    %616 = vmatprep.subr.bf16.mxu0 0
    %617 = vmatpush1.bf16.msra.mxu0 0
    %618 = vmatprep.subr.bf16.mxu0 0
    %619 = vmatpush1.bf16.msra.mxu0 0
    %620 = vmatprep.subr.bf16.mxu0 0
    %621 = vmatpush1.bf16.msra.mxu0 0
    %622 = vmatprep.mubr.bf16.mxu0 0
    %623 = vmatmul.mubr.bf16.gmra.mrb[0].mxu0 %v585
    %v624 = vpop.f32.mrb[0].mxu0
    %v625 = vadd.f32 0.0, %v624
    %v626 = vpop.f32.mrb[0].mxu0
    %v627 = vpop.f32.mrb[0].mxu0
    %v628 = vpop.f32.mrb[0].mxu0
    %629 = vdwg.mxu0
    %631 = vrot.lane.b32.xlu0 %v625, 64
    %v632 = vpop.permute.xlu0 %631
    %vm634 = vcmask 1048064
    %635 = vst.msk [vmem:[#allocation2] sm:$0xff] %vm634, %v632
    %v636 = vpack.c.bf16 %v353, %v353
    %v637 = vpack.c.bf16 %v355, %v355
    %v639 = vsel %vm400, %v636, 0
    %v642 = vsel %vm400, %v637, 0
    %644 = vmatprep.subr.bf16.mxu0 0
    %645 = vmatpush1.bf16.xpose.msra.mxu0 %v642
    %646 = vmatprep.subr.bf16.mxu0 0
    %647 = vmatpush1.bf16.xpose.msra.mxu0 0
    %648 = vmatprep.subr.bf16.mxu0 0
    %649 = vmatpush1.bf16.xpose.msra.mxu0 0
    %650 = vmatprep.subr.bf16.mxu0 0
    %651 = vmatpush1.bf16.xpose.msra.mxu0 0
    %652 = vmatprep.subr.bf16.mxu0 0
    %653 = vmatpush1.bf16.xpose.msra.mxu0 0
    %654 = vmatprep.subr.bf16.mxu0 0
    %655 = vmatpush1.bf16.xpose.msra.mxu0 0
    %656 = vmatprep.subr.bf16.mxu0 0
    %657 = vmatpush1.bf16.xpose.msra.mxu0 0
    %658 = vmatprep.subr.bf16.mxu0 0
    %659 = vmatpush1.bf16.xpose.msra.mxu0 0
    %660 = vmatprep.subr.bf16.mxu0 0
    %661 = vmatpush1.bf16.xpose.msra.mxu0 0
    %662 = vmatprep.subr.bf16.mxu0 0
    %663 = vmatpush1.bf16.xpose.msra.mxu0 0
    %664 = vmatprep.subr.bf16.mxu0 0
    %665 = vmatpush1.bf16.xpose.msra.mxu0 0
    %666 = vmatprep.subr.bf16.mxu0 0
    %667 = vmatpush1.bf16.xpose.msra.mxu0 0
    %668 = vmatprep.subr.bf16.mxu0 0
    %669 = vmatpush1.bf16.xpose.msra.mxu0 0
    %670 = vmatprep.subr.bf16.mxu0 0
    %671 = vmatpush1.bf16.xpose.msra.mxu0 0
    %672 = vmatprep.subr.bf16.mxu0 0
    %673 = vmatpush1.bf16.xpose.msra.mxu0 0
    %674 = vmatprep.subr.bf16.mxu0 0
    %675 = vmatpush1.bf16.xpose.msra.mxu0 0
    %676 = vmatprep.mubr.bf16.mxu0 0
    %677 = vmatmul.mubr.bf16.gmra.mrb[0].mxu0 %v639
    %v678 = vpop.f32.mrb[0].mxu0
    %v679 = vadd.f32 0.0, %v678
    %v680 = vpop.f32.mrb[0].mxu0
    %v681 = vpop.f32.mrb[0].mxu0
    %v682 = vpop.f32.mrb[0].mxu0
    %683 = vdwg.mxu0
    %v684 = vmul.f32 %v679, 0.125
    %v685 = vlaneseq
    %v686 = vshrl.u32 %v685, 7
    %v687 = vsub.s32 1, %v686
    %v688 = vrot.slane %v135, %v687
    %v689 = vadd.f32 %v684, %v688
    %v690 = vsel %vm453, %v689, -inf
    %691 = vmax.xlane.f32.xlu0 %v690
    %v692 = vpop.xlane.xlu0 %691
    %v693 = vsub.f32 %v689, %v692
    %v694 = vmul.f32 %v693, 1.442695
    %v695 = vpow.pop %v694
    %v696 = vsel %vm453, %v695, 0.0
    %697 = vadd.xlane.f32.xlu0 %v696
    %v698 = vpop.xlane.xlu0 %697
    %v699 = vrcp.pop %v698
    %v700 = vmul.f32 %v695, %v699
    %v701 = vpack.c.bf16 %v700, %v700
    %v702 = vpack.c.bf16 %v395, %v395
    %v704 = vsel %vm453, %v701, 0
    %v707 = vsel %vm470, %v702, 0
    %709 = vmatprep.subr.bf16.mxu0 0
    %710 = vmatpush1.bf16.msra.mxu0 %v707
    %711 = vmatprep.subr.bf16.mxu0 0
    %712 = vmatpush1.bf16.msra.mxu0 0
    %713 = vmatprep.subr.bf16.mxu0 0
    %714 = vmatpush1.bf16.msra.mxu0 0
    %715 = vmatprep.subr.bf16.mxu0 0
    %716 = vmatpush1.bf16.msra.mxu0 0
    %717 = vmatprep.subr.bf16.mxu0 0
    %718 = vmatpush1.bf16.msra.mxu0 0
    %719 = vmatprep.subr.bf16.mxu0 0
    %720 = vmatpush1.bf16.msra.mxu0 0
    %721 = vmatprep.subr.bf16.mxu0 0
    %722 = vmatpush1.bf16.msra.mxu0 0
    %723 = vmatprep.subr.bf16.mxu0 0
    %724 = vmatpush1.bf16.msra.mxu0 0
    %725 = vmatprep.subr.bf16.mxu0 0
    %726 = vmatpush1.bf16.msra.mxu0 0
    %727 = vmatprep.subr.bf16.mxu0 0
    %728 = vmatpush1.bf16.msra.mxu0 0
    %729 = vmatprep.subr.bf16.mxu0 0
    %730 = vmatpush1.bf16.msra.mxu0 0
    %731 = vmatprep.subr.bf16.mxu0 0
    %732 = vmatpush1.bf16.msra.mxu0 0
    %733 = vmatprep.subr.bf16.mxu0 0
    %734 = vmatpush1.bf16.msra.mxu0 0
    %735 = vmatprep.subr.bf16.mxu0 0
    %736 = vmatpush1.bf16.msra.mxu0 0
    %737 = vmatprep.subr.bf16.mxu0 0
    %738 = vmatpush1.bf16.msra.mxu0 0
    %739 = vmatprep.subr.bf16.mxu0 0
    %740 = vmatpush1.bf16.msra.mxu0 0
    %741 = vmatprep.mubr.bf16.mxu0 0
    %742 = vmatmul.mubr.bf16.gmra.mrb[0].mxu0 %v704
    %v743 = vpop.f32.mrb[0].mxu0
    %v744 = vadd.f32 0.0, %v743
    %v745 = vpop.f32.mrb[0].mxu0
    %v746 = vpop.f32.mrb[0].mxu0
    %v747 = vpop.f32.mrb[0].mxu0
    %748 = vdwg.mxu0
    %749 = vst.msk [vmem:[#allocation2 + $0x8] sm:$0xff] %vm400, %v744
    %751 = vrot.lane.b32.xlu0 %v636, 64
    %v752 = vpop.permute.xlu0 %751
    %754 = vrot.lane.b32.xlu0 %v637, 64
    %v755 = vpop.permute.xlu0 %754
    %v757 = vsel %vm400, %v752, 0
    %v760 = vsel %vm400, %v755, 0
    %762 = vmatprep.subr.bf16.mxu0 0
    %763 = vmatpush1.bf16.xpose.msra.mxu0 %v760
    %764 = vmatprep.subr.bf16.mxu0 0
    %765 = vmatpush1.bf16.xpose.msra.mxu0 0
    %766 = vmatprep.subr.bf16.mxu0 0
    %767 = vmatpush1.bf16.xpose.msra.mxu0 0
    %768 = vmatprep.subr.bf16.mxu0 0
    %769 = vmatpush1.bf16.xpose.msra.mxu0 0
    %770 = vmatprep.subr.bf16.mxu0 0
    %771 = vmatpush1.bf16.xpose.msra.mxu0 0
    %772 = vmatprep.subr.bf16.mxu0 0
    %773 = vmatpush1.bf16.xpose.msra.mxu0 0
    %774 = vmatprep.subr.bf16.mxu0 0
    %775 = vmatpush1.bf16.xpose.msra.mxu0 0
    %776 = vmatprep.subr.bf16.mxu0 0
    %777 = vmatpush1.bf16.xpose.msra.mxu0 0
    %778 = vmatprep.subr.bf16.mxu0 0
    %779 = vmatpush1.bf16.xpose.msra.mxu0 0
    %780 = vmatprep.subr.bf16.mxu0 0
    %781 = vmatpush1.bf16.xpose.msra.mxu0 0
    %782 = vmatprep.subr.bf16.mxu0 0
    %783 = vmatpush1.bf16.xpose.msra.mxu0 0
    %784 = vmatprep.subr.bf16.mxu0 0
    %785 = vmatpush1.bf16.xpose.msra.mxu0 0
    %786 = vmatprep.subr.bf16.mxu0 0
    %787 = vmatpush1.bf16.xpose.msra.mxu0 0
    %788 = vmatprep.subr.bf16.mxu0 0
    %789 = vmatpush1.bf16.xpose.msra.mxu0 0
    %790 = vmatprep.subr.bf16.mxu0 0
    %791 = vmatpush1.bf16.xpose.msra.mxu0 0
    %792 = vmatprep.subr.bf16.mxu0 0
    %793 = vmatpush1.bf16.xpose.msra.mxu0 0
    %794 = vmatprep.mubr.bf16.mxu0 0
    %795 = vmatmul.mubr.bf16.gmra.mrb[0].mxu0 %v757
    %v796 = vpop.f32.mrb[0].mxu0
    %v797 = vadd.f32 0.0, %v796
    %v798 = vpop.f32.mrb[0].mxu0
    %v799 = vpop.f32.mrb[0].mxu0
    %v800 = vpop.f32.mrb[0].mxu0
    %801 = vdwg.mxu0
    %v802 = vmul.f32 %v797, 0.125
    %v803 = vadd.f32 %v802, %v688
    %v804 = vsel %vm453, %v803, -inf
    %805 = vmax.xlane.f32.xlu0 %v804
    %v806 = vpop.xlane.xlu0 %805
    %v807 = vsub.f32 %v803, %v806
    %v808 = vmul.f32 %v807, 1.442695
    %v809 = vpow.pop %v808
    %v810 = vsel %vm453, %v809, 0.0
    %811 = vadd.xlane.f32.xlu0 %v810
    %v812 = vpop.xlane.xlu0 %811
    %v813 = vrcp.pop %v812
    %v814 = vmul.f32 %v809, %v813
    %v815 = vpack.c.bf16 %v814, %v814
    %817 = vrot.lane.b32.xlu0 %v702, 64
    %v818 = vpop.permute.xlu0 %817
    %v820 = vsel %vm453, %v815, 0
    %v823 = vsel %vm470, %v818, 0
    %825 = vmatprep.subr.bf16.mxu0 0
    %826 = vmatpush1.bf16.msra.mxu0 %v823
    %827 = vmatprep.subr.bf16.mxu0 0
    %828 = vmatpush1.bf16.msra.mxu0 0
    %829 = vmatprep.subr.bf16.mxu0 0
    %830 = vmatpush1.bf16.msra.mxu0 0
    %831 = vmatprep.subr.bf16.mxu0 0
    %832 = vmatpush1.bf16.msra.mxu0 0
    %833 = vmatprep.subr.bf16.mxu0 0
    %834 = vmatpush1.bf16.msra.mxu0 0
    %835 = vmatprep.subr.bf16.mxu0 0
    %836 = vmatpush1.bf16.msra.mxu0 0
    %837 = vmatprep.subr.bf16.mxu0 0
    %838 = vmatpush1.bf16.msra.mxu0 0
    %839 = vmatprep.subr.bf16.mxu0 0
    %840 = vmatpush1.bf16.msra.mxu0 0
    %841 = vmatprep.subr.bf16.mxu0 0
    %842 = vmatpush1.bf16.msra.mxu0 0
    %843 = vmatprep.subr.bf16.mxu0 0
    %844 = vmatpush1.bf16.msra.mxu0 0
    %845 = vmatprep.subr.bf16.mxu0 0
    %846 = vmatpush1.bf16.msra.mxu0 0
    %847 = vmatprep.subr.bf16.mxu0 0
    %848 = vmatpush1.bf16.msra.mxu0 0
    %849 = vmatprep.subr.bf16.mxu0 0
    %850 = vmatpush1.bf16.msra.mxu0 0
    %851 = vmatprep.subr.bf16.mxu0 0
    %852 = vmatpush1.bf16.msra.mxu0 0
    %853 = vmatprep.subr.bf16.mxu0 0
    %854 = vmatpush1.bf16.msra.mxu0 0
    %855 = vmatprep.subr.bf16.mxu0 0
    %856 = vmatpush1.bf16.msra.mxu0 0
    %857 = vmatprep.mubr.bf16.mxu0 0
    %858 = vmatmul.mubr.bf16.gmra.mrb[0].mxu0 %v820
    %v859 = vpop.f32.mrb[0].mxu0
    %v860 = vadd.f32 0.0, %v859
    %v861 = vpop.f32.mrb[0].mxu0
    %v862 = vpop.f32.mrb[0].mxu0
    %v863 = vpop.f32.mrb[0].mxu0
    %864 = vdwg.mxu0
    %866 = vrot.lane.b32.xlu0 %v860, 64
    %v867 = vpop.permute.xlu0 %866
    %869 = vst.msk [vmem:[#allocation2 + $0x8] sm:$0xff] %vm634, %v867
    %v870 = vld [vmem:[#allocation2] sm:$0xff]
    %v871 = vld [vmem:[#allocation2 + $0x8] sm:$0xff]
    %v872 = vpack.c.bf16 %v871, %v870
    %v873 = vld [vmem:[#allocation3] sm:$0xf]
    %v874 = vld [vmem:[#allocation3 + $0x4] sm:$0xf]
    %v875 = vld [vmem:[#allocation3 + $0x8] sm:$0xf]
    %v876 = vld [vmem:[#allocation3 + $0xc] sm:$0xf]
    %v877 = vld [vmem:[#allocation3 + $0x10] sm:$0xf]
    %v878 = vld [vmem:[#allocation3 + $0x14] sm:$0xf]
    %v879 = vld [vmem:[#allocation3 + $0x18] sm:$0xf]
    %v880 = vld [vmem:[#allocation3 + $0x1c] sm:$0xf]
    %v881 = vld [vmem:[#allocation3 + $0x20] sm:$0xf]
    %v882 = vld [vmem:[#allocation3 + $0x24] sm:$0xf]
    %v883 = vld [vmem:[#allocation3 + $0x28] sm:$0xf]
    %v884 = vld [vmem:[#allocation3 + $0x2c] sm:$0xf]
    %v885 = vld [vmem:[#allocation3 + $0x30] sm:$0xf]
    %v886 = vld [vmem:[#allocation3 + $0x34] sm:$0xf]
    %v887 = vld [vmem:[#allocation3 + $0x38] sm:$0xf]
    %v888 = vld [vmem:[#allocation3 + $0x3c] sm:$0xf]
    %v889 = vld [vmem:[#allocation5] sm:$0x1]
    %v891 = vlaneseq
    %v892 = vshrl.u32 %v891, 7
    %v893 = vsub.s32 0, %v892
    %v894 = vrot.slane %v889, %v893
    %v912 = vunpack.c.l.b16 %v873
    %v913 = vunpack.c.l.b16 %v874
    %v914 = vunpack.c.l.b16 %v875
    %v915 = vunpack.c.l.b16 %v876
    %v916 = vunpack.c.l.b16 %v877
    %v917 = vunpack.c.l.b16 %v878
    %v918 = vunpack.c.l.b16 %v879
    %v919 = vunpack.c.l.b16 %v880
    %v920 = vunpack.c.l.b16 %v881
    %v921 = vunpack.c.l.b16 %v882
    %v922 = vunpack.c.l.b16 %v883
    %v923 = vunpack.c.l.b16 %v884
    %v924 = vunpack.c.l.b16 %v885
    %v925 = vunpack.c.l.b16 %v886
    %v926 = vunpack.c.l.b16 %v887
    %v927 = vunpack.c.l.b16 %v888
    %v928 = vpack.c.b16 %v913, %v912
    %v929 = vpack.c.b16 %v915, %v914
    %v930 = vpack.c.b16 %v917, %v916
    %v931 = vpack.c.b16 %v919, %v918
    %v932 = vpack.c.b16 %v921, %v920
    %v933 = vpack.c.b16 %v923, %v922
    %v934 = vpack.c.b16 %v925, %v924
    %v935 = vpack.c.b16 %v927, %v926
    %944 = vmatprep.subr.bf16.mxu0 0
    %945 = vmatpush1.bf16.msra.mxu0 %v928
    %946 = vmatprep.subr.bf16.mxu0 0
    %947 = vmatpush1.bf16.msra.mxu0 %v929
    %948 = vmatprep.subr.bf16.mxu0 0
    %949 = vmatpush1.bf16.msra.mxu0 %v930
    %950 = vmatprep.subr.bf16.mxu0 0
    %951 = vmatpush1.bf16.msra.mxu0 %v931
    %952 = vmatprep.subr.bf16.mxu0 0
    %953 = vmatpush1.bf16.msra.mxu0 %v932
    %954 = vmatprep.subr.bf16.mxu0 0
    %955 = vmatpush1.bf16.msra.mxu0 %v933
    %956 = vmatprep.subr.bf16.mxu0 0
    %957 = vmatpush1.bf16.msra.mxu0 %v934
    %958 = vmatprep.subr.bf16.mxu0 0
    %959 = vmatpush1.bf16.msra.mxu0 %v935
    %960 = vmatprep.subr.bf16.mxu0 0
    %961 = vmatpush1.bf16.msra.mxu0 0
    %962 = vmatprep.subr.bf16.mxu0 0
    %963 = vmatpush1.bf16.msra.mxu0 0
    %964 = vmatprep.subr.bf16.mxu0 0
    %965 = vmatpush1.bf16.msra.mxu0 0
    %966 = vmatprep.subr.bf16.mxu0 0
    %967 = vmatpush1.bf16.msra.mxu0 0
    %968 = vmatprep.subr.bf16.mxu0 0
    %969 = vmatpush1.bf16.msra.mxu0 0
    %970 = vmatprep.subr.bf16.mxu0 0
    %971 = vmatpush1.bf16.msra.mxu0 0
    %972 = vmatprep.subr.bf16.mxu0 0
    %973 = vmatpush1.bf16.msra.mxu0 0
    %974 = vmatprep.subr.bf16.mxu0 0
    %975 = vmatpush1.bf16.msra.mxu0 0
    %976 = vmatprep.mubr.bf16.mxu0 0
    %977 = vmatmul.mubr.bf16.gmra.mrb[0].mxu0 %v872
    %v978 = vpop.f32.mrb[0].mxu0
    %v979 = vadd.f32 %v894, %v978
    %v980 = vpop.f32.mrb[0].mxu0
    %v981 = vpop.f32.mrb[0].mxu0
    %v982 = vadd.f32 %v894, %v981
    %v983 = vpop.f32.mrb[0].mxu0
    %984 = vdwg.mxu0
    %v985 = vadd.f32 %v979, %v133
    %v986 = vadd.f32 %v982, %v134
    %v987 = vld [vmem:[%s6] sm:$0x1]
    %v988 = vld [vmem:[#allocation7] sm:$0x1]
    %989 = vadd.xlane.f32.xlu0 %v985
    %v990 = vpop.xlane.xlu0 %989
    %991 = vadd.xlane.f32.xlu0 %v986
    %v992 = vpop.xlane.xlu0 %991
    %v993 = vrcp.pop 128.0
    %v994 = vmul.f32 %v990, %v993
    %v995 = vmul.f32 %v992, %v993
    %v996 = vsub.f32 %v985, %v994
    %v997 = vsub.f32 %v986, %v995
    %v998 = vmul.f32 %v996, %v996
    %v999 = vmul.f32 %v997, %v997
    %1000 = vadd.xlane.f32.xlu0 %v998
    %v1001 = vpop.xlane.xlu0 %1000
    %1002 = vadd.xlane.f32.xlu0 %v999
    %v1003 = vpop.xlane.xlu0 %1002
    %v1004 = vmul.f32 %v1001, %v993
    %v1005 = vmul.f32 %v1003, %v993
    %v1006 = vadd.f32 %v1004, 1e-12
    %v1007 = vadd.f32 %v1005, 1e-12
    %v1008 = vrsqrt.pop %v1006
    %v1009 = vrsqrt.pop %v1007
    %v1010 = vmul.f32 %v996, %v1008
    %v1011 = vmul.f32 %v997, %v1009
    %v1013 = vlaneseq
    %v1014 = vshrl.u32 %v1013, 7
    %v1015 = vsub.s32 0, %v1014
    %v1016 = vrot.slane %v987, %v1015
    %v1018 = vmul.f32 %v1010, %v1016
    %v1019 = vmul.f32 %v1011, %v1016
    %v1021 = vlaneseq
    %v1022 = vshrl.u32 %v1021, 7
    %v1023 = vsub.s32 0, %v1022
    %v1024 = vrot.slane %v988, %v1023
    %v1026 = vadd.f32 %v1018, %v1024
    %v1027 = vadd.f32 %v1019, %v1024
    %v1028 = vpack.c.bf16 %v1027, %v1026
    %v1029 = vld [vmem:[%s8] sm:$0xff]
    %v1030 = vld [vmem:[%s8 + $0x8] sm:$0xff]
    %v1031 = vld [vmem:[%s8 + $0x10] sm:$0xff]
    %v1032 = vld [vmem:[%s8 + $0x18] sm:$0xff]
    %v1033 = vld [vmem:[%s8 + $0x20] sm:$0xff]
    %v1034 = vld [vmem:[%s8 + $0x28] sm:$0xff]
    %v1035 = vld [vmem:[%s8 + $0x30] sm:$0xff]
    %v1036 = vld [vmem:[%s8 + $0x38] sm:$0xff]
    %v1037 = vld [vmem:[%s8 + $0x40] sm:$0xff]
    %v1038 = vld [vmem:[%s8 + $0x48] sm:$0xff]
    %v1039 = vld [vmem:[%s8 + $0x50] sm:$0xff]
    %v1040 = vld [vmem:[%s8 + $0x58] sm:$0xff]
    %v1041 = vld [vmem:[%s8 + $0x60] sm:$0xff]
    %v1042 = vld [vmem:[%s8 + $0x68] sm:$0xff]
    %v1043 = vld [vmem:[%s8 + $0x70] sm:$0xff]
    %v1044 = vld [vmem:[%s8 + $0x78] sm:$0xff]
    %v1045 = vld [vmem:[%s8 + $0x80] sm:$0xff]
    %v1046 = vld [vmem:[%s8 + $0x88] sm:$0xff]
    %v1047 = vld [vmem:[%s8 + $0x90] sm:$0xff]
    %v1048 = vld [vmem:[%s8 + $0x98] sm:$0xff]
    %v1049 = vld [vmem:[%s8 + $0xa0] sm:$0xff]
    %v1050 = vld [vmem:[%s8 + $0xa8] sm:$0xff]
    %v1051 = vld [vmem:[%s8 + $0xb0] sm:$0xff]
    %v1052 = vld [vmem:[%s8 + $0xb8] sm:$0xff]
    %v1053 = vld [vmem:[%s8 + $0xc0] sm:$0xff]
    %v1054 = vld [vmem:[%s8 + $0xc8] sm:$0xff]
    %v1055 = vld [vmem:[%s8 + $0xd0] sm:$0xff]
    %v1056 = vld [vmem:[%s8 + $0xd8] sm:$0xff]
    %v1057 = vld [vmem:[%s8 + $0xe0] sm:$0xff]
    %v1058 = vld [vmem:[%s8 + $0xe8] sm:$0xff]
    %v1059 = vld [vmem:[%s8 + $0xf0] sm:$0xff]
    %v1060 = vld [vmem:[%s8 + $0xf8] sm:$0xff]
    %v1061 = vld [vmem:[#allocation8] sm:$0xf]
    %v1063 = vlaneseq
    %v1064 = vshrl.u32 %v1063, 7
    %v1065 = vsub.s32 0, %v1064
    %v1066 = vrot.slane %v1061, %v1065
    %v1067 = vlaneseq
    %v1068 = vshrl.u32 %v1067, 7
    %v1069 = vsub.s32 1, %v1068
    %v1070 = vrot.slane %v1061, %v1069
    %v1071 = vlaneseq
    %v1072 = vshrl.u32 %v1071, 7
    %v1073 = vsub.s32 2, %v1072
    %v1074 = vrot.slane %v1061, %v1073
    %v1075 = vlaneseq
    %v1076 = vshrl.u32 %v1075, 7
    %v1077 = vsub.s32 3, %v1076
    %v1078 = vrot.slane %v1061, %v1077
    %v1115 = vunpack.c.l.b16 %v1029
    %v1116 = vunpack.c.h.b16 %v1029
    %v1117 = vunpack.c.l.b16 %v1030
    %v1118 = vunpack.c.h.b16 %v1030
    %v1119 = vunpack.c.l.b16 %v1031
    %v1120 = vunpack.c.h.b16 %v1031
    %v1121 = vunpack.c.l.b16 %v1032
    %v1122 = vunpack.c.h.b16 %v1032
    %v1123 = vunpack.c.l.b16 %v1033
    %v1124 = vunpack.c.h.b16 %v1033
    %v1125 = vunpack.c.l.b16 %v1034
    %v1126 = vunpack.c.h.b16 %v1034
    %v1127 = vunpack.c.l.b16 %v1035
    %v1128 = vunpack.c.h.b16 %v1035
    %v1129 = vunpack.c.l.b16 %v1036
    %v1130 = vunpack.c.h.b16 %v1036
    %v1131 = vunpack.c.l.b16 %v1037
    %v1132 = vunpack.c.h.b16 %v1037
    %v1133 = vunpack.c.l.b16 %v1038
    %v1134 = vunpack.c.h.b16 %v1038
    %v1135 = vunpack.c.l.b16 %v1039
    %v1136 = vunpack.c.h.b16 %v1039
    %v1137 = vunpack.c.l.b16 %v1040
    %v1138 = vunpack.c.h.b16 %v1040
    %v1139 = vunpack.c.l.b16 %v1041
    %v1140 = vunpack.c.h.b16 %v1041
    %v1141 = vunpack.c.l.b16 %v1042
    %v1142 = vunpack.c.h.b16 %v1042
    %v1143 = vunpack.c.l.b16 %v1043
    %v1144 = vunpack.c.h.b16 %v1043
    %v1145 = vunpack.c.l.b16 %v1044
    %v1146 = vunpack.c.h.b16 %v1044
    %v1147 = vunpack.c.l.b16 %v1045
    %v1148 = vunpack.c.h.b16 %v1045
    %v1149 = vunpack.c.l.b16 %v1046
    %v1150 = vunpack.c.h.b16 %v1046
    %v1151 = vunpack.c.l.b16 %v1047
    %v1152 = vunpack.c.h.b16 %v1047
    %v1153 = vunpack.c.l.b16 %v1048
    %v1154 = vunpack.c.h.b16 %v1048
    %v1155 = vunpack.c.l.b16 %v1049
    %v1156 = vunpack.c.h.b16 %v1049
    %v1157 = vunpack.c.l.b16 %v1050
    %v1158 = vunpack.c.h.b16 %v1050
    %v1159 = vunpack.c.l.b16 %v1051
    %v1160 = vunpack.c.h.b16 %v1051
    %v1161 = vunpack.c.l.b16 %v1052
    %v1162 = vunpack.c.h.b16 %v1052
    %v1163 = vunpack.c.l.b16 %v1053
    %v1164 = vunpack.c.h.b16 %v1053
    %v1165 = vunpack.c.l.b16 %v1054
    %v1166 = vunpack.c.h.b16 %v1054
    %v1167 = vunpack.c.l.b16 %v1055
    %v1168 = vunpack.c.h.b16 %v1055
    %v1169 = vunpack.c.l.b16 %v1056
    %v1170 = vunpack.c.h.b16 %v1056
    %v1171 = vunpack.c.l.b16 %v1057
    %v1172 = vunpack.c.h.b16 %v1057
    %v1173 = vunpack.c.l.b16 %v1058
    %v1174 = vunpack.c.h.b16 %v1058
    %v1175 = vunpack.c.l.b16 %v1059
    %v1176 = vunpack.c.h.b16 %v1059
    %v1177 = vunpack.c.l.b16 %v1060
    %v1178 = vunpack.c.h.b16 %v1060
    %v1179 = vpack.c.b16 %v1119, %v1115
    %v1180 = vpack.c.b16 %v1120, %v1116
    %v1181 = vpack.c.b16 %v1121, %v1117
    %v1182 = vpack.c.b16 %v1122, %v1118
    %v1183 = vpack.c.b16 %v1127, %v1123
    %v1184 = vpack.c.b16 %v1128, %v1124
    %v1185 = vpack.c.b16 %v1129, %v1125
    %v1186 = vpack.c.b16 %v1130, %v1126
    %v1187 = vpack.c.b16 %v1135, %v1131
    %v1188 = vpack.c.b16 %v1136, %v1132
    %v1189 = vpack.c.b16 %v1137, %v1133
    %v1190 = vpack.c.b16 %v1138, %v1134
    %v1191 = vpack.c.b16 %v1143, %v1139
    %v1192 = vpack.c.b16 %v1144, %v1140
    %v1193 = vpack.c.b16 %v1145, %v1141
    %v1194 = vpack.c.b16 %v1146, %v1142
    %v1195 = vpack.c.b16 %v1151, %v1147
    %v1196 = vpack.c.b16 %v1152, %v1148
    %v1197 = vpack.c.b16 %v1153, %v1149
    %v1198 = vpack.c.b16 %v1154, %v1150
    %v1199 = vpack.c.b16 %v1159, %v1155
    %v1200 = vpack.c.b16 %v1160, %v1156
    %v1201 = vpack.c.b16 %v1161, %v1157
    %v1202 = vpack.c.b16 %v1162, %v1158
    %v1203 = vpack.c.b16 %v1167, %v1163
    %v1204 = vpack.c.b16 %v1168, %v1164
    %v1205 = vpack.c.b16 %v1169, %v1165
    %v1206 = vpack.c.b16 %v1170, %v1166
    %v1207 = vpack.c.b16 %v1175, %v1171
    %v1208 = vpack.c.b16 %v1176, %v1172
    %v1209 = vpack.c.b16 %v1177, %v1173
    %v1210 = vpack.c.b16 %v1178, %v1174
    %1243 = vmatprep.subr.bf16.mxu0 %v1180
    %1244 = vmatpush1.bf16.msra.mxu0 %v1179
    %1245 = vmatprep.subr.bf16.mxu0 %v1184
    %1246 = vmatpush1.bf16.msra.mxu0 %v1183
    %1247 = vmatprep.subr.bf16.mxu0 %v1188
    %1248 = vmatpush1.bf16.msra.mxu0 %v1187
    %1249 = vmatprep.subr.bf16.mxu0 %v1192
    %1250 = vmatpush1.bf16.msra.mxu0 %v1191
    %1251 = vmatprep.subr.bf16.mxu0 %v1196
    %1252 = vmatpush1.bf16.msra.mxu0 %v1195
    %1253 = vmatprep.subr.bf16.mxu0 %v1200
    %1254 = vmatpush1.bf16.msra.mxu0 %v1199
    %1255 = vmatprep.subr.bf16.mxu0 %v1204
    %1256 = vmatpush1.bf16.msra.mxu0 %v1203
    %1257 = vmatprep.subr.bf16.mxu0 %v1208
    %1258 = vmatpush1.bf16.msra.mxu0 %v1207
    %1259 = vmatprep.subr.bf16.mxu0 0
    %1260 = vmatpush1.bf16.msra.mxu0 0
    %1261 = vmatprep.subr.bf16.mxu0 0
    %1262 = vmatpush1.bf16.msra.mxu0 0
    %1263 = vmatprep.subr.bf16.mxu0 0
    %1264 = vmatpush1.bf16.msra.mxu0 0
    %1265 = vmatprep.subr.bf16.mxu0 0
    %1266 = vmatpush1.bf16.msra.mxu0 0
    %1267 = vmatprep.subr.bf16.mxu0 0
    %1268 = vmatpush1.bf16.msra.mxu0 0
    %1269 = vmatprep.subr.bf16.mxu0 0
    %1270 = vmatpush1.bf16.msra.mxu0 0
    %1271 = vmatprep.subr.bf16.mxu0 0
    %1272 = vmatpush1.bf16.msra.mxu0 0
    %1273 = vmatprep.subr.bf16.mxu0 0
    %1274 = vmatpush1.bf16.msra.mxu0 0
    %1275 = vmatprep.mubr.bf16.mxu0 0
    %1276 = vmatmul.mubr.bf16.gmra.mrb[0].mxu0 %v1028
    %v1277 = vpop.f32.mrb[0].mxu0
    %v1278 = vadd.f32 %v1066, %v1277
    %v1279 = vpop.f32.mrb[0].mxu0
    %v1280 = vadd.f32 %v1070, %v1279
    %v1281 = vpop.f32.mrb[0].mxu0
    %v1282 = vadd.f32 %v1066, %v1281
    %v1283 = vpop.f32.mrb[0].mxu0
    %v1284 = vadd.f32 %v1070, %v1283
    %1285 = vdwg.mxu0
    %1286 = vmatprep.subr.bf16.mxu0 %v1182
    %1287 = vmatpush1.bf16.msra.mxu0 %v1181
    %1288 = vmatprep.subr.bf16.mxu0 %v1186
    %1289 = vmatpush1.bf16.msra.mxu0 %v1185
    %1290 = vmatprep.subr.bf16.mxu0 %v1190
    %1291 = vmatpush1.bf16.msra.mxu0 %v1189
    %1292 = vmatprep.subr.bf16.mxu0 %v1194
    %1293 = vmatpush1.bf16.msra.mxu0 %v1193
    %1294 = vmatprep.subr.bf16.mxu0 %v1198
    %1295 = vmatpush1.bf16.msra.mxu0 %v1197
    %1296 = vmatprep.subr.bf16.mxu0 %v1202
    %1297 = vmatpush1.bf16.msra.mxu0 %v1201
    %1298 = vmatprep.subr.bf16.mxu0 %v1206
    %1299 = vmatpush1.bf16.msra.mxu0 %v1205
    %1300 = vmatprep.subr.bf16.mxu0 %v1210
    %1301 = vmatpush1.bf16.msra.mxu0 %v1209
    %1302 = vmatprep.subr.bf16.mxu0 0
    %1303 = vmatpush1.bf16.msra.mxu0 0
    %1304 = vmatprep.subr.bf16.mxu0 0
    %1305 = vmatpush1.bf16.msra.mxu0 0
    %1306 = vmatprep.subr.bf16.mxu0 0
    %1307 = vmatpush1.bf16.msra.mxu0 0
    %1308 = vmatprep.subr.bf16.mxu0 0
    %1309 = vmatpush1.bf16.msra.mxu0 0
    %1310 = vmatprep.subr.bf16.mxu0 0
    %1311 = vmatpush1.bf16.msra.mxu0 0
    %1312 = vmatprep.subr.bf16.mxu0 0
    %1313 = vmatpush1.bf16.msra.mxu0 0
    %1314 = vmatprep.subr.bf16.mxu0 0
    %1315 = vmatpush1.bf16.msra.mxu0 0
    %1316 = vmatprep.subr.bf16.mxu0 0
    %1317 = vmatpush1.bf16.msra.mxu0 0
    %1318 = vmatprep.mubr.bf16.mxu0 0
    %1319 = vmatmul.mubr.bf16.gmra.mrb[0].mxu0 %v1028
    %v1320 = vpop.f32.mrb[0].mxu0
    %v1321 = vadd.f32 %v1074, %v1320
    %v1322 = vpop.f32.mrb[0].mxu0
    %v1323 = vadd.f32 %v1078, %v1322
    %v1324 = vpop.f32.mrb[0].mxu0
    %v1325 = vadd.f32 %v1074, %v1324
    %v1326 = vpop.f32.mrb[0].mxu0
    %v1327 = vadd.f32 %v1078, %v1326
    %1328 = vdwg.mxu0
    %v1329 = vmul.f32 %v1278, 0.5
    %v1330 = vmul.f32 %v1280, 0.5
    %v1331 = vmul.f32 %v1321, 0.5
    %v1332 = vmul.f32 %v1323, 0.5
    %v1333 = vmul.f32 %v1282, 0.5
    %v1334 = vmul.f32 %v1284, 0.5
    %v1335 = vmul.f32 %v1325, 0.5
    %v1336 = vmul.f32 %v1327, 0.5
    %v1337 = vmul.f32 %v1278, 0.044715
    %v1338 = vmul.f32 %v1280, 0.044715
    %v1339 = vmul.f32 %v1321, 0.044715
    %v1340 = vmul.f32 %v1323, 0.044715
    %v1341 = vmul.f32 %v1282, 0.044715
    %v1342 = vmul.f32 %v1284, 0.044715
    %v1343 = vmul.f32 %v1325, 0.044715
    %v1344 = vmul.f32 %v1327, 0.044715
    %v1345 = vmul.f32 %v1337, %v1278
    %v1346 = vmul.f32 %v1338, %v1280
    %v1347 = vmul.f32 %v1339, %v1321
    %v1348 = vmul.f32 %v1340, %v1323
    %v1349 = vmul.f32 %v1341, %v1282
    %v1350 = vmul.f32 %v1342, %v1284
    %v1351 = vmul.f32 %v1343, %v1325
    %v1352 = vmul.f32 %v1344, %v1327
    %v1353 = vmul.f32 %v1345, %v1278
    %v1354 = vmul.f32 %v1346, %v1280
    %v1355 = vmul.f32 %v1347, %v1321
    %v1356 = vmul.f32 %v1348, %v1323
    %v1357 = vmul.f32 %v1349, %v1282
    %v1358 = vmul.f32 %v1350, %v1284
    %v1359 = vmul.f32 %v1351, %v1325
    %v1360 = vmul.f32 %v1352, %v1327
    %v1361 = vadd.f32 %v1278, %v1353
    %v1362 = vadd.f32 %v1280, %v1354
    %v1363 = vadd.f32 %v1321, %v1355
    %v1364 = vadd.f32 %v1323, %v1356
    %v1365 = vadd.f32 %v1282, %v1357
    %v1366 = vadd.f32 %v1284, %v1358
    %v1367 = vadd.f32 %v1325, %v1359
    %v1368 = vadd.f32 %v1327, %v1360
    %v1369 = vmul.f32 %v1361, 0.7978846
    %v1370 = vmul.f32 %v1362, 0.7978846
    %v1371 = vmul.f32 %v1363, 0.7978846
    %v1372 = vmul.f32 %v1364, 0.7978846
    %v1373 = vmul.f32 %v1365, 0.7978846
    %v1374 = vmul.f32 %v1366, 0.7978846
    %v1375 = vmul.f32 %v1367, 0.7978846
    %v1376 = vmul.f32 %v1368, 0.7978846
    %v1377 = vtanh.pop %v1369
    %v1378 = vtanh.pop %v1370
    %v1379 = vtanh.pop %v1371
    %v1380 = vtanh.pop %v1372
    %v1381 = vtanh.pop %v1373
    %v1382 = vtanh.pop %v1374
    %v1383 = vtanh.pop %v1375
    %v1384 = vtanh.pop %v1376
    %v1385 = vadd.f32 %v1377, 1.0
    %v1386 = vadd.f32 %v1378, 1.0
    %v1387 = vadd.f32 %v1379, 1.0
    %v1388 = vadd.f32 %v1380, 1.0
    %v1389 = vadd.f32 %v1381, 1.0
    %v1390 = vadd.f32 %v1382, 1.0
    %v1391 = vadd.f32 %v1383, 1.0
    %v1392 = vadd.f32 %v1384, 1.0
    %v1393 = vmul.f32 %v1329, %v1385
    %v1394 = vmul.f32 %v1330, %v1386
    %v1395 = vmul.f32 %v1331, %v1387
    %v1396 = vmul.f32 %v1332, %v1388
    %v1397 = vmul.f32 %v1333, %v1389
    %v1398 = vmul.f32 %v1334, %v1390
    %v1399 = vmul.f32 %v1335, %v1391
    %v1400 = vmul.f32 %v1336, %v1392
    %v1401 = vpack.c.bf16 %v1397, %v1393
    %v1402 = vpack.c.bf16 %v1398, %v1394
    %v1403 = vpack.c.bf16 %v1399, %v1395
    %v1404 = vpack.c.bf16 %v1400, %v1396
    %v1405 = vld [vmem:[#allocation10] sm:$0xf]
    %v1406 = vld [vmem:[#allocation10 + $0x4] sm:$0xf]
    %v1407 = vld [vmem:[#allocation10 + $0x8] sm:$0xf]
    %v1408 = vld [vmem:[#allocation10 + $0xc] sm:$0xf]
    %v1409 = vld [vmem:[#allocation10 + $0x10] sm:$0xf]
    %v1410 = vld [vmem:[#allocation10 + $0x14] sm:$0xf]
    %v1411 = vld [vmem:[#allocation10 + $0x18] sm:$0xf]
    %v1412 = vld [vmem:[#allocation10 + $0x1c] sm:$0xf]
    %v1413 = vld [vmem:[#allocation10 + $0x20] sm:$0xf]
    %v1414 = vld [vmem:[#allocation10 + $0x24] sm:$0xf]
    %v1415 = vld [vmem:[#allocation10 + $0x28] sm:$0xf]
    %v1416 = vld [vmem:[#allocation10 + $0x2c] sm:$0xf]
    %v1417 = vld [vmem:[#allocation10 + $0x30] sm:$0xf]
    %v1418 = vld [vmem:[#allocation10 + $0x34] sm:$0xf]
    %v1419 = vld [vmem:[#allocation10 + $0x38] sm:$0xf]
    %v1420 = vld [vmem:[#allocation10 + $0x3c] sm:$0xf]
    %v1421 = vld [vmem:[#allocation10 + $0x40] sm:$0xf]
    %v1422 = vld [vmem:[#allocation10 + $0x44] sm:$0xf]
    %v1423 = vld [vmem:[#allocation10 + $0x48] sm:$0xf]
    %v1424 = vld [vmem:[#allocation10 + $0x4c] sm:$0xf]
    %v1425 = vld [vmem:[#allocation10 + $0x50] sm:$0xf]
    %v1426 = vld [vmem:[#allocation10 + $0x54] sm:$0xf]
    %v1427 = vld [vmem:[#allocation10 + $0x58] sm:$0xf]
    %v1428 = vld [vmem:[#allocation10 + $0x5c] sm:$0xf]
    %v1429 = vld [vmem:[#allocation10 + $0x60] sm:$0xf]
    %v1430 = vld [vmem:[#allocation10 + $0x64] sm:$0xf]
    %v1431 = vld [vmem:[#allocation10 + $0x68] sm:$0xf]
    %v1432 = vld [vmem:[#allocation10 + $0x6c] sm:$0xf]
    %v1433 = vld [vmem:[#allocation10 + $0x70] sm:$0xf]
    %v1434 = vld [vmem:[#allocation10 + $0x74] sm:$0xf]
    %v1435 = vld [vmem:[#allocation10 + $0x78] sm:$0xf]
    %v1436 = vld [vmem:[#allocation10 + $0x7c] sm:$0xf]
    %v1437 = vld [vmem:[#allocation10 + $0x80] sm:$0xf]
    %v1438 = vld [vmem:[#allocation10 + $0x84] sm:$0xf]
    %v1439 = vld [vmem:[#allocation10 + $0x88] sm:$0xf]
    %v1440 = vld [vmem:[#allocation10 + $0x8c] sm:$0xf]
    %v1441 = vld [vmem:[#allocation10 + $0x90] sm:$0xf]
    %v1442 = vld [vmem:[#allocation10 + $0x94] sm:$0xf]
    %v1443 = vld [vmem:[#allocation10 + $0x98] sm:$0xf]
    %v1444 = vld [vmem:[#allocation10 + $0x9c] sm:$0xf]
    %v1445 = vld [vmem:[#allocation10 + $0xa0] sm:$0xf]
    %v1446 = vld [vmem:[#allocation10 + $0xa4] sm:$0xf]
    %v1447 = vld [vmem:[#allocation10 + $0xa8] sm:$0xf]
    %v1448 = vld [vmem:[#allocation10 + $0xac] sm:$0xf]
    %v1449 = vld [vmem:[#allocation10 + $0xb0] sm:$0xf]
    %v1450 = vld [vmem:[#allocation10 + $0xb4] sm:$0xf]
    %v1451 = vld [vmem:[#allocation10 + $0xb8] sm:$0xf]
    %v1452 = vld [vmem:[#allocation10 + $0xbc] sm:$0xf]
    %v1453 = vld [vmem:[#allocation10 + $0xc0] sm:$0xf]
    %v1454 = vld [vmem:[#allocation10 + $0xc4] sm:$0xf]
    %v1455 = vld [vmem:[#allocation10 + $0xc8] sm:$0xf]
    %v1456 = vld [vmem:[#allocation10 + $0xcc] sm:$0xf]
    %v1457 = vld [vmem:[#allocation10 + $0xd0] sm:$0xf]
    %v1458 = vld [vmem:[#allocation10 + $0xd4] sm:$0xf]
    %v1459 = vld [vmem:[#allocation10 + $0xd8] sm:$0xf]
    %v1460 = vld [vmem:[#allocation10 + $0xdc] sm:$0xf]
    %v1461 = vld [vmem:[#allocation10 + $0xe0] sm:$0xf]
    %v1462 = vld [vmem:[#allocation10 + $0xe4] sm:$0xf]
    %v1463 = vld [vmem:[#allocation10 + $0xe8] sm:$0xf]
    %v1464 = vld [vmem:[#allocation10 + $0xec] sm:$0xf]
    %v1465 = vld [vmem:[#allocation10 + $0xf0] sm:$0xf]
    %v1466 = vld [vmem:[#allocation10 + $0xf4] sm:$0xf]
    %v1467 = vld [vmem:[#allocation10 + $0xf8] sm:$0xf]
    %v1468 = vld [vmem:[#allocation10 + $0xfc] sm:$0xf]
    %v1469 = vld [vmem:[#allocation11] sm:$0x1]
    %v1471 = vlaneseq
    %v1472 = vshrl.u32 %v1471, 7
    %v1473 = vsub.s32 0, %v1472
    %v1474 = vrot.slane %v1469, %v1473
    %v1540 = vunpack.c.l.b16 %v1405
    %v1541 = vunpack.c.l.b16 %v1406
    %v1542 = vunpack.c.l.b16 %v1407
    %v1543 = vunpack.c.l.b16 %v1408
    %v1544 = vunpack.c.l.b16 %v1409
    %v1545 = vunpack.c.l.b16 %v1410
    %v1546 = vunpack.c.l.b16 %v1411
    %v1547 = vunpack.c.l.b16 %v1412
    %v1548 = vunpack.c.l.b16 %v1413
    %v1549 = vunpack.c.l.b16 %v1414
    %v1550 = vunpack.c.l.b16 %v1415
    %v1551 = vunpack.c.l.b16 %v1416
    %v1552 = vunpack.c.l.b16 %v1417
    %v1553 = vunpack.c.l.b16 %v1418
    %v1554 = vunpack.c.l.b16 %v1419
    %v1555 = vunpack.c.l.b16 %v1420
    %v1556 = vunpack.c.l.b16 %v1421
    %v1557 = vunpack.c.l.b16 %v1422
    %v1558 = vunpack.c.l.b16 %v1423
    %v1559 = vunpack.c.l.b16 %v1424
    %v1560 = vunpack.c.l.b16 %v1425
    %v1561 = vunpack.c.l.b16 %v1426
    %v1562 = vunpack.c.l.b16 %v1427
    %v1563 = vunpack.c.l.b16 %v1428
    %v1564 = vunpack.c.l.b16 %v1429
    %v1565 = vunpack.c.l.b16 %v1430
    %v1566 = vunpack.c.l.b16 %v1431
    %v1567 = vunpack.c.l.b16 %v1432
    %v1568 = vunpack.c.l.b16 %v1433
    %v1569 = vunpack.c.l.b16 %v1434
    %v1570 = vunpack.c.l.b16 %v1435
    %v1571 = vunpack.c.l.b16 %v1436
    %v1572 = vunpack.c.l.b16 %v1437
    %v1573 = vunpack.c.l.b16 %v1438
    %v1574 = vunpack.c.l.b16 %v1439
    %v1575 = vunpack.c.l.b16 %v1440
    %v1576 = vunpack.c.l.b16 %v1441
    %v1577 = vunpack.c.l.b16 %v1442
    %v1578 = vunpack.c.l.b16 %v1443
    %v1579 = vunpack.c.l.b16 %v1444
    %v1580 = vunpack.c.l.b16 %v1445
    %v1581 = vunpack.c.l.b16 %v1446
    %v1582 = vunpack.c.l.b16 %v1447
    %v1583 = vunpack.c.l.b16 %v1448
    %v1584 = vunpack.c.l.b16 %v1449
    %v1585 = vunpack.c.l.b16 %v1450
    %v1586 = vunpack.c.l.b16 %v1451
    %v1587 = vunpack.c.l.b16 %v1452
    %v1588 = vunpack.c.l.b16 %v1453
    %v1589 = vunpack.c.l.b16 %v1454
    %v1590 = vunpack.c.l.b16 %v1455
    %v1591 = vunpack.c.l.b16 %v1456
    %v1592 = vunpack.c.l.b16 %v1457
    %v1593 = vunpack.c.l.b16 %v1458
    %v1594 = vunpack.c.l.b16 %v1459
    %v1595 = vunpack.c.l.b16 %v1460
    %v1596 = vunpack.c.l.b16 %v1461
    %v1597 = vunpack.c.l.b16 %v1462
    %v1598 = vunpack.c.l.b16 %v1463
    %v1599 = vunpack.c.l.b16 %v1464
    %v1600 = vunpack.c.l.b16 %v1465
    %v1601 = vunpack.c.l.b16 %v1466
    %v1602 = vunpack.c.l.b16 %v1467
    %v1603 = vunpack.c.l.b16 %v1468
    %v1604 = vpack.c.b16 %v1541, %v1540
    %v1605 = vpack.c.b16 %v1543, %v1542
    %v1606 = vpack.c.b16 %v1545, %v1544
    %v1607 = vpack.c.b16 %v1547, %v1546
    %v1608 = vpack.c.b16 %v1549, %v1548
    %v1609 = vpack.c.b16 %v1551, %v1550
    %v1610 = vpack.c.b16 %v1553, %v1552
    %v1611 = vpack.c.b16 %v1555, %v1554
    %v1612 = vpack.c.b16 %v1557, %v1556
    %v1613 = vpack.c.b16 %v1559, %v1558
    %v1614 = vpack.c.b16 %v1561, %v1560
    %v1615 = vpack.c.b16 %v1563, %v1562
    %v1616 = vpack.c.b16 %v1565, %v1564
    %v1617 = vpack.c.b16 %v1567, %v1566
    %v1618 = vpack.c.b16 %v1569, %v1568
    %v1619 = vpack.c.b16 %v1571, %v1570
    %v1620 = vpack.c.b16 %v1573, %v1572
    %v1621 = vpack.c.b16 %v1575, %v1574
    %v1622 = vpack.c.b16 %v1577, %v1576
    %v1623 = vpack.c.b16 %v1579, %v1578
    %v1624 = vpack.c.b16 %v1581, %v1580
    %v1625 = vpack.c.b16 %v1583, %v1582
    %v1626 = vpack.c.b16 %v1585, %v1584
    %v1627 = vpack.c.b16 %v1587, %v1586
    %v1628 = vpack.c.b16 %v1589, %v1588
    %v1629 = vpack.c.b16 %v1591, %v1590
    %v1630 = vpack.c.b16 %v1593, %v1592
    %v1631 = vpack.c.b16 %v1595, %v1594
    %v1632 = vpack.c.b16 %v1597, %v1596
    %v1633 = vpack.c.b16 %v1599, %v1598
    %v1634 = vpack.c.b16 %v1601, %v1600
    %v1635 = vpack.c.b16 %v1603, %v1602
    %1668 = vmatprep.subr.bf16.mxu0 0
    %1669 = vmatpush1.bf16.msra.mxu0 %v1604
    %1670 = vmatprep.subr.bf16.mxu0 0
    %1671 = vmatpush1.bf16.msra.mxu0 %v1605
    %1672 = vmatprep.subr.bf16.mxu0 0
    %1673 = vmatpush1.bf16.msra.mxu0 %v1606
    %1674 = vmatprep.subr.bf16.mxu0 0
    %1675 = vmatpush1.bf16.msra.mxu0 %v1607
    %1676 = vmatprep.subr.bf16.mxu0 0
    %1677 = vmatpush1.bf16.msra.mxu0 %v1608
    %1678 = vmatprep.subr.bf16.mxu0 0
    %1679 = vmatpush1.bf16.msra.mxu0 %v1609
    %1680 = vmatprep.subr.bf16.mxu0 0
    %1681 = vmatpush1.bf16.msra.mxu0 %v1610
    %1682 = vmatprep.subr.bf16.mxu0 0
    %1683 = vmatpush1.bf16.msra.mxu0 %v1611
    %1684 = vmatprep.subr.bf16.mxu0 0
    %1685 = vmatpush1.bf16.msra.mxu0 %v1612
    %1686 = vmatprep.subr.bf16.mxu0 0
    %1687 = vmatpush1.bf16.msra.mxu0 %v1613
    %1688 = vmatprep.subr.bf16.mxu0 0
    %1689 = vmatpush1.bf16.msra.mxu0 %v1614
    %1690 = vmatprep.subr.bf16.mxu0 0
    %1691 = vmatpush1.bf16.msra.mxu0 %v1615
    %1692 = vmatprep.subr.bf16.mxu0 0
    %1693 = vmatpush1.bf16.msra.mxu0 %v1616
    %1694 = vmatprep.subr.bf16.mxu0 0
    %1695 = vmatpush1.bf16.msra.mxu0 %v1617
    %1696 = vmatprep.subr.bf16.mxu0 0
    %1697 = vmatpush1.bf16.msra.mxu0 %v1618
    %1698 = vmatprep.subr.bf16.mxu0 0
    %1699 = vmatpush1.bf16.msra.mxu0 %v1619
    %1700 = vmatprep.mubr.bf16.mxu0 %v1402
    %1701 = vmatmul.mubr.bf16.gmra.mrb[0].mxu0 %v1401
    %v1702 = vpop.f32.mrb[0].mxu0
    %v1703 = vadd.f32 %v1474, %v1702
    %v1704 = vpop.f32.mrb[0].mxu0
    %v1705 = vpop.f32.mrb[0].mxu0
    %v1706 = vadd.f32 %v1474, %v1705
    %v1707 = vpop.f32.mrb[0].mxu0
    %1708 = vdwg.mxu0
    %1709 = vmatprep.subr.bf16.mxu0 0
    %1710 = vmatpush1.bf16.msra.mxu0 %v1620
    %1711 = vmatprep.subr.bf16.mxu0 0
    %1712 = vmatpush1.bf16.msra.mxu0 %v1621
    %1713 = vmatprep.subr.bf16.mxu0 0
    %1714 = vmatpush1.bf16.msra.mxu0 %v1622
    %1715 = vmatprep.subr.bf16.mxu0 0
    %1716 = vmatpush1.bf16.msra.mxu0 %v1623
    %1717 = vmatprep.subr.bf16.mxu0 0
    %1718 = vmatpush1.bf16.msra.mxu0 %v1624
    %1719 = vmatprep.subr.bf16.mxu0 0
    %1720 = vmatpush1.bf16.msra.mxu0 %v1625
    %1721 = vmatprep.subr.bf16.mxu0 0
    %1722 = vmatpush1.bf16.msra.mxu0 %v1626
    %1723 = vmatprep.subr.bf16.mxu0 0
    %1724 = vmatpush1.bf16.msra.mxu0 %v1627
    %1725 = vmatprep.subr.bf16.mxu0 0
    %1726 = vmatpush1.bf16.msra.mxu0 %v1628
    %1727 = vmatprep.subr.bf16.mxu0 0
    %1728 = vmatpush1.bf16.msra.mxu0 %v1629
    %1729 = vmatprep.subr.bf16.mxu0 0
    %1730 = vmatpush1.bf16.msra.mxu0 %v1630
    %1731 = vmatprep.subr.bf16.mxu0 0
    %1732 = vmatpush1.bf16.msra.mxu0 %v1631
    %1733 = vmatprep.subr.bf16.mxu0 0
    %1734 = vmatpush1.bf16.msra.mxu0 %v1632
    %1735 = vmatprep.subr.bf16.mxu0 0
    %1736 = vmatpush1.bf16.msra.mxu0 %v1633
    %1737 = vmatprep.subr.bf16.mxu0 0
    %1738 = vmatpush1.bf16.msra.mxu0 %v1634
    %1739 = vmatprep.subr.bf16.mxu0 0
    %1740 = vmatpush1.bf16.msra.mxu0 %v1635
    %1741 = vmatprep.mubr.bf16.mxu0 %v1404
    %1742 = vmatmul.mubr.bf16.gmra.mrb[0].mxu0 %v1403
    %v1743 = vpop.f32.mrb[0].mxu0
    %v1744 = vadd.f32 %v1703, %v1743
    %v1745 = vpop.f32.mrb[0].mxu0
    %v1746 = vpop.f32.mrb[0].mxu0
    %v1747 = vadd.f32 %v1706, %v1746
    %v1748 = vpop.f32.mrb[0].mxu0
    %1749 = vdwg.mxu0
    %v1750 = vadd.f32 %v1744, %v1026
    %v1751 = vadd.f32 %v1747, %v1027
    %v1752 = vld [vmem:[%s12] sm:$0x1]
    %v1753 = vld [vmem:[#allocation13] sm:$0x1]
    %1754 = vadd.xlane.f32.xlu0 %v1750
    %v1755 = vpop.xlane.xlu0 %1754
    %1756 = vadd.xlane.f32.xlu0 %v1751
    %v1757 = vpop.xlane.xlu0 %1756
    %v1758 = vmul.f32 %v1755, %v993
    %v1759 = vmul.f32 %v1757, %v993
    %v1760 = vsub.f32 %v1750, %v1758
    %v1761 = vsub.f32 %v1751, %v1759
    %v1762 = vmul.f32 %v1760, %v1760
    %v1763 = vmul.f32 %v1761, %v1761
    %1764 = vadd.xlane.f32.xlu0 %v1762
    %v1765 = vpop.xlane.xlu0 %1764
    %1766 = vadd.xlane.f32.xlu0 %v1763
    %v1767 = vpop.xlane.xlu0 %1766
    %v1768 = vmul.f32 %v1765, %v993
    %v1769 = vmul.f32 %v1767, %v993
    %v1770 = vadd.f32 %v1768, 1e-12
    %v1771 = vadd.f32 %v1769, 1e-12
    %v1772 = vrsqrt.pop %v1770
    %v1773 = vrsqrt.pop %v1771
    %v1774 = vmul.f32 %v1760, %v1772
    %v1775 = vmul.f32 %v1761, %v1773
    %v1777 = vlaneseq
    %v1778 = vshrl.u32 %v1777, 7
    %v1779 = vsub.s32 0, %v1778
    %v1780 = vrot.slane %v1752, %v1779
    %v1782 = vmul.f32 %v1774, %v1780
    %v1783 = vmul.f32 %v1775, %v1780
    %v1785 = vlaneseq
    %v1786 = vshrl.u32 %v1785, 7
    %v1787 = vsub.s32 0, %v1786
    %v1788 = vrot.slane %v1753, %v1787
    %v1790 = vadd.f32 %v1782, %v1788
    %v1791 = vadd.f32 %v1783, %v1788
    %1792 = vst [vmem:[%s14] sm:$0xff] %v1790
    %1793 = vst [vmem:[%s14 + $0x8] sm:$0xff] %v1791
    // Predicated region
    $region86: #{bert_classifier_forward.5} parent=1 // pred_check
      _
    $region87: #{bert_classifier_forward.5} parent=1 // pred_check_branch
      %1795 = sbr.rel (0) target = $region89
    $region88: #{bert_classifier_forward.5} parent=1 // pred_region
      _
    $region89: #{bert_classifier_forward.5} parent=1 // pred_fallthru
      _
    // Predicated region
    $region90: #{bert_classifier_forward.5} parent=1 // pred_check
      _
    $region91: #{bert_classifier_forward.5} parent=1 // pred_check_branch
      %1797 = sbr.rel (0) target = $region93
    $region92: #{bert_classifier_forward.5} parent=1 // pred_region
      _
    $region93: #{bert_classifier_forward.5} parent=1 // pred_fallthru
      _
    %1798 = vsyncpa [#allocation4], 1
    %1799 = vsyncpa [#allocation6], 1
    %1800 = vsyncpa [#allocation9], 1
    %1801 = vsyncpa [#allocation12], 1

</llo_original>
